<compile_context>
chip_gen: v6e
topology: v6e:2x2x1
jax: 0.10.0
libtpu: 0.0.40
codegen_flags: <defaults>
</compile_context>

<pallas_src>
import math
import numpy as np
import jax
import jax.numpy as jnp
from jax.experimental import pallas as pl
from jax.experimental.pallas import tpu as pltpu

NEG_SLOPE = 0.01                          # torch.nn.LeakyReLU() default
BN_SCALE = 1.0 / math.sqrt(1.0 + 1e-5)    # eval-mode BatchNorm1d, default running stats
NEG_BIG = -3.4e38                         # sentinel for segmented max init
VMEM_LIMIT = 32 * 1024 * 1024             # explicit scoped-VMEM budget (safe on v5e/v6e/v7x)


def _round_up(n, m):
    return ((n + m - 1) // m) * m


# ---------------------------------------------------------------------------
# Fused 3-layer MLP building blocks (run INSIDE the kernels)
# ---------------------------------------------------------------------------
def _layer(h, w_ref, b_ref, act):
    """Linear (+folded eval-BN) [+ LeakyReLU]. bf16 MXU inputs, f32 accumulation."""
    y = jnp.dot(h.astype(w_ref.dtype), w_ref[...],
                preferred_element_type=jnp.float32)
    y = y + b_ref[...]
    if act:
        y = jnp.where(y >= 0.0, y, NEG_SLOPE * y)
    return y


def _mlp3(h, w1, b1, w2, b2, w3, b3):
    h = _layer(h, w1, b1, True)
    h = _layer(h, w2, b2, True)
    return _layer(h, w3, b3, False)       # PyG MLP plain_last=True


def _weight_specs(params):
    """Whole weights resident in VMEM (constant index_map, fetched once)."""
    specs = []
    for w, _ in params:
        specs.append(pl.BlockSpec(w.shape, lambda *_: (0, 0)))
        specs.append(pl.BlockSpec((1, w.shape[1]), lambda *_: (0, 0)))
    return specs


def _weight_args(params):
    args = []
    for w, b in params:
        args.append(w)
        args.append(b.reshape(1, -1))
    return args


# ---------------------------------------------------------------------------
# Kernel 1: SAModule hot path — fused edge MLP + max over K neighbors
# ---------------------------------------------------------------------------
def _sa_conv_kernel(e_ref, w1, b1, w2, b2, w3, b3, o_ref):
    tm, cout = o_ref.shape
    K = e_ref.shape[0] // tm
    h = _mlp3(e_ref[...], w1, b1, w2, b2, w3, b3)          # [tm*K, cout] f32, VMEM only
    o_ref[...] = jnp.max(h.reshape(tm, K, cout), axis=1)   # 'max' aggregation


def sa_conv_pallas(edge2d, params, Mp, K, tm):
    cin = edge2d.shape[1]
    cout = params[-1][0].shape[1]
    return pl.pallas_call(
        _sa_conv_kernel,
        out_shape=jax.ShapeDtypeStruct((Mp, cout), jnp.float32),
        grid=(Mp // tm,),
        in_specs=[pl.BlockSpec((tm * K, cin), lambda i: (i, 0))] + _weight_specs(params),
        out_specs=pl.BlockSpec((tm, cout), lambda i: (i, 0)),
        compiler_params=pltpu.CompilerParams(
            dimension_semantics=("parallel",), vmem_limit_bytes=VMEM_LIMIT),
    )(edge2d, *_weight_args(params))


# ---------------------------------------------------------------------------
# Kernel 2: GlobalSAModule MLP + segmented max pool + regression head (fused)
# ---------------------------------------------------------------------------
def _global_pool_head_kernel(tb_ref, f_ref,
                             g1w, g1b, g2w, g2b, g3w, g3b,
                             h1w, h1b, h2w, h2b, h3w, h3b,
                             o_ref, acc_ref):
    i = pl.program_id(0)

    @pl.when(i == 0)
    def _():
        acc_ref[...] = jnp.full(acc_ref.shape, NEG_BIG, dtype=acc_ref.dtype)

    # Each tile belongs to exactly one batch (per-batch padded layout on host).
    h = _mlp3(f_ref[...], g1w, g1b, g2w, g2b, g3w, g3b)     # [tn, 2048] f32, VMEM only
    m = jnp.max(h, axis=0, keepdims=True)                   # [1, 2048] tile max
    b = tb_ref[i]                                           # batch id of this tile (SMEM)
    rows = jax.lax.broadcasted_iota(jnp.int32, (acc_ref.shape[0], 1), 0)
    acc_ref[...] = jnp.where(rows == b, jnp.maximum(acc_ref[...], m), acc_ref[...])

    @pl.when(i == pl.num_programs(0) - 1)
    def _():
        # Regression head on the pooled features (padding rows are discarded).
        y = _mlp3(acc_ref[...], h1w, h1b, h2w, h2b, h3w, h3b)   # [B_pad, 1]
        o_ref[...] = y[: o_ref.shape[0], :]


def global_pool_head_pallas(featp, tile_batch, sa3_params, head_params, B, tn):
    Np, cin = featp.shape
    cout = sa3_params[-1][0].shape[1]
    B_pad = _round_up(B, 8)
    num_tiles = Np // tn
    return pl.pallas_call(
        _global_pool_head_kernel,
        out_shape=jax.ShapeDtypeStruct((B, 1), jnp.float32),
        grid_spec=pltpu.PrefetchScalarGridSpec(
            num_scalar_prefetch=1,
            grid=(num_tiles,),
            in_specs=[pl.BlockSpec((tn, cin), lambda i, tb: (i, 0))]
                     + _weight_specs(sa3_params) + _weight_specs(head_params),
            out_specs=pl.BlockSpec((B, 1), lambda i, tb: (0, 0)),
            scratch_shapes=[pltpu.VMEM((B_pad, cout), jnp.float32)]),
        compiler_params=pltpu.CompilerParams(
            dimension_semantics=("arbitrary",), vmem_limit_bytes=VMEM_LIMIT),
    )(tile_batch, featp, *_weight_args(sa3_params), *_weight_args(head_params))


# ---------------------------------------------------------------------------
# Parameters (deterministic synthetic init, BN folded, bf16 weights)
# ---------------------------------------------------------------------------
def init_mlp(key, dims):
    params = []
    n = len(dims) - 1
    for i in range(n):
        key, kw, kb = jax.random.split(key, 3)
        w = jax.random.normal(kw, (dims[i], dims[i + 1]), jnp.float32) / math.sqrt(dims[i])
        b = jax.random.normal(kb, (dims[i + 1],), jnp.float32) * 0.01
        if i < n - 1:
            # Fold eval-mode BatchNorm1d (default running stats mean=0, var=1) into
            # the affine: y = BN_SCALE * (xW + b)  ==  x(W*s) + (b*s).
            w = w * BN_SCALE
            b = b * BN_SCALE
        params.append((w.astype(jnp.bfloat16), b))           # bf16 weights, f32 biases
    return key, params


def init_params(key, num_features):
    key, sa1 = init_mlp(key, [3 + num_features, 64, 64, 128])
    key, sa2 = init_mlp(key, [128 + 3, 128, 128, 256])
    key, sa3 = init_mlp(key, [256 + 3, 256, 512, 2048])
    key, head = init_mlp(key, [2048, 256, 256, 1])
    return {"sa1": sa1, "sa2": sa2, "sa3": sa3, "head": head}


# ---------------------------------------------------------------------------
# Host-side graph construction (data-dependent / sequential glue)
# ---------------------------------------------------------------------------
def fps_np(pos, batch, ratio):
    # TODO(synk): PyG fps uses a random start point per batch; here we start
    # deterministically at each batch's first point.
    idx_out = []
    for b in np.unique(batch):
        pts_idx = np.where(batch == b)[0]
        pts = pos[pts_idx]
        n = pts_idx.shape[0]
        m = max(1, int(math.ceil(ratio * n)))
        sel = [0]
        best = np.full(n, np.inf)
        for _ in range(m - 1):
            d = np.sum((pts - pts[sel[-1]]) ** 2, axis=1)
            best = np.minimum(best, d)
            sel.append(int(np.argmax(best)))
        idx_out.append(pts_idx[np.asarray(sel)])
    return np.concatenate(idx_out).astype(np.int64)


def radius_np(pos, batch, center_idx, r, max_k=64):
    # TODO(synk): torch_cluster.radius returns an implementation-defined subset when
    # more than max_num_neighbors points are in range; we take the first max_k by index.
    # Empty neighbor slots are padded with the center's own index (a true self-edge at
    # distance 0 always exists), so max over duplicates is a no-op and no mask is needed.
    M = center_idx.shape[0]
    nbr = np.zeros((M, max_k), dtype=np.int64)
    for i, ci in enumerate(center_idx):
        same = np.where(batch == batch[ci])[0]
        d2 = np.sum((pos[same] - pos[ci]) ** 2, axis=1)
        cand = same[d2 <= r * r][:max_k]
        nbr[i, :] = ci                       # self-edge padding
        nbr[i, : cand.shape[0]] = cand
    return nbr


# ---------------------------------------------------------------------------
# Modules
# ---------------------------------------------------------------------------
def sa_module(mlp_params, ratio, r, x, pos_np, batch_np, *, max_k=64, tm=32):
    """SAModule: fps -> radius graph -> fused PointNetConv(MLP + 'max' aggregation)."""
    idx = fps_np(pos_np, batch_np, ratio)
    nbr = radius_np(pos_np, batch_np, idx, r, max_k)
    M, K = nbr.shape
    tm = min(tm, _round_up(M, 8))
    Mp = _round_up(M, tm)
    # Fold the Mp padding into the index gather (no jnp.pad of the full edge tensor).
    nbr_p = np.concatenate([nbr, np.zeros((Mp - M, K), nbr.dtype)], axis=0)
    idx_p = np.concatenate([idx, np.zeros((Mp - M,), idx.dtype)], axis=0)
    rel = jnp.asarray(pos_np[nbr_p] - pos_np[idx_p][:, None, :], jnp.float32)  # [Mp,K,3]
    x_j = jnp.take(x, jnp.asarray(nbr_p, jnp.int32), axis=0)                   # [Mp,K,F]
    cin = x_j.shape[-1] + 3
    # TODO(synk): the [Mp*K, cin] edge tensor is still materialized in HBM once; an
    # in-kernel neighbor gather (dynamic row gather inside the kernel) has no clean,
    # portable Pallas-TPU lowering today, so we only halve its traffic via bf16.
    edge = jnp.concatenate([x_j, rel], axis=-1).astype(jnp.bfloat16).reshape(Mp * K, cin)
    out = sa_conv_pallas(edge, mlp_params, Mp, K, tm)                          # [Mp, C]
    return out[:M], pos_np[idx], batch_np[idx]


def global_sa_head(sa3_params, head_params, x, pos_np, batch_np, B, *, tn=512):
    """GlobalSAModule (MLP(cat[x,pos]) + per-batch global max) fused with the head MLP."""
    feat = jnp.concatenate([x, jnp.asarray(pos_np, jnp.float32)], axis=1)
    counts = np.array([(batch_np == b).sum() for b in range(B)])
    assert counts.min() > 0, "every batch must contain at least one node"
    tn = int(min(tn, _round_up(int(counts.max()), 8)))
    # Per-batch padded layout: each tn-row tile belongs to exactly one batch; padding
    # rows duplicate an existing row of that batch so the segment max is unchanged.
    order, tile_batch = [], []
    for b in range(B):
        rows = np.where(batch_np == b)[0]
        nbp = _round_up(rows.shape[0], tn)
        order.append(np.concatenate([rows, np.full(nbp - rows.shape[0], rows[0], rows.dtype)]))
        tile_batch.append(np.full(nbp // tn, b, np.int32))
    order = np.concatenate(order)
    tile_batch = jnp.asarray(np.concatenate(tile_batch), jnp.int32)
    featp = jnp.take(feat, jnp.asarray(order, jnp.int32), axis=0).astype(jnp.bfloat16)
    return global_pool_head_pallas(featp, tile_batch, sa3_params, head_params, B, tn)


def net_forward(params, x, pos_np, batch_np):
    x1, pos1, batch1 = sa_module(params["sa1"], 0.2, 2.0, x, pos_np, batch_np)
    x2, pos2, batch2 = sa_module(params["sa2"], 0.25, 8.0, x1, pos1, batch1)
    B = int(batch_np.max()) + 1
    return global_sa_head(params["sa3"], params["head"], x2, pos2, batch2, B)   # [B, 1]


# ---------------------------------------------------------------------------
if __name__ == "__main__":
    key = jax.random.PRNGKey(0)
    B, N_per, num_features = 2, 32, 4
    N = B * N_per

    kparams, kx, kp = jax.random.split(key, 3)
    params = init_params(kparams, num_features)

    x = jax.random.normal(kx, (N, num_features), jnp.float32)
    pos = jax.random.uniform(kp, (N, 3), jnp.float32) * 10.0
    batch_np = np.repeat(np.arange(B), N_per)
    pos_np = np.asarray(pos)

    out = net_forward(params, x, pos_np, batch_np)
    out = jax.block_until_ready(out)
    assert out.shape == (B, 1) and out.dtype == jnp.float32
    print("KERNEL_OK")
</pallas_src>

<mosaic_0001>
module attributes {stable_mosaic.version = 11 : i64} {
  func.func @_sa_conv_kernel(%arg0: i32, %arg1: memref<1024x7xbf16, #tpu.memory_space<vmem>>, %arg2: memref<7x64xbf16, #tpu.memory_space<vmem>>, %arg3: memref<1x64xf32, #tpu.memory_space<vmem>>, %arg4: memref<64x64xbf16, #tpu.memory_space<vmem>>, %arg5: memref<1x64xf32, #tpu.memory_space<vmem>>, %arg6: memref<64x128xbf16, #tpu.memory_space<vmem>>, %arg7: memref<1x128xf32, #tpu.memory_space<vmem>>, %arg8: memref<16x128xf32, #tpu.memory_space<vmem>>) attributes {dimension_semantics = [#tpu.dimension_semantics<parallel>], iteration_bounds = array<i64: 1>, scalar_prefetch = 0 : i64, scratch_operands = 0 : i64, tpu.core_type = #tpu.core_type<tc>, window_params = [{transform_indices = @transform_0, window_bounds = array<i64: 1024, 7>}, {pipeline_mode = #tpu.pipeline_mode<synchronous>, transform_indices = @transform_1, window_bounds = array<i64: 7, 64>}, {pipeline_mode = #tpu.pipeline_mode<synchronous>, transform_indices = @transform_2, window_bounds = array<i64: 1, 64>}, {pipeline_mode = #tpu.pipeline_mode<synchronous>, transform_indices = @transform_3, window_bounds = array<i64: 64, 64>}, {pipeline_mode = #tpu.pipeline_mode<synchronous>, transform_indices = @transform_4, window_bounds = array<i64: 1, 64>}, {pipeline_mode = #tpu.pipeline_mode<synchronous>, transform_indices = @transform_5, window_bounds = array<i64: 64, 128>}, {pipeline_mode = #tpu.pipeline_mode<synchronous>, transform_indices = @transform_6, window_bounds = array<i64: 1, 128>}, {transform_indices = @transform_7, window_bounds = array<i64: 16, 128>}]} {
    %c0 = arith.constant 0 : index
    %c0_0 = arith.constant 0 : index
    %0 = vector.load %arg1[%c0, %c0_0] : memref<1024x7xbf16, #tpu.memory_space<vmem>>, vector<1024x7xbf16>
    %c0_1 = arith.constant 0 : index
    %c0_2 = arith.constant 0 : index
    %1 = vector.load %arg2[%c0_1, %c0_2] : memref<7x64xbf16, #tpu.memory_space<vmem>>, vector<7x64xbf16>
    %cst = arith.constant dense<0.000000e+00> : vector<1024x64xf32>
    %2 = tpu.matmul %0, %1, %cst {dimension_numbers = #tpu.dot_dimension_numbers<[1], [0], [0], [1], [0, 0, 1, 1], [], []>} : vector<1024x7xbf16>, vector<7x64xbf16>, vector<1024x64xf32> -> vector<1024x64xf32>
    %c0_3 = arith.constant 0 : index
    %c0_4 = arith.constant 0 : index
    %3 = vector.load %arg3[%c0_3, %c0_4] : memref<1x64xf32, #tpu.memory_space<vmem>>, vector<1x64xf32>
    %4 = vector.broadcast %3 : vector<1x64xf32> to vector<1024x64xf32>
    %5 = arith.addf %2, %4 : vector<1024x64xf32>
    %cst_5 = arith.constant 0.000000e+00 : f32
    %6 = vector.broadcast %cst_5 : f32 to vector<1024x64xf32>
    %7 = arith.cmpf oge, %5, %6 : vector<1024x64xf32>
    %cst_6 = arith.constant 0.00999999977 : f32
    %8 = vector.broadcast %cst_6 : f32 to vector<1024x64xf32>
    %9 = arith.mulf %8, %5 : vector<1024x64xf32>
    %10 = arith.select %7, %5, %9 : vector<1024x64xi1>, vector<1024x64xf32>
    %11 = arith.truncf %10 : vector<1024x64xf32> to vector<1024x64xbf16>
    %c0_7 = arith.constant 0 : index
    %c0_8 = arith.constant 0 : index
    %12 = vector.load %arg4[%c0_7, %c0_8] : memref<64x64xbf16, #tpu.memory_space<vmem>>, vector<64x64xbf16>
    %cst_9 = arith.constant dense<0.000000e+00> : vector<1024x64xf32>
    %13 = tpu.matmul %11, %12, %cst_9 {dimension_numbers = #tpu.dot_dimension_numbers<[1], [0], [0], [1], [0, 0, 1, 1], [], []>} : vector<1024x64xbf16>, vector<64x64xbf16>, vector<1024x64xf32> -> vector<1024x64xf32>
    %c0_10 = arith.constant 0 : index
    %c0_11 = arith.constant 0 : index
    %14 = vector.load %arg5[%c0_10, %c0_11] : memref<1x64xf32, #tpu.memory_space<vmem>>, vector<1x64xf32>
    %15 = vector.broadcast %14 : vector<1x64xf32> to vector<1024x64xf32>
    %16 = arith.addf %13, %15 : vector<1024x64xf32>
    %cst_12 = arith.constant 0.000000e+00 : f32
    %17 = vector.broadcast %cst_12 : f32 to vector<1024x64xf32>
    %18 = arith.cmpf oge, %16, %17 : vector<1024x64xf32>
    %cst_13 = arith.constant 0.00999999977 : f32
    %19 = vector.broadcast %cst_13 : f32 to vector<1024x64xf32>
    %20 = arith.mulf %19, %16 : vector<1024x64xf32>
    %21 = arith.select %18, %16, %20 : vector<1024x64xi1>, vector<1024x64xf32>
    %22 = arith.truncf %21 : vector<1024x64xf32> to vector<1024x64xbf16>
    %c0_14 = arith.constant 0 : index
    %c0_15 = arith.constant 0 : index
    %23 = vector.load %arg6[%c0_14, %c0_15] : memref<64x128xbf16, #tpu.memory_space<vmem>>, vector<64x128xbf16>
    %cst_16 = arith.constant dense<0.000000e+00> : vector<1024x128xf32>
    %24 = tpu.matmul %22, %23, %cst_16 {dimension_numbers = #tpu.dot_dimension_numbers<[1], [0], [0], [1], [0, 0, 1, 1], [], []>} : vector<1024x64xbf16>, vector<64x128xbf16>, vector<1024x128xf32> -> vector<1024x128xf32>
    %c0_17 = arith.constant 0 : index
    %c0_18 = arith.constant 0 : index
    %25 = vector.load %arg7[%c0_17, %c0_18] : memref<1x128xf32, #tpu.memory_space<vmem>>, vector<1x128xf32>
    %26 = vector.broadcast %25 : vector<1x128xf32> to vector<1024x128xf32>
    %27 = arith.addf %24, %26 : vector<1024x128xf32>
    %28 = vector.shape_cast %27 : vector<1024x128xf32> to vector<16x64x128xf32>
    %cst_19 = arith.constant dense<0xFF800000> : vector<16x128xf32>
    %29 = vector.multi_reduction <maximumf>, %28, %cst_19 [1] : vector<16x64x128xf32> to vector<16x128xf32>
    %c0_20 = arith.constant 0 : index
    %c0_21 = arith.constant 0 : index
    %30 = vector.load %arg8[%c0_20, %c0_21] : memref<16x128xf32, #tpu.memory_space<vmem>>, vector<16x128xf32>
    tpu.vector_store %arg8[%c0_20, %c0_21], %29 {strides = array<i32>} : memref<16x128xf32, #tpu.memory_space<vmem>>, vector<16x128xf32>,
    return
  }
  func.func @transform_0(%arg0: i32) -> (i32, i32) {
    %c0_i32 = arith.constant 0 : i32
    %c0_i32_0 = arith.constant 0 : i32
    return %arg0, %c0_i32 : i32, i32
  }
  func.func @transform_1(%arg0: i32) -> (i32, i32) {
    %c0_i32 = arith.constant 0 : i32
    %c0_i32_0 = arith.constant 0 : i32
    %c0_i32_1 = arith.constant 0 : i32
    return %c0_i32, %c0_i32_0 : i32, i32
  }
  func.func @transform_2(%arg0: i32) -> (i32, i32) {
    %c0_i32 = arith.constant 0 : i32
    %c0_i32_0 = arith.constant 0 : i32
    %c0_i32_1 = arith.constant 0 : i32
    return %c0_i32, %c0_i32_0 : i32, i32
  }
  func.func @transform_3(%arg0: i32) -> (i32, i32) {
    %c0_i32 = arith.constant 0 : i32
    %c0_i32_0 = arith.constant 0 : i32
    %c0_i32_1 = arith.constant 0 : i32
    return %c0_i32, %c0_i32_0 : i32, i32
  }
  func.func @transform_4(%arg0: i32) -> (i32, i32) {
    %c0_i32 = arith.constant 0 : i32
    %c0_i32_0 = arith.constant 0 : i32
    %c0_i32_1 = arith.constant 0 : i32
    return %c0_i32, %c0_i32_0 : i32, i32
  }
  func.func @transform_5(%arg0: i32) -> (i32, i32) {
    %c0_i32 = arith.constant 0 : i32
    %c0_i32_0 = arith.constant 0 : i32
    %c0_i32_1 = arith.constant 0 : i32
    return %c0_i32, %c0_i32_0 : i32, i32
  }
  func.func @transform_6(%arg0: i32) -> (i32, i32) {
    %c0_i32 = arith.constant 0 : i32
    %c0_i32_0 = arith.constant 0 : i32
    %c0_i32_1 = arith.constant 0 : i32
    return %c0_i32, %c0_i32_0 : i32, i32
  }
  func.func @transform_7(%arg0: i32) -> (i32, i32) {
    %c0_i32 = arith.constant 0 : i32
    %c0_i32_0 = arith.constant 0 : i32
    return %arg0, %c0_i32 : i32, i32
  }
}

</mosaic_0001>

<llo_original>
// kernel: tpu_custom_call.1
$region0: #{tpu_custom_call.1}
  #allocation0 [shape = 'u32[]', space=smem, size = 0x4, offset = 0x4, fixed_abs, tag = 'smem constant byte address 0x4 - core index']
  #allocation1 [shape = 'u32[144,128]{1,0:T(1,128)}', space=vmem, size = 0x12000, scoped, tag = 'internal scratch']
  %s0 = inlined_call_operand.vmem [shape: bf16[1024,7], index: 0, kind: input, shape index: {}]
  %s1 = inlined_call_operand.vmem [shape: bf16[7,64], index: 1, kind: input, shape index: {}]
  %s2 = inlined_call_operand.vmem [shape: f32[1,64], index: 2, kind: input, shape index: {}]
  %s3 = inlined_call_operand.vmem [shape: bf16[64,64], index: 3, kind: input, shape index: {}]
  %s4 = inlined_call_operand.vmem [shape: f32[1,64], index: 4, kind: input, shape index: {}]
  %s5 = inlined_call_operand.vmem [shape: bf16[64,128], index: 5, kind: input, shape index: {}]
  %s6 = inlined_call_operand.vmem [shape: f32[1,128], index: 6, kind: input, shape index: {}]
  %s7 = inlined_call_operand.hbm [shape: f32[16,128], index: 7, kind: output, shape index: {}]
  %s8 = sld [smem:[#allocation0]]
  $region38: #{tpu_custom_call.1} parent=0
    _
  %s10 = ssub.s32 1, %s8
  %s11 = scalar_select 0, %s10, %s8
  $region1: #{tpu_custom_call.1} parent=0
    #allocation2 [shape = 'u8[8192]{0}', space=vmem, size = 0x2000, scoped, tag = 'output window, operand 0, single buffered']
    #allocation3 [shape = 's32[1]{0}', space=sflag, size = 0x4, scoped, tag = 'scoped memory for tpu_custom_call.1']
    %12 = vsyncpa [#allocation3], 0
    // Predicated region
    $region2: #{tpu_custom_call.1} parent=1 // pred_check
      _
    $region3: #{tpu_custom_call.1} parent=1 // pred_check_branch
      %14 = sbr.rel (0) target = $region5
    $region4: #{tpu_custom_call.1} parent=1 // pred_region
      _
    $region5: #{tpu_custom_call.1} parent=1 // pred_fallthru
      _
    // Predicated region
    $region6: #{tpu_custom_call.1} parent=1 // pred_check
      _
    $region7: #{tpu_custom_call.1} parent=1 // pred_check_branch
      %16 = sbr.rel (0) target = $region9
    $region8: #{tpu_custom_call.1} parent=1 // pred_region
      _
    $region9: #{tpu_custom_call.1} parent=1 // pred_fallthru
      _
    // Predicated region
    $region10: #{tpu_custom_call.1} parent=1 // pred_check
      _
    $region11: #{tpu_custom_call.1} parent=1 // pred_check_branch
      %18 = sbr.rel (0) target = $region13
    $region12: #{tpu_custom_call.1} parent=1 // pred_region
      _
    $region13: #{tpu_custom_call.1} parent=1 // pred_fallthru
      _
    // Predicated region
    $region14: #{tpu_custom_call.1} parent=1 // pred_check
      _
    $region15: #{tpu_custom_call.1} parent=1 // pred_check_branch
      %20 = sbr.rel (0) target = $region17
    $region16: #{tpu_custom_call.1} parent=1 // pred_region
      _
    $region17: #{tpu_custom_call.1} parent=1 // pred_fallthru
      _
    // Predicated region
    $region18: #{tpu_custom_call.1} parent=1 // pred_check
      _
    $region19: #{tpu_custom_call.1} parent=1 // pred_check_branch
      %22 = sbr.rel (0) target = $region21
    $region20: #{tpu_custom_call.1} parent=1 // pred_region
      _
    $region21: #{tpu_custom_call.1} parent=1 // pred_fallthru
      _
    // Predicated region
    $region22: #{tpu_custom_call.1} parent=1 // pred_check
      _
    $region23: #{tpu_custom_call.1} parent=1 // pred_check_branch
      %24 = sbr.rel (0) target = $region25
    $region24: #{tpu_custom_call.1} parent=1 // pred_region
      _
    $region25: #{tpu_custom_call.1} parent=1 // pred_fallthru
      _
    // Predicated region
    $region26: #{tpu_custom_call.1} parent=1 // pred_check
      _
    $region27: #{tpu_custom_call.1} parent=1 // pred_check_branch
      %26 = sbr.rel (0) target = $region29
    $region28: #{tpu_custom_call.1} parent=1 // pred_region
      _
    $region29: #{tpu_custom_call.1} parent=1 // pred_fallthru
      _
    %v28 = vld [vmem:[%s0] sm:$0xf]
    %v29 = vld [vmem:[%s0 + $0x4] sm:$0xf]
    %v30 = vld [vmem:[%s0 + $0x8] sm:$0xf]
    %v31 = vld [vmem:[%s0 + $0xc] sm:$0xf]
    %v32 = vld [vmem:[%s0 + $0x10] sm:$0xf]
    %v33 = vld [vmem:[%s0 + $0x14] sm:$0xf]
    %v34 = vld [vmem:[%s0 + $0x18] sm:$0xf]
    %v35 = vld [vmem:[%s0 + $0x1c] sm:$0xf]
    %v36 = vld [vmem:[%s0 + $0x20] sm:$0xf]
    %v37 = vld [vmem:[%s0 + $0x24] sm:$0xf]
    %v38 = vld [vmem:[%s0 + $0x28] sm:$0xf]
    %v39 = vld [vmem:[%s0 + $0x2c] sm:$0xf]
    %v40 = vld [vmem:[%s0 + $0x30] sm:$0xf]
    %v41 = vld [vmem:[%s0 + $0x34] sm:$0xf]
    %v42 = vld [vmem:[%s0 + $0x38] sm:$0xf]
    %v43 = vld [vmem:[%s0 + $0x3c] sm:$0xf]
    %v44 = vld [vmem:[%s0 + $0x40] sm:$0xf]
    %v45 = vld [vmem:[%s0 + $0x44] sm:$0xf]
    %v46 = vld [vmem:[%s0 + $0x48] sm:$0xf]
    %v47 = vld [vmem:[%s0 + $0x4c] sm:$0xf]
    %v48 = vld [vmem:[%s0 + $0x50] sm:$0xf]
    %v49 = vld [vmem:[%s0 + $0x54] sm:$0xf]
    %v50 = vld [vmem:[%s0 + $0x58] sm:$0xf]
    %v51 = vld [vmem:[%s0 + $0x5c] sm:$0xf]
    %v52 = vld [vmem:[%s0 + $0x60] sm:$0xf]
    %v53 = vld [vmem:[%s0 + $0x64] sm:$0xf]
    %v54 = vld [vmem:[%s0 + $0x68] sm:$0xf]
    %v55 = vld [vmem:[%s0 + $0x6c] sm:$0xf]
    %v56 = vld [vmem:[%s0 + $0x70] sm:$0xf]
    %v57 = vld [vmem:[%s0 + $0x74] sm:$0xf]
    %v58 = vld [vmem:[%s0 + $0x78] sm:$0xf]
    %v59 = vld [vmem:[%s0 + $0x7c] sm:$0xf]
    %v60 = vld [vmem:[%s0 + $0x80] sm:$0xf]
    %v61 = vld [vmem:[%s0 + $0x84] sm:$0xf]
    %v62 = vld [vmem:[%s0 + $0x88] sm:$0xf]
    %v63 = vld [vmem:[%s0 + $0x8c] sm:$0xf]
    %v64 = vld [vmem:[%s0 + $0x90] sm:$0xf]
    %v65 = vld [vmem:[%s0 + $0x94] sm:$0xf]
    %v66 = vld [vmem:[%s0 + $0x98] sm:$0xf]
    %v67 = vld [vmem:[%s0 + $0x9c] sm:$0xf]
    %v68 = vld [vmem:[%s0 + $0xa0] sm:$0xf]
    %v69 = vld [vmem:[%s0 + $0xa4] sm:$0xf]
    %v70 = vld [vmem:[%s0 + $0xa8] sm:$0xf]
    %v71 = vld [vmem:[%s0 + $0xac] sm:$0xf]
    %v72 = vld [vmem:[%s0 + $0xb0] sm:$0xf]
    %v73 = vld [vmem:[%s0 + $0xb4] sm:$0xf]
    %v74 = vld [vmem:[%s0 + $0xb8] sm:$0xf]
    %v75 = vld [vmem:[%s0 + $0xbc] sm:$0xf]
    %v76 = vld [vmem:[%s0 + $0xc0] sm:$0xf]
    %v77 = vld [vmem:[%s0 + $0xc4] sm:$0xf]
    %v78 = vld [vmem:[%s0 + $0xc8] sm:$0xf]
    %v79 = vld [vmem:[%s0 + $0xcc] sm:$0xf]
    %v80 = vld [vmem:[%s0 + $0xd0] sm:$0xf]
    %v81 = vld [vmem:[%s0 + $0xd4] sm:$0xf]
    %v82 = vld [vmem:[%s0 + $0xd8] sm:$0xf]
    %v83 = vld [vmem:[%s0 + $0xdc] sm:$0xf]
    %v84 = vld [vmem:[%s0 + $0xe0] sm:$0xf]
    %v85 = vld [vmem:[%s0 + $0xe4] sm:$0xf]
    %v86 = vld [vmem:[%s0 + $0xe8] sm:$0xf]
    %v87 = vld [vmem:[%s0 + $0xec] sm:$0xf]
    %v88 = vld [vmem:[%s0 + $0xf0] sm:$0xf]
    %v89 = vld [vmem:[%s0 + $0xf4] sm:$0xf]
    %v90 = vld [vmem:[%s0 + $0xf8] sm:$0xf]
    %v91 = vld [vmem:[%s0 + $0xfc] sm:$0xf]
    %v92 = vld [vmem:[%s0 + $0x100] sm:$0xf]
    %v93 = vld [vmem:[%s0 + $0x104] sm:$0xf]
    %v94 = vld [vmem:[%s0 + $0x108] sm:$0xf]
    %v95 = vld [vmem:[%s0 + $0x10c] sm:$0xf]
    %v96 = vld [vmem:[%s0 + $0x110] sm:$0xf]
    %v97 = vld [vmem:[%s0 + $0x114] sm:$0xf]
    %v98 = vld [vmem:[%s0 + $0x118] sm:$0xf]
    %v99 = vld [vmem:[%s0 + $0x11c] sm:$0xf]
    %v100 = vld [vmem:[%s0 + $0x120] sm:$0xf]
    %v101 = vld [vmem:[%s0 + $0x124] sm:$0xf]
    %v102 = vld [vmem:[%s0 + $0x128] sm:$0xf]
    %v103 = vld [vmem:[%s0 + $0x12c] sm:$0xf]
    %v104 = vld [vmem:[%s0 + $0x130] sm:$0xf]
    %v105 = vld [vmem:[%s0 + $0x134] sm:$0xf]
    %v106 = vld [vmem:[%s0 + $0x138] sm:$0xf]
    %v107 = vld [vmem:[%s0 + $0x13c] sm:$0xf]
    %v108 = vld [vmem:[%s0 + $0x140] sm:$0xf]
    %v109 = vld [vmem:[%s0 + $0x144] sm:$0xf]
    %v110 = vld [vmem:[%s0 + $0x148] sm:$0xf]
    %v111 = vld [vmem:[%s0 + $0x14c] sm:$0xf]
    %v112 = vld [vmem:[%s0 + $0x150] sm:$0xf]
    %v113 = vld [vmem:[%s0 + $0x154] sm:$0xf]
    %v114 = vld [vmem:[%s0 + $0x158] sm:$0xf]
    %v115 = vld [vmem:[%s0 + $0x15c] sm:$0xf]
    %v116 = vld [vmem:[%s0 + $0x160] sm:$0xf]
    %v117 = vld [vmem:[%s0 + $0x164] sm:$0xf]
    %v118 = vld [vmem:[%s0 + $0x168] sm:$0xf]
    %v119 = vld [vmem:[%s0 + $0x16c] sm:$0xf]
    %v120 = vld [vmem:[%s0 + $0x170] sm:$0xf]
    %v121 = vld [vmem:[%s0 + $0x174] sm:$0xf]
    %v122 = vld [vmem:[%s0 + $0x178] sm:$0xf]
    %v123 = vld [vmem:[%s0 + $0x17c] sm:$0xf]
    %v124 = vld [vmem:[%s0 + $0x180] sm:$0xf]
    %v125 = vld [vmem:[%s0 + $0x184] sm:$0xf]
    %v126 = vld [vmem:[%s0 + $0x188] sm:$0xf]
    %v127 = vld [vmem:[%s0 + $0x18c] sm:$0xf]
    %v128 = vld [vmem:[%s0 + $0x190] sm:$0xf]
    %v129 = vld [vmem:[%s0 + $0x194] sm:$0xf]
    %v130 = vld [vmem:[%s0 + $0x198] sm:$0xf]
    %v131 = vld [vmem:[%s0 + $0x19c] sm:$0xf]
    %v132 = vld [vmem:[%s0 + $0x1a0] sm:$0xf]
    %v133 = vld [vmem:[%s0 + $0x1a4] sm:$0xf]
    %v134 = vld [vmem:[%s0 + $0x1a8] sm:$0xf]
    %v135 = vld [vmem:[%s0 + $0x1ac] sm:$0xf]
    %v136 = vld [vmem:[%s0 + $0x1b0] sm:$0xf]
    %v137 = vld [vmem:[%s0 + $0x1b4] sm:$0xf]
    %v138 = vld [vmem:[%s0 + $0x1b8] sm:$0xf]
    %v139 = vld [vmem:[%s0 + $0x1bc] sm:$0xf]
    %v140 = vld [vmem:[%s0 + $0x1c0] sm:$0xf]
    %v141 = vld [vmem:[%s0 + $0x1c4] sm:$0xf]
    %v142 = vld [vmem:[%s0 + $0x1c8] sm:$0xf]
    %v143 = vld [vmem:[%s0 + $0x1cc] sm:$0xf]
    %v144 = vld [vmem:[%s0 + $0x1d0] sm:$0xf]
    %v145 = vld [vmem:[%s0 + $0x1d4] sm:$0xf]
    %v146 = vld [vmem:[%s0 + $0x1d8] sm:$0xf]
    %v147 = vld [vmem:[%s0 + $0x1dc] sm:$0xf]
    %v148 = vld [vmem:[%s0 + $0x1e0] sm:$0xf]
    %v149 = vld [vmem:[%s0 + $0x1e4] sm:$0xf]
    %v150 = vld [vmem:[%s0 + $0x1e8] sm:$0xf]
    %v151 = vld [vmem:[%s0 + $0x1ec] sm:$0xf]
    %v152 = vld [vmem:[%s0 + $0x1f0] sm:$0xf]
    %v153 = vld [vmem:[%s0 + $0x1f4] sm:$0xf]
    %v154 = vld [vmem:[%s0 + $0x1f8] sm:$0xf]
    %v155 = vld [vmem:[%s0 + $0x1fc] sm:$0xf]
    %v156 = vld [vmem:[%s1] sm:$0xf]
    %v157 = vld [vmem:[%s2] sm:$0x1]
    %v159 = vlaneseq
    %v160 = vshrl.u32 %v159, 7
    %v161 = vsub.s32 0, %v160
    %v162 = vrot.slane %v157, %v161
    %v292 = vunpack.c.l.b16 %v28
    %v293 = vunpack.c.l.b16 %v29
    %v294 = vunpack.c.l.b16 %v30
    %v295 = vunpack.c.l.b16 %v31
    %v296 = vunpack.c.l.b16 %v32
    %v297 = vunpack.c.l.b16 %v33
    %v298 = vunpack.c.l.b16 %v34
    %v299 = vunpack.c.l.b16 %v35
    %v300 = vunpack.c.l.b16 %v36
    %v301 = vunpack.c.l.b16 %v37
    %v302 = vunpack.c.l.b16 %v38
    %v303 = vunpack.c.l.b16 %v39
    %v304 = vunpack.c.l.b16 %v40
    %v305 = vunpack.c.l.b16 %v41
    %v306 = vunpack.c.l.b16 %v42
    %v307 = vunpack.c.l.b16 %v43
    %v308 = vunpack.c.l.b16 %v44
    %v309 = vunpack.c.l.b16 %v45
    %v310 = vunpack.c.l.b16 %v46
    %v311 = vunpack.c.l.b16 %v47
    %v312 = vunpack.c.l.b16 %v48
    %v313 = vunpack.c.l.b16 %v49
    %v314 = vunpack.c.l.b16 %v50
    %v315 = vunpack.c.l.b16 %v51
    %v316 = vunpack.c.l.b16 %v52
    %v317 = vunpack.c.l.b16 %v53
    %v318 = vunpack.c.l.b16 %v54
    %v319 = vunpack.c.l.b16 %v55
    %v320 = vunpack.c.l.b16 %v56
    %v321 = vunpack.c.l.b16 %v57
    %v322 = vunpack.c.l.b16 %v58
    %v323 = vunpack.c.l.b16 %v59
    %v324 = vunpack.c.l.b16 %v60
    %v325 = vunpack.c.l.b16 %v61
    %v326 = vunpack.c.l.b16 %v62
    %v327 = vunpack.c.l.b16 %v63
    %v328 = vunpack.c.l.b16 %v64
    %v329 = vunpack.c.l.b16 %v65
    %v330 = vunpack.c.l.b16 %v66
    %v331 = vunpack.c.l.b16 %v67
    %v332 = vunpack.c.l.b16 %v68
    %v333 = vunpack.c.l.b16 %v69
    %v334 = vunpack.c.l.b16 %v70
    %v335 = vunpack.c.l.b16 %v71
    %v336 = vunpack.c.l.b16 %v72
    %v337 = vunpack.c.l.b16 %v73
    %v338 = vunpack.c.l.b16 %v74
    %v339 = vunpack.c.l.b16 %v75
    %v340 = vunpack.c.l.b16 %v76
    %v341 = vunpack.c.l.b16 %v77
    %v342 = vunpack.c.l.b16 %v78
    %v343 = vunpack.c.l.b16 %v79
    %v344 = vunpack.c.l.b16 %v80
    %v345 = vunpack.c.l.b16 %v81
    %v346 = vunpack.c.l.b16 %v82
    %v347 = vunpack.c.l.b16 %v83
    %v348 = vunpack.c.l.b16 %v84
    %v349 = vunpack.c.l.b16 %v85
    %v350 = vunpack.c.l.b16 %v86
    %v351 = vunpack.c.l.b16 %v87
    %v352 = vunpack.c.l.b16 %v88
    %v353 = vunpack.c.l.b16 %v89
    %v354 = vunpack.c.l.b16 %v90
    %v355 = vunpack.c.l.b16 %v91
    %v356 = vunpack.c.l.b16 %v92
    %v357 = vunpack.c.l.b16 %v93
    %v358 = vunpack.c.l.b16 %v94
    %v359 = vunpack.c.l.b16 %v95
    %v360 = vunpack.c.l.b16 %v96
    %v361 = vunpack.c.l.b16 %v97
    %v362 = vunpack.c.l.b16 %v98
    %v363 = vunpack.c.l.b16 %v99
    %v364 = vunpack.c.l.b16 %v100
    %v365 = vunpack.c.l.b16 %v101
    %v366 = vunpack.c.l.b16 %v102
    %v367 = vunpack.c.l.b16 %v103
    %v368 = vunpack.c.l.b16 %v104
    %v369 = vunpack.c.l.b16 %v105
    %v370 = vunpack.c.l.b16 %v106
    %v371 = vunpack.c.l.b16 %v107
    %v372 = vunpack.c.l.b16 %v108
    %v373 = vunpack.c.l.b16 %v109
    %v374 = vunpack.c.l.b16 %v110
    %v375 = vunpack.c.l.b16 %v111
    %v376 = vunpack.c.l.b16 %v112
    %v377 = vunpack.c.l.b16 %v113
    %v378 = vunpack.c.l.b16 %v114
    %v379 = vunpack.c.l.b16 %v115
    %v380 = vunpack.c.l.b16 %v116
    %v381 = vunpack.c.l.b16 %v117
    %v382 = vunpack.c.l.b16 %v118
    %v383 = vunpack.c.l.b16 %v119
    %v384 = vunpack.c.l.b16 %v120
    %v385 = vunpack.c.l.b16 %v121
    %v386 = vunpack.c.l.b16 %v122
    %v387 = vunpack.c.l.b16 %v123
    %v388 = vunpack.c.l.b16 %v124
    %v389 = vunpack.c.l.b16 %v125
    %v390 = vunpack.c.l.b16 %v126
    %v391 = vunpack.c.l.b16 %v127
    %v392 = vunpack.c.l.b16 %v128
    %v393 = vunpack.c.l.b16 %v129
    %v394 = vunpack.c.l.b16 %v130
    %v395 = vunpack.c.l.b16 %v131
    %v396 = vunpack.c.l.b16 %v132
    %v397 = vunpack.c.l.b16 %v133
    %v398 = vunpack.c.l.b16 %v134
    %v399 = vunpack.c.l.b16 %v135
    %v400 = vunpack.c.l.b16 %v136
    %v401 = vunpack.c.l.b16 %v137
    %v402 = vunpack.c.l.b16 %v138
    %v403 = vunpack.c.l.b16 %v139
    %v404 = vunpack.c.l.b16 %v140
    %v405 = vunpack.c.l.b16 %v141
    %v406 = vunpack.c.l.b16 %v142
    %v407 = vunpack.c.l.b16 %v143
    %v408 = vunpack.c.l.b16 %v144
    %v409 = vunpack.c.l.b16 %v145
    %v410 = vunpack.c.l.b16 %v146
    %v411 = vunpack.c.l.b16 %v147
    %v412 = vunpack.c.l.b16 %v148
    %v413 = vunpack.c.l.b16 %v149
    %v414 = vunpack.c.l.b16 %v150
    %v415 = vunpack.c.l.b16 %v151
    %v416 = vunpack.c.l.b16 %v152
    %v417 = vunpack.c.l.b16 %v153
    %v418 = vunpack.c.l.b16 %v154
    %v419 = vunpack.c.l.b16 %v155
    %v420 = vpack.c.b16 %v293, %v292
    %v421 = vpack.c.b16 %v295, %v294
    %v422 = vpack.c.b16 %v297, %v296
    %v423 = vpack.c.b16 %v299, %v298
    %v424 = vpack.c.b16 %v301, %v300
    %v425 = vpack.c.b16 %v303, %v302
    %v426 = vpack.c.b16 %v305, %v304
    %v427 = vpack.c.b16 %v307, %v306
    %v428 = vpack.c.b16 %v309, %v308
    %v429 = vpack.c.b16 %v311, %v310
    %v430 = vpack.c.b16 %v313, %v312
    %v431 = vpack.c.b16 %v315, %v314
    %v432 = vpack.c.b16 %v317, %v316
    %v433 = vpack.c.b16 %v319, %v318
    %v434 = vpack.c.b16 %v321, %v320
    %v435 = vpack.c.b16 %v323, %v322
    %v436 = vpack.c.b16 %v325, %v324
    %v437 = vpack.c.b16 %v327, %v326
    %v438 = vpack.c.b16 %v329, %v328
    %v439 = vpack.c.b16 %v331, %v330
    %v440 = vpack.c.b16 %v333, %v332
    %v441 = vpack.c.b16 %v335, %v334
    %v442 = vpack.c.b16 %v337, %v336
    %v443 = vpack.c.b16 %v339, %v338
    %v444 = vpack.c.b16 %v341, %v340
    %v445 = vpack.c.b16 %v343, %v342
    %v446 = vpack.c.b16 %v345, %v344
    %v447 = vpack.c.b16 %v347, %v346
    %v448 = vpack.c.b16 %v349, %v348
    %v449 = vpack.c.b16 %v351, %v350
    %v450 = vpack.c.b16 %v353, %v352
    %v451 = vpack.c.b16 %v355, %v354
    %v452 = vpack.c.b16 %v357, %v356
    %v453 = vpack.c.b16 %v359, %v358
    %v454 = vpack.c.b16 %v361, %v360
    %v455 = vpack.c.b16 %v363, %v362
    %v456 = vpack.c.b16 %v365, %v364
    %v457 = vpack.c.b16 %v367, %v366
    %v458 = vpack.c.b16 %v369, %v368
    %v459 = vpack.c.b16 %v371, %v370
    %v460 = vpack.c.b16 %v373, %v372
    %v461 = vpack.c.b16 %v375, %v374
    %v462 = vpack.c.b16 %v377, %v376
    %v463 = vpack.c.b16 %v379, %v378
    %v464 = vpack.c.b16 %v381, %v380
    %v465 = vpack.c.b16 %v383, %v382
    %v466 = vpack.c.b16 %v385, %v384
    %v467 = vpack.c.b16 %v387, %v386
    %v468 = vpack.c.b16 %v389, %v388
    %v469 = vpack.c.b16 %v391, %v390
    %v470 = vpack.c.b16 %v393, %v392
    %v471 = vpack.c.b16 %v395, %v394
    %v472 = vpack.c.b16 %v397, %v396
    %v473 = vpack.c.b16 %v399, %v398
    %v474 = vpack.c.b16 %v401, %v400
    %v475 = vpack.c.b16 %v403, %v402
    %v476 = vpack.c.b16 %v405, %v404
    %v477 = vpack.c.b16 %v407, %v406
    %v478 = vpack.c.b16 %v409, %v408
    %v479 = vpack.c.b16 %v411, %v410
    %v480 = vpack.c.b16 %v413, %v412
    %v481 = vpack.c.b16 %v415, %v414
    %v482 = vpack.c.b16 %v417, %v416
    %v483 = vpack.c.b16 %v419, %v418
    %vm484 = vcmask 56320
    %v486 = vsel %vm484, %v420, 0
    %v489 = vsel %vm484, %v421, 0
    %v492 = vsel %vm484, %v422, 0
    %v495 = vsel %vm484, %v423, 0
    %v498 = vsel %vm484, %v424, 0
    %v501 = vsel %vm484, %v425, 0
    %v504 = vsel %vm484, %v426, 0
    %v507 = vsel %vm484, %v427, 0
    %v510 = vsel %vm484, %v428, 0
    %v513 = vsel %vm484, %v429, 0
    %v516 = vsel %vm484, %v430, 0
    %v519 = vsel %vm484, %v431, 0
    %v522 = vsel %vm484, %v432, 0
    %v525 = vsel %vm484, %v433, 0
    %v528 = vsel %vm484, %v434, 0
    %v531 = vsel %vm484, %v435, 0
    %v534 = vsel %vm484, %v436, 0
    %v537 = vsel %vm484, %v437, 0
    %v540 = vsel %vm484, %v438, 0
    %v543 = vsel %vm484, %v439, 0
    %v546 = vsel %vm484, %v440, 0
    %v549 = vsel %vm484, %v441, 0
    %v552 = vsel %vm484, %v442, 0
    %v555 = vsel %vm484, %v443, 0
    %v558 = vsel %vm484, %v444, 0
    %v561 = vsel %vm484, %v445, 0
    %v564 = vsel %vm484, %v446, 0
    %v567 = vsel %vm484, %v447, 0
    %v570 = vsel %vm484, %v448, 0
    %v573 = vsel %vm484, %v449, 0
    %v576 = vsel %vm484, %v450, 0
    %v579 = vsel %vm484, %v451, 0
    %v582 = vsel %vm484, %v452, 0
    %v585 = vsel %vm484, %v453, 0
    %v588 = vsel %vm484, %v454, 0
    %v591 = vsel %vm484, %v455, 0
    %v594 = vsel %vm484, %v456, 0
    %v597 = vsel %vm484, %v457, 0
    %v600 = vsel %vm484, %v458, 0
    %v603 = vsel %vm484, %v459, 0
    %v606 = vsel %vm484, %v460, 0
    %v609 = vsel %vm484, %v461, 0
    %v612 = vsel %vm484, %v462, 0
    %v615 = vsel %vm484, %v463, 0
    %v618 = vsel %vm484, %v464, 0
    %v621 = vsel %vm484, %v465, 0
    %v624 = vsel %vm484, %v466, 0
    %v627 = vsel %vm484, %v467, 0
    %v630 = vsel %vm484, %v468, 0
    %v633 = vsel %vm484, %v469, 0
    %v636 = vsel %vm484, %v470, 0
    %v639 = vsel %vm484, %v471, 0
    %v642 = vsel %vm484, %v472, 0
    %v645 = vsel %vm484, %v473, 0
    %v648 = vsel %vm484, %v474, 0
    %v651 = vsel %vm484, %v475, 0
    %v654 = vsel %vm484, %v476, 0
    %v657 = vsel %vm484, %v477, 0
    %v660 = vsel %vm484, %v478, 0
    %v663 = vsel %vm484, %v479, 0
    %v666 = vsel %vm484, %v480, 0
    %v669 = vsel %vm484, %v481, 0
    %v672 = vsel %vm484, %v482, 0
    %v675 = vsel %vm484, %v483, 0
    %vm677 = vcmask 1042432
    %vm678 = vcmask 1043456
    %v679 = vsel %vm677, 4294967295, 65535
    %v680 = vsel %vm678, %v679, 0
    %v682 = vand.u32 %v156, %v680
    %684 = vmatprep.subr.bf16.mxu0 0
    %685 = vmatpush1.bf16.msra.mxu0 0
    %686 = vmatprep.subr.bf16.mxu0 0
    %687 = vmatpush1.bf16.msra.mxu0 0
    %688 = vmatprep.subr.bf16.mxu0 0
    %689 = vmatpush1.bf16.msra.mxu0 0
    %690 = vmatprep.subr.bf16.mxu0 0
    %691 = vmatpush1.bf16.msra.mxu0 0
    %692 = vmatprep.subr.bf16.mxu0 0
    %693 = vmatpush1.bf16.msra.mxu0 0
    %694 = vmatprep.subr.bf16.mxu0 0
    %695 = vmatpush1.bf16.msra.mxu0 0
    %696 = vmatprep.subr.bf16.mxu0 0
    %697 = vmatpush1.bf16.msra.mxu0 0
    %698 = vmatprep.subr.bf16.mxu0 0
    %699 = vmatpush1.bf16.msra.mxu0 %v682
    %700 = vmatprep.subr.bf16.mxu0 0
    %701 = vmatpush2.bf16.msra.mxu0 0
    %702 = vmatprep.subr.bf16.mxu0 0
    %703 = vmatpush2.bf16.msra.mxu0 0
    %704 = vmatprep.subr.bf16.mxu0 0
    %705 = vmatpush2.bf16.msra.mxu0 0
    %706 = vmatprep.subr.bf16.mxu0 0
    %707 = vmatpush2.bf16.msra.mxu0 0
    %708 = vmatprep.subr.bf16.mxu0 0
    %709 = vmatpush2.bf16.msra.mxu0 0
    %710 = vmatprep.subr.bf16.mxu0 0
    %711 = vmatpush2.bf16.msra.mxu0 0
    %712 = vmatprep.subr.bf16.mxu0 0
    %713 = vmatpush2.bf16.msra.mxu0 0
    %714 = vmatprep.subr.bf16.mxu0 0
    %715 = vmatpush2.bf16.msra.mxu0 0
    %716 = vmatprep.mubr.bf16.mxu0 0
    %717 = vmatmul.mubr.bf16.gmra.mxu0 %v486
    %v718 = vpop.f32.mrf.mxu0
    %v719 = vadd.f32 %v162, %v718
    %v720 = vpop.f32.mrf.mxu0
    %v721 = vpop.f32.mrf.mxu0
    %v722 = vadd.f32 %v162, %v721
    %v723 = vpop.f32.mrf.mxu0
    %724 = vmatprep.mubr.bf16.mxu0 0
    %725 = vmatmul.mubr.bf16.gmra.mxu0 %v489
    %v726 = vpop.f32.mrf.mxu0
    %v727 = vadd.f32 %v162, %v726
    %v728 = vpop.f32.mrf.mxu0
    %v729 = vpop.f32.mrf.mxu0
    %v730 = vadd.f32 %v162, %v729
    %v731 = vpop.f32.mrf.mxu0
    %732 = vmatprep.mubr.bf16.mxu0 0
    %733 = vmatmul.mubr.bf16.gmra.mxu0 %v492
    %v734 = vpop.f32.mrf.mxu0
    %v735 = vadd.f32 %v162, %v734
    %v736 = vpop.f32.mrf.mxu0
    %v737 = vpop.f32.mrf.mxu0
    %v738 = vadd.f32 %v162, %v737
    %v739 = vpop.f32.mrf.mxu0
    %740 = vmatprep.mubr.bf16.mxu0 0
    %741 = vmatmul.mubr.bf16.gmra.mxu0 %v495
    %v742 = vpop.f32.mrf.mxu0
    %v743 = vadd.f32 %v162, %v742
    %v744 = vpop.f32.mrf.mxu0
    %v745 = vpop.f32.mrf.mxu0
    %v746 = vadd.f32 %v162, %v745
    %v747 = vpop.f32.mrf.mxu0
    %748 = vmatprep.mubr.bf16.mxu0 0
    %749 = vmatmul.mubr.bf16.gmra.mxu0 %v498
    %v750 = vpop.f32.mrf.mxu0
    %v751 = vadd.f32 %v162, %v750
    %v752 = vpop.f32.mrf.mxu0
    %v753 = vpop.f32.mrf.mxu0
    %v754 = vadd.f32 %v162, %v753
    %v755 = vpop.f32.mrf.mxu0
    %756 = vmatprep.mubr.bf16.mxu0 0
    %757 = vmatmul.mubr.bf16.gmra.mxu0 %v501
    %v758 = vpop.f32.mrf.mxu0
    %v759 = vadd.f32 %v162, %v758
    %v760 = vpop.f32.mrf.mxu0
    %v761 = vpop.f32.mrf.mxu0
    %v762 = vadd.f32 %v162, %v761
    %v763 = vpop.f32.mrf.mxu0
    %764 = vmatprep.mubr.bf16.mxu0 0
    %765 = vmatmul.mubr.bf16.gmra.mxu0 %v504
    %v766 = vpop.f32.mrf.mxu0
    %v767 = vadd.f32 %v162, %v766
    %v768 = vpop.f32.mrf.mxu0
    %v769 = vpop.f32.mrf.mxu0
    %v770 = vadd.f32 %v162, %v769
    %v771 = vpop.f32.mrf.mxu0
    %772 = vmatprep.mubr.bf16.mxu0 0
    %773 = vmatmul.mubr.bf16.gmra.mxu0 %v507
    %v774 = vpop.f32.mrf.mxu0
    %v775 = vadd.f32 %v162, %v774
    %v776 = vpop.f32.mrf.mxu0
    %v777 = vpop.f32.mrf.mxu0
    %v778 = vadd.f32 %v162, %v777
    %v779 = vpop.f32.mrf.mxu0
    %780 = vmatprep.mubr.bf16.mxu0 0
    %781 = vmatmul.mubr.bf16.gmra.mxu0 %v510
    %v782 = vpop.f32.mrf.mxu0
    %v783 = vadd.f32 %v162, %v782
    %v784 = vpop.f32.mrf.mxu0
    %v785 = vpop.f32.mrf.mxu0
    %v786 = vadd.f32 %v162, %v785
    %v787 = vpop.f32.mrf.mxu0
    %788 = vmatprep.mubr.bf16.mxu0 0
    %789 = vmatmul.mubr.bf16.gmra.mxu0 %v513
    %v790 = vpop.f32.mrf.mxu0
    %v791 = vadd.f32 %v162, %v790
    %v792 = vpop.f32.mrf.mxu0
    %v793 = vpop.f32.mrf.mxu0
    %v794 = vadd.f32 %v162, %v793
    %v795 = vpop.f32.mrf.mxu0
    %796 = vmatprep.mubr.bf16.mxu0 0
    %797 = vmatmul.mubr.bf16.gmra.mxu0 %v516
    %v798 = vpop.f32.mrf.mxu0
    %v799 = vadd.f32 %v162, %v798
    %v800 = vpop.f32.mrf.mxu0
    %v801 = vpop.f32.mrf.mxu0
    %v802 = vadd.f32 %v162, %v801
    %v803 = vpop.f32.mrf.mxu0
    %804 = vmatprep.mubr.bf16.mxu0 0
    %805 = vmatmul.mubr.bf16.gmra.mxu0 %v519
    %v806 = vpop.f32.mrf.mxu0
    %v807 = vadd.f32 %v162, %v806
    %v808 = vpop.f32.mrf.mxu0
    %v809 = vpop.f32.mrf.mxu0
    %v810 = vadd.f32 %v162, %v809
    %v811 = vpop.f32.mrf.mxu0
    %812 = vmatprep.mubr.bf16.mxu0 0
    %813 = vmatmul.mubr.bf16.gmra.mxu0 %v522
    %v814 = vpop.f32.mrf.mxu0
    %v815 = vadd.f32 %v162, %v814
    %v816 = vpop.f32.mrf.mxu0
    %v817 = vpop.f32.mrf.mxu0
    %v818 = vadd.f32 %v162, %v817
    %v819 = vpop.f32.mrf.mxu0
    %820 = vmatprep.mubr.bf16.mxu0 0
    %821 = vmatmul.mubr.bf16.gmra.mxu0 %v525
    %v822 = vpop.f32.mrf.mxu0
    %v823 = vadd.f32 %v162, %v822
    %v824 = vpop.f32.mrf.mxu0
    %v825 = vpop.f32.mrf.mxu0
    %v826 = vadd.f32 %v162, %v825
    %v827 = vpop.f32.mrf.mxu0
    %828 = vmatprep.mubr.bf16.mxu0 0
    %829 = vmatmul.mubr.bf16.gmra.mxu0 %v528
    %v830 = vpop.f32.mrf.mxu0
    %v831 = vadd.f32 %v162, %v830
    %v832 = vpop.f32.mrf.mxu0
    %v833 = vpop.f32.mrf.mxu0
    %v834 = vadd.f32 %v162, %v833
    %v835 = vpop.f32.mrf.mxu0
    %836 = vmatprep.mubr.bf16.mxu0 0
    %837 = vmatmul.mubr.bf16.gmra.mxu0 %v531
    %v838 = vpop.f32.mrf.mxu0
    %v839 = vadd.f32 %v162, %v838
    %v840 = vpop.f32.mrf.mxu0
    %v841 = vpop.f32.mrf.mxu0
    %v842 = vadd.f32 %v162, %v841
    %v843 = vpop.f32.mrf.mxu0
    %844 = vmatprep.mubr.bf16.mxu0 0
    %845 = vmatmul.mubr.bf16.gmra.mxu0 %v534
    %v846 = vpop.f32.mrf.mxu0
    %v847 = vadd.f32 %v162, %v846
    %v848 = vpop.f32.mrf.mxu0
    %v849 = vpop.f32.mrf.mxu0
    %v850 = vadd.f32 %v162, %v849
    %v851 = vpop.f32.mrf.mxu0
    %852 = vmatprep.mubr.bf16.mxu0 0
    %853 = vmatmul.mubr.bf16.gmra.mxu0 %v537
    %v854 = vpop.f32.mrf.mxu0
    %v855 = vadd.f32 %v162, %v854
    %v856 = vpop.f32.mrf.mxu0
    %v857 = vpop.f32.mrf.mxu0
    %v858 = vadd.f32 %v162, %v857
    %v859 = vpop.f32.mrf.mxu0
    %860 = vmatprep.mubr.bf16.mxu0 0
    %861 = vmatmul.mubr.bf16.gmra.mxu0 %v540
    %v862 = vpop.f32.mrf.mxu0
    %v863 = vadd.f32 %v162, %v862
    %v864 = vpop.f32.mrf.mxu0
    %v865 = vpop.f32.mrf.mxu0
    %v866 = vadd.f32 %v162, %v865
    %v867 = vpop.f32.mrf.mxu0
    %868 = vmatprep.mubr.bf16.mxu0 0
    %869 = vmatmul.mubr.bf16.gmra.mxu0 %v543
    %v870 = vpop.f32.mrf.mxu0
    %v871 = vadd.f32 %v162, %v870
    %v872 = vpop.f32.mrf.mxu0
    %v873 = vpop.f32.mrf.mxu0
    %v874 = vadd.f32 %v162, %v873
    %v875 = vpop.f32.mrf.mxu0
    %876 = vmatprep.mubr.bf16.mxu0 0
    %877 = vmatmul.mubr.bf16.gmra.mxu0 %v546
    %v878 = vpop.f32.mrf.mxu0
    %v879 = vadd.f32 %v162, %v878
    %v880 = vpop.f32.mrf.mxu0
    %v881 = vpop.f32.mrf.mxu0
    %v882 = vadd.f32 %v162, %v881
    %v883 = vpop.f32.mrf.mxu0
    %884 = vmatprep.mubr.bf16.mxu0 0
    %885 = vmatmul.mubr.bf16.gmra.mxu0 %v549
    %v886 = vpop.f32.mrf.mxu0
    %v887 = vadd.f32 %v162, %v886
    %v888 = vpop.f32.mrf.mxu0
    %v889 = vpop.f32.mrf.mxu0
    %v890 = vadd.f32 %v162, %v889
    %v891 = vpop.f32.mrf.mxu0
    %892 = vmatprep.mubr.bf16.mxu0 0
    %893 = vmatmul.mubr.bf16.gmra.mxu0 %v552
    %v894 = vpop.f32.mrf.mxu0
    %v895 = vadd.f32 %v162, %v894
    %v896 = vpop.f32.mrf.mxu0
    %v897 = vpop.f32.mrf.mxu0
    %v898 = vadd.f32 %v162, %v897
    %v899 = vpop.f32.mrf.mxu0
    %900 = vmatprep.mubr.bf16.mxu0 0
    %901 = vmatmul.mubr.bf16.gmra.mxu0 %v555
    %v902 = vpop.f32.mrf.mxu0
    %v903 = vadd.f32 %v162, %v902
    %v904 = vpop.f32.mrf.mxu0
    %v905 = vpop.f32.mrf.mxu0
    %v906 = vadd.f32 %v162, %v905
    %v907 = vpop.f32.mrf.mxu0
    %908 = vmatprep.mubr.bf16.mxu0 0
    %909 = vmatmul.mubr.bf16.gmra.mxu0 %v558
    %v910 = vpop.f32.mrf.mxu0
    %v911 = vadd.f32 %v162, %v910
    %v912 = vpop.f32.mrf.mxu0
    %v913 = vpop.f32.mrf.mxu0
    %v914 = vadd.f32 %v162, %v913
    %v915 = vpop.f32.mrf.mxu0
    %916 = vmatprep.mubr.bf16.mxu0 0
    %917 = vmatmul.mubr.bf16.gmra.mxu0 %v561
    %v918 = vpop.f32.mrf.mxu0
    %v919 = vadd.f32 %v162, %v918
    %v920 = vpop.f32.mrf.mxu0
    %v921 = vpop.f32.mrf.mxu0
    %v922 = vadd.f32 %v162, %v921
    %v923 = vpop.f32.mrf.mxu0
    %924 = vmatprep.mubr.bf16.mxu0 0
    %925 = vmatmul.mubr.bf16.gmra.mxu0 %v564
    %v926 = vpop.f32.mrf.mxu0
    %v927 = vadd.f32 %v162, %v926
    %v928 = vpop.f32.mrf.mxu0
    %v929 = vpop.f32.mrf.mxu0
    %v930 = vadd.f32 %v162, %v929
    %v931 = vpop.f32.mrf.mxu0
    %932 = vmatprep.mubr.bf16.mxu0 0
    %933 = vmatmul.mubr.bf16.gmra.mxu0 %v567
    %v934 = vpop.f32.mrf.mxu0
    %v935 = vadd.f32 %v162, %v934
    %v936 = vpop.f32.mrf.mxu0
    %v937 = vpop.f32.mrf.mxu0
    %v938 = vadd.f32 %v162, %v937
    %v939 = vpop.f32.mrf.mxu0
    %940 = vmatprep.mubr.bf16.mxu0 0
    %941 = vmatmul.mubr.bf16.gmra.mxu0 %v570
    %v942 = vpop.f32.mrf.mxu0
    %v943 = vadd.f32 %v162, %v942
    %v944 = vpop.f32.mrf.mxu0
    %v945 = vpop.f32.mrf.mxu0
    %v946 = vadd.f32 %v162, %v945
    %v947 = vpop.f32.mrf.mxu0
    %948 = vmatprep.mubr.bf16.mxu0 0
    %949 = vmatmul.mubr.bf16.gmra.mxu0 %v573
    %v950 = vpop.f32.mrf.mxu0
    %v951 = vadd.f32 %v162, %v950
    %v952 = vpop.f32.mrf.mxu0
    %v953 = vpop.f32.mrf.mxu0
    %v954 = vadd.f32 %v162, %v953
    %v955 = vpop.f32.mrf.mxu0
    %956 = vmatprep.mubr.bf16.mxu0 0
    %957 = vmatmul.mubr.bf16.gmra.mxu0 %v576
    %v958 = vpop.f32.mrf.mxu0
    %v959 = vadd.f32 %v162, %v958
    %v960 = vpop.f32.mrf.mxu0
    %v961 = vpop.f32.mrf.mxu0
    %v962 = vadd.f32 %v162, %v961
    %v963 = vpop.f32.mrf.mxu0
    %964 = vmatprep.mubr.bf16.mxu0 0
    %965 = vmatmul.mubr.bf16.gmra.mxu0 %v579
    %v966 = vpop.f32.mrf.mxu0
    %v967 = vadd.f32 %v162, %v966
    %v968 = vpop.f32.mrf.mxu0
    %v969 = vpop.f32.mrf.mxu0
    %v970 = vadd.f32 %v162, %v969
    %v971 = vpop.f32.mrf.mxu0
    %972 = vmatprep.mubr.bf16.mxu0 0
    %973 = vmatmul.mubr.bf16.gmra.mxu0 %v582
    %v974 = vpop.f32.mrf.mxu0
    %v975 = vadd.f32 %v162, %v974
    %v976 = vpop.f32.mrf.mxu0
    %v977 = vpop.f32.mrf.mxu0
    %v978 = vadd.f32 %v162, %v977
    %v979 = vpop.f32.mrf.mxu0
    %980 = vmatprep.mubr.bf16.mxu0 0
    %981 = vmatmul.mubr.bf16.gmra.mxu0 %v585
    %v982 = vpop.f32.mrf.mxu0
    %v983 = vadd.f32 %v162, %v982
    %v984 = vpop.f32.mrf.mxu0
    %v985 = vpop.f32.mrf.mxu0
    %v986 = vadd.f32 %v162, %v985
    %v987 = vpop.f32.mrf.mxu0
    %988 = vmatprep.mubr.bf16.mxu0 0
    %989 = vmatmul.mubr.bf16.gmra.mxu0 %v588
    %v990 = vpop.f32.mrf.mxu0
    %v991 = vadd.f32 %v162, %v990
    %v992 = vpop.f32.mrf.mxu0
    %v993 = vpop.f32.mrf.mxu0
    %v994 = vadd.f32 %v162, %v993
    %v995 = vpop.f32.mrf.mxu0
    %996 = vmatprep.mubr.bf16.mxu0 0
    %997 = vmatmul.mubr.bf16.gmra.mxu0 %v591
    %v998 = vpop.f32.mrf.mxu0
    %v999 = vadd.f32 %v162, %v998
    %v1000 = vpop.f32.mrf.mxu0
    %v1001 = vpop.f32.mrf.mxu0
    %v1002 = vadd.f32 %v162, %v1001
    %v1003 = vpop.f32.mrf.mxu0
    %1004 = vmatprep.mubr.bf16.mxu0 0
    %1005 = vmatmul.mubr.bf16.gmra.mxu0 %v594
    %v1006 = vpop.f32.mrf.mxu0
    %v1007 = vadd.f32 %v162, %v1006
    %v1008 = vpop.f32.mrf.mxu0
    %v1009 = vpop.f32.mrf.mxu0
    %v1010 = vadd.f32 %v162, %v1009
    %v1011 = vpop.f32.mrf.mxu0
    %1012 = vmatprep.mubr.bf16.mxu0 0
    %1013 = vmatmul.mubr.bf16.gmra.mxu0 %v597
    %v1014 = vpop.f32.mrf.mxu0
    %v1015 = vadd.f32 %v162, %v1014
    %v1016 = vpop.f32.mrf.mxu0
    %v1017 = vpop.f32.mrf.mxu0
    %v1018 = vadd.f32 %v162, %v1017
    %v1019 = vpop.f32.mrf.mxu0
    %1020 = vmatprep.mubr.bf16.mxu0 0
    %1021 = vmatmul.mubr.bf16.gmra.mxu0 %v600
    %v1022 = vpop.f32.mrf.mxu0
    %v1023 = vadd.f32 %v162, %v1022
    %v1024 = vpop.f32.mrf.mxu0
    %v1025 = vpop.f32.mrf.mxu0
    %v1026 = vadd.f32 %v162, %v1025
    %v1027 = vpop.f32.mrf.mxu0
    %1028 = vmatprep.mubr.bf16.mxu0 0
    %1029 = vmatmul.mubr.bf16.gmra.mxu0 %v603
    %v1030 = vpop.f32.mrf.mxu0
    %v1031 = vadd.f32 %v162, %v1030
    %v1032 = vpop.f32.mrf.mxu0
    %v1033 = vpop.f32.mrf.mxu0
    %v1034 = vadd.f32 %v162, %v1033
    %v1035 = vpop.f32.mrf.mxu0
    %1036 = vmatprep.mubr.bf16.mxu0 0
    %1037 = vmatmul.mubr.bf16.gmra.mxu0 %v606
    %v1038 = vpop.f32.mrf.mxu0
    %v1039 = vadd.f32 %v162, %v1038
    %v1040 = vpop.f32.mrf.mxu0
    %v1041 = vpop.f32.mrf.mxu0
    %v1042 = vadd.f32 %v162, %v1041
    %v1043 = vpop.f32.mrf.mxu0
    %1044 = vmatprep.mubr.bf16.mxu0 0
    %1045 = vmatmul.mubr.bf16.gmra.mxu0 %v609
    %v1046 = vpop.f32.mrf.mxu0
    %v1047 = vadd.f32 %v162, %v1046
    %v1048 = vpop.f32.mrf.mxu0
    %v1049 = vpop.f32.mrf.mxu0
    %v1050 = vadd.f32 %v162, %v1049
    %v1051 = vpop.f32.mrf.mxu0
    %1052 = vmatprep.mubr.bf16.mxu0 0
    %1053 = vmatmul.mubr.bf16.gmra.mxu0 %v612
    %v1054 = vpop.f32.mrf.mxu0
    %v1055 = vadd.f32 %v162, %v1054
    %v1056 = vpop.f32.mrf.mxu0
    %v1057 = vpop.f32.mrf.mxu0
    %v1058 = vadd.f32 %v162, %v1057
    %v1059 = vpop.f32.mrf.mxu0
    %1060 = vmatprep.mubr.bf16.mxu0 0
    %1061 = vmatmul.mubr.bf16.gmra.mxu0 %v615
    %v1062 = vpop.f32.mrf.mxu0
    %v1063 = vadd.f32 %v162, %v1062
    %v1064 = vpop.f32.mrf.mxu0
    %v1065 = vpop.f32.mrf.mxu0
    %v1066 = vadd.f32 %v162, %v1065
    %v1067 = vpop.f32.mrf.mxu0
    %1068 = vmatprep.mubr.bf16.mxu0 0
    %1069 = vmatmul.mubr.bf16.gmra.mxu0 %v618
    %v1070 = vpop.f32.mrf.mxu0
    %v1071 = vadd.f32 %v162, %v1070
    %v1072 = vpop.f32.mrf.mxu0
    %v1073 = vpop.f32.mrf.mxu0
    %v1074 = vadd.f32 %v162, %v1073
    %v1075 = vpop.f32.mrf.mxu0
    %1076 = vmatprep.mubr.bf16.mxu0 0
    %1077 = vmatmul.mubr.bf16.gmra.mxu0 %v621
    %v1078 = vpop.f32.mrf.mxu0
    %v1079 = vadd.f32 %v162, %v1078
    %v1080 = vpop.f32.mrf.mxu0
    %v1081 = vpop.f32.mrf.mxu0
    %v1082 = vadd.f32 %v162, %v1081
    %v1083 = vpop.f32.mrf.mxu0
    %1084 = vmatprep.mubr.bf16.mxu0 0
    %1085 = vmatmul.mubr.bf16.gmra.mxu0 %v624
    %v1086 = vpop.f32.mrf.mxu0
    %v1087 = vadd.f32 %v162, %v1086
    %v1088 = vpop.f32.mrf.mxu0
    %v1089 = vpop.f32.mrf.mxu0
    %v1090 = vadd.f32 %v162, %v1089
    %v1091 = vpop.f32.mrf.mxu0
    %1092 = vmatprep.mubr.bf16.mxu0 0
    %1093 = vmatmul.mubr.bf16.gmra.mxu0 %v627
    %v1094 = vpop.f32.mrf.mxu0
    %v1095 = vadd.f32 %v162, %v1094
    %v1096 = vpop.f32.mrf.mxu0
    %v1097 = vpop.f32.mrf.mxu0
    %v1098 = vadd.f32 %v162, %v1097
    %v1099 = vpop.f32.mrf.mxu0
    %1100 = vmatprep.mubr.bf16.mxu0 0
    %1101 = vmatmul.mubr.bf16.gmra.mxu0 %v630
    %v1102 = vpop.f32.mrf.mxu0
    %v1103 = vadd.f32 %v162, %v1102
    %v1104 = vpop.f32.mrf.mxu0
    %v1105 = vpop.f32.mrf.mxu0
    %v1106 = vadd.f32 %v162, %v1105
    %v1107 = vpop.f32.mrf.mxu0
    %1108 = vmatprep.mubr.bf16.mxu0 0
    %1109 = vmatmul.mubr.bf16.gmra.mxu0 %v633
    %v1110 = vpop.f32.mrf.mxu0
    %v1111 = vadd.f32 %v162, %v1110
    %v1112 = vpop.f32.mrf.mxu0
    %v1113 = vpop.f32.mrf.mxu0
    %v1114 = vadd.f32 %v162, %v1113
    %v1115 = vpop.f32.mrf.mxu0
    %1116 = vmatprep.mubr.bf16.mxu0 0
    %1117 = vmatmul.mubr.bf16.gmra.mxu0 %v636
    %v1118 = vpop.f32.mrf.mxu0
    %v1119 = vadd.f32 %v162, %v1118
    %v1120 = vpop.f32.mrf.mxu0
    %v1121 = vpop.f32.mrf.mxu0
    %v1122 = vadd.f32 %v162, %v1121
    %v1123 = vpop.f32.mrf.mxu0
    %1124 = vmatprep.mubr.bf16.mxu0 0
    %1125 = vmatmul.mubr.bf16.gmra.mxu0 %v639
    %v1126 = vpop.f32.mrf.mxu0
    %v1127 = vadd.f32 %v162, %v1126
    %v1128 = vpop.f32.mrf.mxu0
    %v1129 = vpop.f32.mrf.mxu0
    %v1130 = vadd.f32 %v162, %v1129
    %v1131 = vpop.f32.mrf.mxu0
    %1132 = vmatprep.mubr.bf16.mxu0 0
    %1133 = vmatmul.mubr.bf16.gmra.mxu0 %v642
    %v1134 = vpop.f32.mrf.mxu0
    %v1135 = vadd.f32 %v162, %v1134
    %v1136 = vpop.f32.mrf.mxu0
    %v1137 = vpop.f32.mrf.mxu0
    %v1138 = vadd.f32 %v162, %v1137
    %v1139 = vpop.f32.mrf.mxu0
    %1140 = vmatprep.mubr.bf16.mxu0 0
    %1141 = vmatmul.mubr.bf16.gmra.mxu0 %v645
    %v1142 = vpop.f32.mrf.mxu0
    %v1143 = vadd.f32 %v162, %v1142
    %v1144 = vpop.f32.mrf.mxu0
    %v1145 = vpop.f32.mrf.mxu0
    %v1146 = vadd.f32 %v162, %v1145
    %v1147 = vpop.f32.mrf.mxu0
    %1148 = vmatprep.mubr.bf16.mxu0 0
    %1149 = vmatmul.mubr.bf16.gmra.mxu0 %v648
    %v1150 = vpop.f32.mrf.mxu0
    %v1151 = vadd.f32 %v162, %v1150
    %v1152 = vpop.f32.mrf.mxu0
    %v1153 = vpop.f32.mrf.mxu0
    %v1154 = vadd.f32 %v162, %v1153
    %v1155 = vpop.f32.mrf.mxu0
    %1156 = vmatprep.mubr.bf16.mxu0 0
    %1157 = vmatmul.mubr.bf16.gmra.mxu0 %v651
    %v1158 = vpop.f32.mrf.mxu0
    %v1159 = vadd.f32 %v162, %v1158
    %v1160 = vpop.f32.mrf.mxu0
    %v1161 = vpop.f32.mrf.mxu0
    %v1162 = vadd.f32 %v162, %v1161
    %v1163 = vpop.f32.mrf.mxu0
    %1164 = vmatprep.mubr.bf16.mxu0 0
    %1165 = vmatmul.mubr.bf16.gmra.mxu0 %v654
    %v1166 = vpop.f32.mrf.mxu0
    %v1167 = vadd.f32 %v162, %v1166
    %v1168 = vpop.f32.mrf.mxu0
    %v1169 = vpop.f32.mrf.mxu0
    %v1170 = vadd.f32 %v162, %v1169
    %v1171 = vpop.f32.mrf.mxu0
    %1172 = vmatprep.mubr.bf16.mxu0 0
    %1173 = vmatmul.mubr.bf16.gmra.mxu0 %v657
    %v1174 = vpop.f32.mrf.mxu0
    %v1175 = vadd.f32 %v162, %v1174
    %v1176 = vpop.f32.mrf.mxu0
    %v1177 = vpop.f32.mrf.mxu0
    %v1178 = vadd.f32 %v162, %v1177
    %v1179 = vpop.f32.mrf.mxu0
    %1180 = vmatprep.mubr.bf16.mxu0 0
    %1181 = vmatmul.mubr.bf16.gmra.mxu0 %v660
    %v1182 = vpop.f32.mrf.mxu0
    %v1183 = vadd.f32 %v162, %v1182
    %v1184 = vpop.f32.mrf.mxu0
    %v1185 = vpop.f32.mrf.mxu0
    %v1186 = vadd.f32 %v162, %v1185
    %v1187 = vpop.f32.mrf.mxu0
    %1188 = vmatprep.mubr.bf16.mxu0 0
    %1189 = vmatmul.mubr.bf16.gmra.mxu0 %v663
    %v1190 = vpop.f32.mrf.mxu0
    %v1191 = vadd.f32 %v162, %v1190
    %v1192 = vpop.f32.mrf.mxu0
    %v1193 = vpop.f32.mrf.mxu0
    %v1194 = vadd.f32 %v162, %v1193
    %v1195 = vpop.f32.mrf.mxu0
    %1196 = vmatprep.mubr.bf16.mxu0 0
    %1197 = vmatmul.mubr.bf16.gmra.mxu0 %v666
    %v1198 = vpop.f32.mrf.mxu0
    %v1199 = vadd.f32 %v162, %v1198
    %v1200 = vpop.f32.mrf.mxu0
    %v1201 = vpop.f32.mrf.mxu0
    %v1202 = vadd.f32 %v162, %v1201
    %v1203 = vpop.f32.mrf.mxu0
    %1204 = vmatprep.mubr.bf16.mxu0 0
    %1205 = vmatmul.mubr.bf16.gmra.mxu0 %v669
    %v1206 = vpop.f32.mrf.mxu0
    %v1207 = vadd.f32 %v162, %v1206
    %v1208 = vpop.f32.mrf.mxu0
    %v1209 = vpop.f32.mrf.mxu0
    %v1210 = vadd.f32 %v162, %v1209
    %v1211 = vpop.f32.mrf.mxu0
    %1212 = vmatprep.mubr.bf16.mxu0 0
    %1213 = vmatmul.mubr.bf16.gmra.mxu0 %v672
    %v1214 = vpop.f32.mrf.mxu0
    %v1215 = vadd.f32 %v162, %v1214
    %v1216 = vpop.f32.mrf.mxu0
    %v1217 = vpop.f32.mrf.mxu0
    %v1218 = vadd.f32 %v162, %v1217
    %v1219 = vpop.f32.mrf.mxu0
    %1220 = vmatprep.mubr.bf16.mxu0 0
    %1221 = vmatmul.mubr.bf16.gmra.mxu0 %v675
    %v1222 = vpop.f32.mrf.mxu0
    %v1223 = vadd.f32 %v162, %v1222
    %v1224 = vpop.f32.mrf.mxu0
    %v1225 = vpop.f32.mrf.mxu0
    %v1226 = vadd.f32 %v162, %v1225
    %v1227 = vpop.f32.mrf.mxu0
    %1228 = vdwg.mxu0
    %vm1229 = vcmp.ge.f32.partialorder %v719, 0.0
    %vm1230 = vcmp.ge.f32.partialorder %v722, 0.0
    %vm1231 = vcmp.ge.f32.partialorder %v727, 0.0
    %vm1232 = vcmp.ge.f32.partialorder %v730, 0.0
    %vm1233 = vcmp.ge.f32.partialorder %v735, 0.0
    %vm1234 = vcmp.ge.f32.partialorder %v738, 0.0
    %vm1235 = vcmp.ge.f32.partialorder %v743, 0.0
    %vm1236 = vcmp.ge.f32.partialorder %v746, 0.0
    %vm1237 = vcmp.ge.f32.partialorder %v751, 0.0
    %vm1238 = vcmp.ge.f32.partialorder %v754, 0.0
    %vm1239 = vcmp.ge.f32.partialorder %v759, 0.0
    %vm1240 = vcmp.ge.f32.partialorder %v762, 0.0
    %vm1241 = vcmp.ge.f32.partialorder %v767, 0.0
    %vm1242 = vcmp.ge.f32.partialorder %v770, 0.0
    %vm1243 = vcmp.ge.f32.partialorder %v775, 0.0
    %vm1244 = vcmp.ge.f32.partialorder %v778, 0.0
    %vm1245 = vcmp.ge.f32.partialorder %v783, 0.0
    %vm1246 = vcmp.ge.f32.partialorder %v786, 0.0
    %vm1247 = vcmp.ge.f32.partialorder %v791, 0.0
    %vm1248 = vcmp.ge.f32.partialorder %v794, 0.0
    %vm1249 = vcmp.ge.f32.partialorder %v799, 0.0
    %vm1250 = vcmp.ge.f32.partialorder %v802, 0.0
    %vm1251 = vcmp.ge.f32.partialorder %v807, 0.0
    %vm1252 = vcmp.ge.f32.partialorder %v810, 0.0
    %vm1253 = vcmp.ge.f32.partialorder %v815, 0.0
    %vm1254 = vcmp.ge.f32.partialorder %v818, 0.0
    %vm1255 = vcmp.ge.f32.partialorder %v823, 0.0
    %vm1256 = vcmp.ge.f32.partialorder %v826, 0.0
    %vm1257 = vcmp.ge.f32.partialorder %v831, 0.0
    %vm1258 = vcmp.ge.f32.partialorder %v834, 0.0
    %vm1259 = vcmp.ge.f32.partialorder %v839, 0.0
    %vm1260 = vcmp.ge.f32.partialorder %v842, 0.0
    %vm1261 = vcmp.ge.f32.partialorder %v847, 0.0
    %vm1262 = vcmp.ge.f32.partialorder %v850, 0.0
    %vm1263 = vcmp.ge.f32.partialorder %v855, 0.0
    %vm1264 = vcmp.ge.f32.partialorder %v858, 0.0
    %vm1265 = vcmp.ge.f32.partialorder %v863, 0.0
    %vm1266 = vcmp.ge.f32.partialorder %v866, 0.0
    %vm1267 = vcmp.ge.f32.partialorder %v871, 0.0
    %vm1268 = vcmp.ge.f32.partialorder %v874, 0.0
    %vm1269 = vcmp.ge.f32.partialorder %v879, 0.0
    %vm1270 = vcmp.ge.f32.partialorder %v882, 0.0
    %vm1271 = vcmp.ge.f32.partialorder %v887, 0.0
    %vm1272 = vcmp.ge.f32.partialorder %v890, 0.0
    %vm1273 = vcmp.ge.f32.partialorder %v895, 0.0
    %vm1274 = vcmp.ge.f32.partialorder %v898, 0.0
    %vm1275 = vcmp.ge.f32.partialorder %v903, 0.0
    %vm1276 = vcmp.ge.f32.partialorder %v906, 0.0
    %vm1277 = vcmp.ge.f32.partialorder %v911, 0.0
    %vm1278 = vcmp.ge.f32.partialorder %v914, 0.0
    %vm1279 = vcmp.ge.f32.partialorder %v919, 0.0
    %vm1280 = vcmp.ge.f32.partialorder %v922, 0.0
    %vm1281 = vcmp.ge.f32.partialorder %v927, 0.0
    %vm1282 = vcmp.ge.f32.partialorder %v930, 0.0
    %vm1283 = vcmp.ge.f32.partialorder %v935, 0.0
    %vm1284 = vcmp.ge.f32.partialorder %v938, 0.0
    %vm1285 = vcmp.ge.f32.partialorder %v943, 0.0
    %vm1286 = vcmp.ge.f32.partialorder %v946, 0.0
    %vm1287 = vcmp.ge.f32.partialorder %v951, 0.0
    %vm1288 = vcmp.ge.f32.partialorder %v954, 0.0
    %vm1289 = vcmp.ge.f32.partialorder %v959, 0.0
    %vm1290 = vcmp.ge.f32.partialorder %v962, 0.0
    %vm1291 = vcmp.ge.f32.partialorder %v967, 0.0
    %vm1292 = vcmp.ge.f32.partialorder %v970, 0.0
    %vm1293 = vcmp.ge.f32.partialorder %v975, 0.0
    %vm1294 = vcmp.ge.f32.partialorder %v978, 0.0
    %vm1295 = vcmp.ge.f32.partialorder %v983, 0.0
    %vm1296 = vcmp.ge.f32.partialorder %v986, 0.0
    %vm1297 = vcmp.ge.f32.partialorder %v991, 0.0
    %vm1298 = vcmp.ge.f32.partialorder %v994, 0.0
    %vm1299 = vcmp.ge.f32.partialorder %v999, 0.0
    %vm1300 = vcmp.ge.f32.partialorder %v1002, 0.0
    %vm1301 = vcmp.ge.f32.partialorder %v1007, 0.0
    %vm1302 = vcmp.ge.f32.partialorder %v1010, 0.0
    %vm1303 = vcmp.ge.f32.partialorder %v1015, 0.0
    %vm1304 = vcmp.ge.f32.partialorder %v1018, 0.0
    %vm1305 = vcmp.ge.f32.partialorder %v1023, 0.0
    %vm1306 = vcmp.ge.f32.partialorder %v1026, 0.0
    %vm1307 = vcmp.ge.f32.partialorder %v1031, 0.0
    %vm1308 = vcmp.ge.f32.partialorder %v1034, 0.0
    %vm1309 = vcmp.ge.f32.partialorder %v1039, 0.0
    %vm1310 = vcmp.ge.f32.partialorder %v1042, 0.0
    %vm1311 = vcmp.ge.f32.partialorder %v1047, 0.0
    %vm1312 = vcmp.ge.f32.partialorder %v1050, 0.0
    %vm1313 = vcmp.ge.f32.partialorder %v1055, 0.0
    %vm1314 = vcmp.ge.f32.partialorder %v1058, 0.0
    %vm1315 = vcmp.ge.f32.partialorder %v1063, 0.0
    %vm1316 = vcmp.ge.f32.partialorder %v1066, 0.0
    %vm1317 = vcmp.ge.f32.partialorder %v1071, 0.0
    %vm1318 = vcmp.ge.f32.partialorder %v1074, 0.0
    %vm1319 = vcmp.ge.f32.partialorder %v1079, 0.0
    %vm1320 = vcmp.ge.f32.partialorder %v1082, 0.0
    %vm1321 = vcmp.ge.f32.partialorder %v1087, 0.0
    %vm1322 = vcmp.ge.f32.partialorder %v1090, 0.0
    %vm1323 = vcmp.ge.f32.partialorder %v1095, 0.0
    %vm1324 = vcmp.ge.f32.partialorder %v1098, 0.0
    %vm1325 = vcmp.ge.f32.partialorder %v1103, 0.0
    %vm1326 = vcmp.ge.f32.partialorder %v1106, 0.0
    %vm1327 = vcmp.ge.f32.partialorder %v1111, 0.0
    %vm1328 = vcmp.ge.f32.partialorder %v1114, 0.0
    %vm1329 = vcmp.ge.f32.partialorder %v1119, 0.0
    %vm1330 = vcmp.ge.f32.partialorder %v1122, 0.0
    %vm1331 = vcmp.ge.f32.partialorder %v1127, 0.0
    %vm1332 = vcmp.ge.f32.partialorder %v1130, 0.0
    %vm1333 = vcmp.ge.f32.partialorder %v1135, 0.0
    %vm1334 = vcmp.ge.f32.partialorder %v1138, 0.0
    %vm1335 = vcmp.ge.f32.partialorder %v1143, 0.0
    %vm1336 = vcmp.ge.f32.partialorder %v1146, 0.0
    %vm1337 = vcmp.ge.f32.partialorder %v1151, 0.0
    %vm1338 = vcmp.ge.f32.partialorder %v1154, 0.0
    %vm1339 = vcmp.ge.f32.partialorder %v1159, 0.0
    %vm1340 = vcmp.ge.f32.partialorder %v1162, 0.0
    %vm1341 = vcmp.ge.f32.partialorder %v1167, 0.0
    %vm1342 = vcmp.ge.f32.partialorder %v1170, 0.0
    %vm1343 = vcmp.ge.f32.partialorder %v1175, 0.0
    %vm1344 = vcmp.ge.f32.partialorder %v1178, 0.0
    %vm1345 = vcmp.ge.f32.partialorder %v1183, 0.0
    %vm1346 = vcmp.ge.f32.partialorder %v1186, 0.0
    %vm1347 = vcmp.ge.f32.partialorder %v1191, 0.0
    %vm1348 = vcmp.ge.f32.partialorder %v1194, 0.0
    %vm1349 = vcmp.ge.f32.partialorder %v1199, 0.0
    %vm1350 = vcmp.ge.f32.partialorder %v1202, 0.0
    %vm1351 = vcmp.ge.f32.partialorder %v1207, 0.0
    %vm1352 = vcmp.ge.f32.partialorder %v1210, 0.0
    %vm1353 = vcmp.ge.f32.partialorder %v1215, 0.0
    %vm1354 = vcmp.ge.f32.partialorder %v1218, 0.0
    %vm1355 = vcmp.ge.f32.partialorder %v1223, 0.0
    %vm1356 = vcmp.ge.f32.partialorder %v1226, 0.0
    %v1357 = vmul.f32 %v719, 0.01
    %v1358 = vmul.f32 %v722, 0.01
    %v1359 = vmul.f32 %v727, 0.01
    %v1360 = vmul.f32 %v730, 0.01
    %v1361 = vmul.f32 %v735, 0.01
    %v1362 = vmul.f32 %v738, 0.01
    %v1363 = vmul.f32 %v743, 0.01
    %v1364 = vmul.f32 %v746, 0.01
    %v1365 = vmul.f32 %v751, 0.01
    %v1366 = vmul.f32 %v754, 0.01
    %v1367 = vmul.f32 %v759, 0.01
    %v1368 = vmul.f32 %v762, 0.01
    %v1369 = vmul.f32 %v767, 0.01
    %v1370 = vmul.f32 %v770, 0.01
    %v1371 = vmul.f32 %v775, 0.01
    %v1372 = vmul.f32 %v778, 0.01
    %v1373 = vmul.f32 %v783, 0.01
    %v1374 = vmul.f32 %v786, 0.01
    %v1375 = vmul.f32 %v791, 0.01
    %v1376 = vmul.f32 %v794, 0.01
    %v1377 = vmul.f32 %v799, 0.01
    %v1378 = vmul.f32 %v802, 0.01
    %v1379 = vmul.f32 %v807, 0.01
    %v1380 = vmul.f32 %v810, 0.01
    %v1381 = vmul.f32 %v815, 0.01
    %v1382 = vmul.f32 %v818, 0.01
    %v1383 = vmul.f32 %v823, 0.01
    %v1384 = vmul.f32 %v826, 0.01
    %v1385 = vmul.f32 %v831, 0.01
    %v1386 = vmul.f32 %v834, 0.01
    %v1387 = vmul.f32 %v839, 0.01
    %v1388 = vmul.f32 %v842, 0.01
    %v1389 = vmul.f32 %v847, 0.01
    %v1390 = vmul.f32 %v850, 0.01
    %v1391 = vmul.f32 %v855, 0.01
    %v1392 = vmul.f32 %v858, 0.01
    %v1393 = vmul.f32 %v863, 0.01
    %v1394 = vmul.f32 %v866, 0.01
    %v1395 = vmul.f32 %v871, 0.01
    %v1396 = vmul.f32 %v874, 0.01
    %v1397 = vmul.f32 %v879, 0.01
    %v1398 = vmul.f32 %v882, 0.01
    %v1399 = vmul.f32 %v887, 0.01
    %v1400 = vmul.f32 %v890, 0.01
    %v1401 = vmul.f32 %v895, 0.01
    %v1402 = vmul.f32 %v898, 0.01
    %v1403 = vmul.f32 %v903, 0.01
    %v1404 = vmul.f32 %v906, 0.01
    %v1405 = vmul.f32 %v911, 0.01
    %v1406 = vmul.f32 %v914, 0.01
    %v1407 = vmul.f32 %v919, 0.01
    %v1408 = vmul.f32 %v922, 0.01
    %v1409 = vmul.f32 %v927, 0.01
    %v1410 = vmul.f32 %v930, 0.01
    %v1411 = vmul.f32 %v935, 0.01
    %v1412 = vmul.f32 %v938, 0.01
    %v1413 = vmul.f32 %v943, 0.01
    %v1414 = vmul.f32 %v946, 0.01
    %v1415 = vmul.f32 %v951, 0.01
    %v1416 = vmul.f32 %v954, 0.01
    %v1417 = vmul.f32 %v959, 0.01
    %v1418 = vmul.f32 %v962, 0.01
    %v1419 = vmul.f32 %v967, 0.01
    %v1420 = vmul.f32 %v970, 0.01
    %v1421 = vmul.f32 %v975, 0.01
    %v1422 = vmul.f32 %v978, 0.01
    %v1423 = vmul.f32 %v983, 0.01
    %v1424 = vmul.f32 %v986, 0.01
    %v1425 = vmul.f32 %v991, 0.01
    %v1426 = vmul.f32 %v994, 0.01
    %v1427 = vmul.f32 %v999, 0.01
    %v1428 = vmul.f32 %v1002, 0.01
    %v1429 = vmul.f32 %v1007, 0.01
    %v1430 = vmul.f32 %v1010, 0.01
    %v1431 = vmul.f32 %v1015, 0.01
    %v1432 = vmul.f32 %v1018, 0.01
    %v1433 = vmul.f32 %v1023, 0.01
    %v1434 = vmul.f32 %v1026, 0.01
    %v1435 = vmul.f32 %v1031, 0.01
    %v1436 = vmul.f32 %v1034, 0.01
    %v1437 = vmul.f32 %v1039, 0.01
    %v1438 = vmul.f32 %v1042, 0.01
    %v1439 = vmul.f32 %v1047, 0.01
    %v1440 = vmul.f32 %v1050, 0.01
    %v1441 = vmul.f32 %v1055, 0.01
    %v1442 = vmul.f32 %v1058, 0.01
    %v1443 = vmul.f32 %v1063, 0.01
    %v1444 = vmul.f32 %v1066, 0.01
    %v1445 = vmul.f32 %v1071, 0.01
    %v1446 = vmul.f32 %v1074, 0.01
    %v1447 = vmul.f32 %v1079, 0.01
    %v1448 = vmul.f32 %v1082, 0.01
    %v1449 = vmul.f32 %v1087, 0.01
    %v1450 = vmul.f32 %v1090, 0.01
    %v1451 = vmul.f32 %v1095, 0.01
    %v1452 = vmul.f32 %v1098, 0.01
    %v1453 = vmul.f32 %v1103, 0.01
    %v1454 = vmul.f32 %v1106, 0.01
    %v1455 = vmul.f32 %v1111, 0.01
    %v1456 = vmul.f32 %v1114, 0.01
    %v1457 = vmul.f32 %v1119, 0.01
    %v1458 = vmul.f32 %v1122, 0.01
    %v1459 = vmul.f32 %v1127, 0.01
    %v1460 = vmul.f32 %v1130, 0.01
    %v1461 = vmul.f32 %v1135, 0.01
    %v1462 = vmul.f32 %v1138, 0.01
    %v1463 = vmul.f32 %v1143, 0.01
    %v1464 = vmul.f32 %v1146, 0.01
    %v1465 = vmul.f32 %v1151, 0.01
    %v1466 = vmul.f32 %v1154, 0.01
    %v1467 = vmul.f32 %v1159, 0.01
    %v1468 = vmul.f32 %v1162, 0.01
    %v1469 = vmul.f32 %v1167, 0.01
    %v1470 = vmul.f32 %v1170, 0.01
    %v1471 = vmul.f32 %v1175, 0.01
    %v1472 = vmul.f32 %v1178, 0.01
    %v1473 = vmul.f32 %v1183, 0.01
    %v1474 = vmul.f32 %v1186, 0.01
    %v1475 = vmul.f32 %v1191, 0.01
    %v1476 = vmul.f32 %v1194, 0.01
    %v1477 = vmul.f32 %v1199, 0.01
    %v1478 = vmul.f32 %v1202, 0.01
    %v1479 = vmul.f32 %v1207, 0.01
    %v1480 = vmul.f32 %v1210, 0.01
    %v1481 = vmul.f32 %v1215, 0.01
    %v1482 = vmul.f32 %v1218, 0.01
    %v1483 = vmul.f32 %v1223, 0.01
    %v1484 = vmul.f32 %v1226, 0.01
    %v1485 = vsel %vm1229, %v719, %v1357
    %v1486 = vsel %vm1230, %v722, %v1358
    %v1487 = vsel %vm1231, %v727, %v1359
    %v1488 = vsel %vm1232, %v730, %v1360
    %v1489 = vsel %vm1233, %v735, %v1361
    %v1490 = vsel %vm1234, %v738, %v1362
    %v1491 = vsel %vm1235, %v743, %v1363
    %v1492 = vsel %vm1236, %v746, %v1364
    %v1493 = vsel %vm1237, %v751, %v1365
    %v1494 = vsel %vm1238, %v754, %v1366
    %v1495 = vsel %vm1239, %v759, %v1367
    %v1496 = vsel %vm1240, %v762, %v1368
    %v1497 = vsel %vm1241, %v767, %v1369
    %v1498 = vsel %vm1242, %v770, %v1370
    %v1499 = vsel %vm1243, %v775, %v1371
    %v1500 = vsel %vm1244, %v778, %v1372
    %v1501 = vsel %vm1245, %v783, %v1373
    %v1502 = vsel %vm1246, %v786, %v1374
    %v1503 = vsel %vm1247, %v791, %v1375
    %v1504 = vsel %vm1248, %v794, %v1376
    %v1505 = vsel %vm1249, %v799, %v1377
    %v1506 = vsel %vm1250, %v802, %v1378
    %v1507 = vsel %vm1251, %v807, %v1379
    %v1508 = vsel %vm1252, %v810, %v1380
    %v1509 = vsel %vm1253, %v815, %v1381
    %v1510 = vsel %vm1254, %v818, %v1382
    %v1511 = vsel %vm1255, %v823, %v1383
    %v1512 = vsel %vm1256, %v826, %v1384
    %v1513 = vsel %vm1257, %v831, %v1385
    %v1514 = vsel %vm1258, %v834, %v1386
    %v1515 = vsel %vm1259, %v839, %v1387
    %v1516 = vsel %vm1260, %v842, %v1388
    %v1517 = vsel %vm1261, %v847, %v1389
    %v1518 = vsel %vm1262, %v850, %v1390
    %v1519 = vsel %vm1263, %v855, %v1391
    %v1520 = vsel %vm1264, %v858, %v1392
    %v1521 = vsel %vm1265, %v863, %v1393
    %v1522 = vsel %vm1266, %v866, %v1394
    %v1523 = vsel %vm1267, %v871, %v1395
    %v1524 = vsel %vm1268, %v874, %v1396
    %v1525 = vsel %vm1269, %v879, %v1397
    %v1526 = vsel %vm1270, %v882, %v1398
    %v1527 = vsel %vm1271, %v887, %v1399
    %v1528 = vsel %vm1272, %v890, %v1400
    %v1529 = vsel %vm1273, %v895, %v1401
    %v1530 = vsel %vm1274, %v898, %v1402
    %v1531 = vsel %vm1275, %v903, %v1403
    %v1532 = vsel %vm1276, %v906, %v1404
    %v1533 = vsel %vm1277, %v911, %v1405
    %v1534 = vsel %vm1278, %v914, %v1406
    %v1535 = vsel %vm1279, %v919, %v1407
    %v1536 = vsel %vm1280, %v922, %v1408
    %v1537 = vsel %vm1281, %v927, %v1409
    %v1538 = vsel %vm1282, %v930, %v1410
    %v1539 = vsel %vm1283, %v935, %v1411
    %v1540 = vsel %vm1284, %v938, %v1412
    %v1541 = vsel %vm1285, %v943, %v1413
    %v1542 = vsel %vm1286, %v946, %v1414
    %v1543 = vsel %vm1287, %v951, %v1415
    %v1544 = vsel %vm1288, %v954, %v1416
    %v1545 = vsel %vm1289, %v959, %v1417
    %v1546 = vsel %vm1290, %v962, %v1418
    %v1547 = vsel %vm1291, %v967, %v1419
    %v1548 = vsel %vm1292, %v970, %v1420
    %v1549 = vsel %vm1293, %v975, %v1421
    %v1550 = vsel %vm1294, %v978, %v1422
    %v1551 = vsel %vm1295, %v983, %v1423
    %v1552 = vsel %vm1296, %v986, %v1424
    %v1553 = vsel %vm1297, %v991, %v1425
    %v1554 = vsel %vm1298, %v994, %v1426
    %v1555 = vsel %vm1299, %v999, %v1427
    %v1556 = vsel %vm1300, %v1002, %v1428
    %v1557 = vsel %vm1301, %v1007, %v1429
    %v1558 = vsel %vm1302, %v1010, %v1430
    %v1559 = vsel %vm1303, %v1015, %v1431
    %v1560 = vsel %vm1304, %v1018, %v1432
    %v1561 = vsel %vm1305, %v1023, %v1433
    %v1562 = vsel %vm1306, %v1026, %v1434
    %v1563 = vsel %vm1307, %v1031, %v1435
    %v1564 = vsel %vm1308, %v1034, %v1436
    %v1565 = vsel %vm1309, %v1039, %v1437
    %v1566 = vsel %vm1310, %v1042, %v1438
    %v1567 = vsel %vm1311, %v1047, %v1439
    %v1568 = vsel %vm1312, %v1050, %v1440
    %v1569 = vsel %vm1313, %v1055, %v1441
    %v1570 = vsel %vm1314, %v1058, %v1442
    %v1571 = vsel %vm1315, %v1063, %v1443
    %v1572 = vsel %vm1316, %v1066, %v1444
    %v1573 = vsel %vm1317, %v1071, %v1445
    %v1574 = vsel %vm1318, %v1074, %v1446
    %v1575 = vsel %vm1319, %v1079, %v1447
    %v1576 = vsel %vm1320, %v1082, %v1448
    %v1577 = vsel %vm1321, %v1087, %v1449
    %v1578 = vsel %vm1322, %v1090, %v1450
    %v1579 = vsel %vm1323, %v1095, %v1451
    %v1580 = vsel %vm1324, %v1098, %v1452
    %v1581 = vsel %vm1325, %v1103, %v1453
    %v1582 = vsel %vm1326, %v1106, %v1454
    %v1583 = vsel %vm1327, %v1111, %v1455
    %v1584 = vsel %vm1328, %v1114, %v1456
    %v1585 = vsel %vm1329, %v1119, %v1457
    %v1586 = vsel %vm1330, %v1122, %v1458
    %v1587 = vsel %vm1331, %v1127, %v1459
    %v1588 = vsel %vm1332, %v1130, %v1460
    %v1589 = vsel %vm1333, %v1135, %v1461
    %v1590 = vsel %vm1334, %v1138, %v1462
    %v1591 = vsel %vm1335, %v1143, %v1463
    %v1592 = vsel %vm1336, %v1146, %v1464
    %v1593 = vsel %vm1337, %v1151, %v1465
    %v1594 = vsel %vm1338, %v1154, %v1466
    %v1595 = vsel %vm1339, %v1159, %v1467
    %v1596 = vsel %vm1340, %v1162, %v1468
    %v1597 = vsel %vm1341, %v1167, %v1469
    %v1598 = vsel %vm1342, %v1170, %v1470
    %v1599 = vsel %vm1343, %v1175, %v1471
    %v1600 = vsel %vm1344, %v1178, %v1472
    %v1601 = vsel %vm1345, %v1183, %v1473
    %v1602 = vsel %vm1346, %v1186, %v1474
    %v1603 = vsel %vm1347, %v1191, %v1475
    %v1604 = vsel %vm1348, %v1194, %v1476
    %v1605 = vsel %vm1349, %v1199, %v1477
    %v1606 = vsel %vm1350, %v1202, %v1478
    %v1607 = vsel %vm1351, %v1207, %v1479
    %v1608 = vsel %vm1352, %v1210, %v1480
    %v1609 = vsel %vm1353, %v1215, %v1481
    %v1610 = vsel %vm1354, %v1218, %v1482
    %v1611 = vsel %vm1355, %v1223, %v1483
    %v1612 = vsel %vm1356, %v1226, %v1484
    %v1613 = vpack.c.bf16 %v1486, %v1485
    %v1614 = vpack.c.bf16 %v1488, %v1487
    %v1615 = vpack.c.bf16 %v1490, %v1489
    %v1616 = vpack.c.bf16 %v1492, %v1491
    %v1617 = vpack.c.bf16 %v1494, %v1493
    %v1618 = vpack.c.bf16 %v1496, %v1495
    %v1619 = vpack.c.bf16 %v1498, %v1497
    %v1620 = vpack.c.bf16 %v1500, %v1499
    %v1621 = vpack.c.bf16 %v1502, %v1501
    %v1622 = vpack.c.bf16 %v1504, %v1503
    %v1623 = vpack.c.bf16 %v1506, %v1505
    %v1624 = vpack.c.bf16 %v1508, %v1507
    %v1625 = vpack.c.bf16 %v1510, %v1509
    %v1626 = vpack.c.bf16 %v1512, %v1511
    %v1627 = vpack.c.bf16 %v1514, %v1513
    %v1628 = vpack.c.bf16 %v1516, %v1515
    %v1629 = vpack.c.bf16 %v1518, %v1517
    %v1630 = vpack.c.bf16 %v1520, %v1519
    %v1631 = vpack.c.bf16 %v1522, %v1521
    %v1632 = vpack.c.bf16 %v1524, %v1523
    %v1633 = vpack.c.bf16 %v1526, %v1525
    %v1634 = vpack.c.bf16 %v1528, %v1527
    %v1635 = vpack.c.bf16 %v1530, %v1529
    %v1636 = vpack.c.bf16 %v1532, %v1531
    %v1637 = vpack.c.bf16 %v1534, %v1533
    %v1638 = vpack.c.bf16 %v1536, %v1535
    %v1639 = vpack.c.bf16 %v1538, %v1537
    %v1640 = vpack.c.bf16 %v1540, %v1539
    %v1641 = vpack.c.bf16 %v1542, %v1541
    %v1642 = vpack.c.bf16 %v1544, %v1543
    %v1643 = vpack.c.bf16 %v1546, %v1545
    %v1644 = vpack.c.bf16 %v1548, %v1547
    %v1645 = vpack.c.bf16 %v1550, %v1549
    %v1646 = vpack.c.bf16 %v1552, %v1551
    %v1647 = vpack.c.bf16 %v1554, %v1553
    %v1648 = vpack.c.bf16 %v1556, %v1555
    %v1649 = vpack.c.bf16 %v1558, %v1557
    %v1650 = vpack.c.bf16 %v1560, %v1559
    %v1651 = vpack.c.bf16 %v1562, %v1561
    %v1652 = vpack.c.bf16 %v1564, %v1563
    %v1653 = vpack.c.bf16 %v1566, %v1565
    %v1654 = vpack.c.bf16 %v1568, %v1567
    %v1655 = vpack.c.bf16 %v1570, %v1569
    %v1656 = vpack.c.bf16 %v1572, %v1571
    %v1657 = vpack.c.bf16 %v1574, %v1573
    %v1658 = vpack.c.bf16 %v1576, %v1575
    %v1659 = vpack.c.bf16 %v1578, %v1577
    %v1660 = vpack.c.bf16 %v1580, %v1579
    %v1661 = vpack.c.bf16 %v1582, %v1581
    %v1662 = vpack.c.bf16 %v1584, %v1583
    %v1663 = vpack.c.bf16 %v1586, %v1585
    %v1664 = vpack.c.bf16 %v1588, %v1587
    %v1665 = vpack.c.bf16 %v1590, %v1589
    %v1666 = vpack.c.bf16 %v1592, %v1591
    %v1667 = vpack.c.bf16 %v1594, %v1593
    %v1668 = vpack.c.bf16 %v1596, %v1595
    %v1669 = vpack.c.bf16 %v1598, %v1597
    %v1670 = vpack.c.bf16 %v1600, %v1599
    %v1671 = vpack.c.bf16 %v1602, %v1601
    %v1672 = vpack.c.bf16 %v1604, %v1603
    %v1673 = vpack.c.bf16 %v1606, %v1605
    %v1674 = vpack.c.bf16 %v1608, %v1607
    %v1675 = vpack.c.bf16 %v1610, %v1609
    %v1676 = vpack.c.bf16 %v1612, %v1611
    %v1677 = vld [vmem:[%s3] sm:$0xf]
    %v1678 = vld [vmem:[%s3 + $0x4] sm:$0xf]
    %v1679 = vld [vmem:[%s3 + $0x8] sm:$0xf]
    %v1680 = vld [vmem:[%s3 + $0xc] sm:$0xf]
    %v1681 = vld [vmem:[%s3 + $0x10] sm:$0xf]
    %v1682 = vld [vmem:[%s3 + $0x14] sm:$0xf]
    %v1683 = vld [vmem:[%s3 + $0x18] sm:$0xf]
    %v1684 = vld [vmem:[%s3 + $0x1c] sm:$0xf]
    %v1685 = vld [vmem:[%s4] sm:$0x1]
    %v1687 = vlaneseq
    %v1688 = vshrl.u32 %v1687, 7
    %v1689 = vsub.s32 0, %v1688
    %v1690 = vrot.slane %v1685, %v1689
    %v1700 = vunpack.c.l.b16 %v1677
    %v1701 = vunpack.c.l.b16 %v1678
    %v1702 = vunpack.c.l.b16 %v1679
    %v1703 = vunpack.c.l.b16 %v1680
    %v1704 = vunpack.c.l.b16 %v1681
    %v1705 = vunpack.c.l.b16 %v1682
    %v1706 = vunpack.c.l.b16 %v1683
    %v1707 = vunpack.c.l.b16 %v1684
    %v1708 = vpack.c.b16 %v1701, %v1700
    %v1709 = vpack.c.b16 %v1703, %v1702
    %v1710 = vpack.c.b16 %v1705, %v1704
    %v1711 = vpack.c.b16 %v1707, %v1706
    %vm1716 = vcmask 523264
    %v1718 = vsel %vm1716, %v1613, 0
    %v1721 = vsel %vm1716, %v1614, 0
    %v1724 = vsel %vm1716, %v1615, 0
    %v1727 = vsel %vm1716, %v1616, 0
    %v1730 = vsel %vm1716, %v1617, 0
    %v1733 = vsel %vm1716, %v1618, 0
    %v1736 = vsel %vm1716, %v1619, 0
    %v1739 = vsel %vm1716, %v1620, 0
    %v1742 = vsel %vm1716, %v1621, 0
    %v1745 = vsel %vm1716, %v1622, 0
    %v1748 = vsel %vm1716, %v1623, 0
    %v1751 = vsel %vm1716, %v1624, 0
    %v1754 = vsel %vm1716, %v1625, 0
    %v1757 = vsel %vm1716, %v1626, 0
    %v1760 = vsel %vm1716, %v1627, 0
    %v1763 = vsel %vm1716, %v1628, 0
    %v1766 = vsel %vm1716, %v1629, 0
    %v1769 = vsel %vm1716, %v1630, 0
    %v1772 = vsel %vm1716, %v1631, 0
    %v1775 = vsel %vm1716, %v1632, 0
    %v1778 = vsel %vm1716, %v1633, 0
    %v1781 = vsel %vm1716, %v1634, 0
    %v1784 = vsel %vm1716, %v1635, 0
    %v1787 = vsel %vm1716, %v1636, 0
    %v1790 = vsel %vm1716, %v1637, 0
    %v1793 = vsel %vm1716, %v1638, 0
    %v1796 = vsel %vm1716, %v1639, 0
    %v1799 = vsel %vm1716, %v1640, 0
    %v1802 = vsel %vm1716, %v1641, 0
    %v1805 = vsel %vm1716, %v1642, 0
    %v1808 = vsel %vm1716, %v1643, 0
    %v1811 = vsel %vm1716, %v1644, 0
    %v1814 = vsel %vm1716, %v1645, 0
    %v1817 = vsel %vm1716, %v1646, 0
    %v1820 = vsel %vm1716, %v1647, 0
    %v1823 = vsel %vm1716, %v1648, 0
    %v1826 = vsel %vm1716, %v1649, 0
    %v1829 = vsel %vm1716, %v1650, 0
    %v1832 = vsel %vm1716, %v1651, 0
    %v1835 = vsel %vm1716, %v1652, 0
    %v1838 = vsel %vm1716, %v1653, 0
    %v1841 = vsel %vm1716, %v1654, 0
    %v1844 = vsel %vm1716, %v1655, 0
    %v1847 = vsel %vm1716, %v1656, 0
    %v1850 = vsel %vm1716, %v1657, 0
    %v1853 = vsel %vm1716, %v1658, 0
    %v1856 = vsel %vm1716, %v1659, 0
    %v1859 = vsel %vm1716, %v1660, 0
    %v1862 = vsel %vm1716, %v1661, 0
    %v1865 = vsel %vm1716, %v1662, 0
    %v1868 = vsel %vm1716, %v1663, 0
    %v1871 = vsel %vm1716, %v1664, 0
    %v1874 = vsel %vm1716, %v1665, 0
    %v1877 = vsel %vm1716, %v1666, 0
    %v1880 = vsel %vm1716, %v1667, 0
    %v1883 = vsel %vm1716, %v1668, 0
    %v1886 = vsel %vm1716, %v1669, 0
    %v1889 = vsel %vm1716, %v1670, 0
    %v1892 = vsel %vm1716, %v1671, 0
    %v1895 = vsel %vm1716, %v1672, 0
    %v1898 = vsel %vm1716, %v1673, 0
    %v1901 = vsel %vm1716, %v1674, 0
    %v1904 = vsel %vm1716, %v1675, 0
    %v1907 = vsel %vm1716, %v1676, 0
    %1909 = vmatprep.subr.bf16.mxu0 0
    %1910 = vmatpush1.bf16.msra.mxu0 0
    %1911 = vmatprep.subr.bf16.mxu0 0
    %1912 = vmatpush1.bf16.msra.mxu0 0
    %1913 = vmatprep.subr.bf16.mxu0 0
    %1914 = vmatpush1.bf16.msra.mxu0 0
    %1915 = vmatprep.subr.bf16.mxu0 0
    %1916 = vmatpush1.bf16.msra.mxu0 0
    %1917 = vmatprep.subr.bf16.mxu0 0
    %1918 = vmatpush1.bf16.msra.mxu0 %v1711
    %1919 = vmatprep.subr.bf16.mxu0 0
    %1920 = vmatpush1.bf16.msra.mxu0 %v1710
    %1921 = vmatprep.subr.bf16.mxu0 0
    %1922 = vmatpush1.bf16.msra.mxu0 %v1709
    %1923 = vmatprep.subr.bf16.mxu0 0
    %1924 = vmatpush1.bf16.msra.mxu0 %v1708
    %1925 = vmatprep.subr.bf16.mxu0 0
    %1926 = vmatpush2.bf16.msra.mxu0 0
    %1927 = vmatprep.subr.bf16.mxu0 0
    %1928 = vmatpush2.bf16.msra.mxu0 0
    %1929 = vmatprep.subr.bf16.mxu0 0
    %1930 = vmatpush2.bf16.msra.mxu0 0
    %1931 = vmatprep.subr.bf16.mxu0 0
    %1932 = vmatpush2.bf16.msra.mxu0 0
    %1933 = vmatprep.subr.bf16.mxu0 0
    %1934 = vmatpush2.bf16.msra.mxu0 0
    %1935 = vmatprep.subr.bf16.mxu0 0
    %1936 = vmatpush2.bf16.msra.mxu0 0
    %1937 = vmatprep.subr.bf16.mxu0 0
    %1938 = vmatpush2.bf16.msra.mxu0 0
    %1939 = vmatprep.subr.bf16.mxu0 0
    %1940 = vmatpush2.bf16.msra.mxu0 0
    %1941 = vmatprep.mubr.bf16.mxu0 0
    %1942 = vmatmul.mubr.bf16.gmra.mxu0 %v1718
    %v1943 = vpop.f32.mrf.mxu0
    %v1944 = vadd.f32 %v1690, %v1943
    %v1945 = vpop.f32.mrf.mxu0
    %v1946 = vpop.f32.mrf.mxu0
    %v1947 = vadd.f32 %v1690, %v1946
    %v1948 = vpop.f32.mrf.mxu0
    %1949 = vmatprep.mubr.bf16.mxu0 0
    %1950 = vmatmul.mubr.bf16.gmra.mxu0 %v1721
    %v1951 = vpop.f32.mrf.mxu0
    %v1952 = vadd.f32 %v1690, %v1951
    %v1953 = vpop.f32.mrf.mxu0
    %v1954 = vpop.f32.mrf.mxu0
    %v1955 = vadd.f32 %v1690, %v1954
    %v1956 = vpop.f32.mrf.mxu0
    %1957 = vmatprep.mubr.bf16.mxu0 0
    %1958 = vmatmul.mubr.bf16.gmra.mxu0 %v1724
    %v1959 = vpop.f32.mrf.mxu0
    %v1960 = vadd.f32 %v1690, %v1959
    %v1961 = vpop.f32.mrf.mxu0
    %v1962 = vpop.f32.mrf.mxu0
    %v1963 = vadd.f32 %v1690, %v1962
    %v1964 = vpop.f32.mrf.mxu0
    %1965 = vmatprep.mubr.bf16.mxu0 0
    %1966 = vmatmul.mubr.bf16.gmra.mxu0 %v1727
    %v1967 = vpop.f32.mrf.mxu0
    %v1968 = vadd.f32 %v1690, %v1967
    %v1969 = vpop.f32.mrf.mxu0
    %v1970 = vpop.f32.mrf.mxu0
    %v1971 = vadd.f32 %v1690, %v1970
    %v1972 = vpop.f32.mrf.mxu0
    %1973 = vmatprep.mubr.bf16.mxu0 0
    %1974 = vmatmul.mubr.bf16.gmra.mxu0 %v1730
    %v1975 = vpop.f32.mrf.mxu0
    %v1976 = vadd.f32 %v1690, %v1975
    %v1977 = vpop.f32.mrf.mxu0
    %v1978 = vpop.f32.mrf.mxu0
    %v1979 = vadd.f32 %v1690, %v1978
    %v1980 = vpop.f32.mrf.mxu0
    %1981 = vmatprep.mubr.bf16.mxu0 0
    %1982 = vmatmul.mubr.bf16.gmra.mxu0 %v1733
    %v1983 = vpop.f32.mrf.mxu0
    %v1984 = vadd.f32 %v1690, %v1983
    %v1985 = vpop.f32.mrf.mxu0
    %v1986 = vpop.f32.mrf.mxu0
    %v1987 = vadd.f32 %v1690, %v1986
    %v1988 = vpop.f32.mrf.mxu0
    %1989 = vmatprep.mubr.bf16.mxu0 0
    %1990 = vmatmul.mubr.bf16.gmra.mxu0 %v1736
    %v1991 = vpop.f32.mrf.mxu0
    %v1992 = vadd.f32 %v1690, %v1991
    %v1993 = vpop.f32.mrf.mxu0
    %v1994 = vpop.f32.mrf.mxu0
    %v1995 = vadd.f32 %v1690, %v1994
    %v1996 = vpop.f32.mrf.mxu0
    %1997 = vmatprep.mubr.bf16.mxu0 0
    %1998 = vmatmul.mubr.bf16.gmra.mxu0 %v1739
    %v1999 = vpop.f32.mrf.mxu0
    %v2000 = vadd.f32 %v1690, %v1999
    %v2001 = vpop.f32.mrf.mxu0
    %v2002 = vpop.f32.mrf.mxu0
    %v2003 = vadd.f32 %v1690, %v2002
    %v2004 = vpop.f32.mrf.mxu0
    %2005 = vmatprep.mubr.bf16.mxu0 0
    %2006 = vmatmul.mubr.bf16.gmra.mxu0 %v1742
    %v2007 = vpop.f32.mrf.mxu0
    %v2008 = vadd.f32 %v1690, %v2007
    %v2009 = vpop.f32.mrf.mxu0
    %v2010 = vpop.f32.mrf.mxu0
    %v2011 = vadd.f32 %v1690, %v2010
    %v2012 = vpop.f32.mrf.mxu0
    %2013 = vmatprep.mubr.bf16.mxu0 0
    %2014 = vmatmul.mubr.bf16.gmra.mxu0 %v1745
    %v2015 = vpop.f32.mrf.mxu0
    %v2016 = vadd.f32 %v1690, %v2015
    %v2017 = vpop.f32.mrf.mxu0
    %v2018 = vpop.f32.mrf.mxu0
    %v2019 = vadd.f32 %v1690, %v2018
    %v2020 = vpop.f32.mrf.mxu0
    %2021 = vmatprep.mubr.bf16.mxu0 0
    %2022 = vmatmul.mubr.bf16.gmra.mxu0 %v1748
    %v2023 = vpop.f32.mrf.mxu0
    %v2024 = vadd.f32 %v1690, %v2023
    %v2025 = vpop.f32.mrf.mxu0
    %v2026 = vpop.f32.mrf.mxu0
    %v2027 = vadd.f32 %v1690, %v2026
    %v2028 = vpop.f32.mrf.mxu0
    %2029 = vmatprep.mubr.bf16.mxu0 0
    %2030 = vmatmul.mubr.bf16.gmra.mxu0 %v1751
    %v2031 = vpop.f32.mrf.mxu0
    %v2032 = vadd.f32 %v1690, %v2031
    %v2033 = vpop.f32.mrf.mxu0
    %v2034 = vpop.f32.mrf.mxu0
    %v2035 = vadd.f32 %v1690, %v2034
    %v2036 = vpop.f32.mrf.mxu0
    %2037 = vmatprep.mubr.bf16.mxu0 0
    %2038 = vmatmul.mubr.bf16.gmra.mxu0 %v1754
    %v2039 = vpop.f32.mrf.mxu0
    %v2040 = vadd.f32 %v1690, %v2039
    %v2041 = vpop.f32.mrf.mxu0
    %v2042 = vpop.f32.mrf.mxu0
    %v2043 = vadd.f32 %v1690, %v2042
    %v2044 = vpop.f32.mrf.mxu0
    %2045 = vmatprep.mubr.bf16.mxu0 0
    %2046 = vmatmul.mubr.bf16.gmra.mxu0 %v1757
    %v2047 = vpop.f32.mrf.mxu0
    %v2048 = vadd.f32 %v1690, %v2047
    %v2049 = vpop.f32.mrf.mxu0
    %v2050 = vpop.f32.mrf.mxu0
    %v2051 = vadd.f32 %v1690, %v2050
    %v2052 = vpop.f32.mrf.mxu0
    %2053 = vmatprep.mubr.bf16.mxu0 0
    %2054 = vmatmul.mubr.bf16.gmra.mxu0 %v1760
    %v2055 = vpop.f32.mrf.mxu0
    %v2056 = vadd.f32 %v1690, %v2055
    %v2057 = vpop.f32.mrf.mxu0
    %v2058 = vpop.f32.mrf.mxu0
    %v2059 = vadd.f32 %v1690, %v2058
    %v2060 = vpop.f32.mrf.mxu0
    %2061 = vmatprep.mubr.bf16.mxu0 0
    %2062 = vmatmul.mubr.bf16.gmra.mxu0 %v1763
    %v2063 = vpop.f32.mrf.mxu0
    %v2064 = vadd.f32 %v1690, %v2063
    %v2065 = vpop.f32.mrf.mxu0
    %v2066 = vpop.f32.mrf.mxu0
    %v2067 = vadd.f32 %v1690, %v2066
    %v2068 = vpop.f32.mrf.mxu0
    %2069 = vmatprep.mubr.bf16.mxu0 0
    %2070 = vmatmul.mubr.bf16.gmra.mxu0 %v1766
    %v2071 = vpop.f32.mrf.mxu0
    %v2072 = vadd.f32 %v1690, %v2071
    %v2073 = vpop.f32.mrf.mxu0
    %v2074 = vpop.f32.mrf.mxu0
    %v2075 = vadd.f32 %v1690, %v2074
    %v2076 = vpop.f32.mrf.mxu0
    %2077 = vmatprep.mubr.bf16.mxu0 0
    %2078 = vmatmul.mubr.bf16.gmra.mxu0 %v1769
    %v2079 = vpop.f32.mrf.mxu0
    %v2080 = vadd.f32 %v1690, %v2079
    %v2081 = vpop.f32.mrf.mxu0
    %v2082 = vpop.f32.mrf.mxu0
    %v2083 = vadd.f32 %v1690, %v2082
    %v2084 = vpop.f32.mrf.mxu0
    %2085 = vmatprep.mubr.bf16.mxu0 0
    %2086 = vmatmul.mubr.bf16.gmra.mxu0 %v1772
    %v2087 = vpop.f32.mrf.mxu0
    %v2088 = vadd.f32 %v1690, %v2087
    %v2089 = vpop.f32.mrf.mxu0
    %v2090 = vpop.f32.mrf.mxu0
    %v2091 = vadd.f32 %v1690, %v2090
    %v2092 = vpop.f32.mrf.mxu0
    %2093 = vmatprep.mubr.bf16.mxu0 0
    %2094 = vmatmul.mubr.bf16.gmra.mxu0 %v1775
    %v2095 = vpop.f32.mrf.mxu0
    %v2096 = vadd.f32 %v1690, %v2095
    %v2097 = vpop.f32.mrf.mxu0
    %v2098 = vpop.f32.mrf.mxu0
    %v2099 = vadd.f32 %v1690, %v2098
    %v2100 = vpop.f32.mrf.mxu0
    %2101 = vmatprep.mubr.bf16.mxu0 0
    %2102 = vmatmul.mubr.bf16.gmra.mxu0 %v1778
    %v2103 = vpop.f32.mrf.mxu0
    %v2104 = vadd.f32 %v1690, %v2103
    %v2105 = vpop.f32.mrf.mxu0
    %v2106 = vpop.f32.mrf.mxu0
    %v2107 = vadd.f32 %v1690, %v2106
    %v2108 = vpop.f32.mrf.mxu0
    %2109 = vmatprep.mubr.bf16.mxu0 0
    %2110 = vmatmul.mubr.bf16.gmra.mxu0 %v1781
    %v2111 = vpop.f32.mrf.mxu0
    %v2112 = vadd.f32 %v1690, %v2111
    %v2113 = vpop.f32.mrf.mxu0
    %v2114 = vpop.f32.mrf.mxu0
    %v2115 = vadd.f32 %v1690, %v2114
    %v2116 = vpop.f32.mrf.mxu0
    %2117 = vmatprep.mubr.bf16.mxu0 0
    %2118 = vmatmul.mubr.bf16.gmra.mxu0 %v1784
    %v2119 = vpop.f32.mrf.mxu0
    %v2120 = vadd.f32 %v1690, %v2119
    %v2121 = vpop.f32.mrf.mxu0
    %v2122 = vpop.f32.mrf.mxu0
    %v2123 = vadd.f32 %v1690, %v2122
    %v2124 = vpop.f32.mrf.mxu0
    %2125 = vmatprep.mubr.bf16.mxu0 0
    %2126 = vmatmul.mubr.bf16.gmra.mxu0 %v1787
    %v2127 = vpop.f32.mrf.mxu0
    %v2128 = vadd.f32 %v1690, %v2127
    %v2129 = vpop.f32.mrf.mxu0
    %v2130 = vpop.f32.mrf.mxu0
    %v2131 = vadd.f32 %v1690, %v2130
    %v2132 = vpop.f32.mrf.mxu0
    %2133 = vmatprep.mubr.bf16.mxu0 0
    %2134 = vmatmul.mubr.bf16.gmra.mxu0 %v1790
    %v2135 = vpop.f32.mrf.mxu0
    %v2136 = vadd.f32 %v1690, %v2135
    %v2137 = vpop.f32.mrf.mxu0
    %v2138 = vpop.f32.mrf.mxu0
    %v2139 = vadd.f32 %v1690, %v2138
    %v2140 = vpop.f32.mrf.mxu0
    %2141 = vmatprep.mubr.bf16.mxu0 0
    %2142 = vmatmul.mubr.bf16.gmra.mxu0 %v1793
    %v2143 = vpop.f32.mrf.mxu0
    %v2144 = vadd.f32 %v1690, %v2143
    %v2145 = vpop.f32.mrf.mxu0
    %v2146 = vpop.f32.mrf.mxu0
    %v2147 = vadd.f32 %v1690, %v2146
    %v2148 = vpop.f32.mrf.mxu0
    %2149 = vmatprep.mubr.bf16.mxu0 0
    %2150 = vmatmul.mubr.bf16.gmra.mxu0 %v1796
    %v2151 = vpop.f32.mrf.mxu0
    %v2152 = vadd.f32 %v1690, %v2151
    %v2153 = vpop.f32.mrf.mxu0
    %v2154 = vpop.f32.mrf.mxu0
    %v2155 = vadd.f32 %v1690, %v2154
    %v2156 = vpop.f32.mrf.mxu0
    %2157 = vmatprep.mubr.bf16.mxu0 0
    %2158 = vmatmul.mubr.bf16.gmra.mxu0 %v1799
    %v2159 = vpop.f32.mrf.mxu0
    %v2160 = vadd.f32 %v1690, %v2159
    %v2161 = vpop.f32.mrf.mxu0
    %v2162 = vpop.f32.mrf.mxu0
    %v2163 = vadd.f32 %v1690, %v2162
    %v2164 = vpop.f32.mrf.mxu0
    %2165 = vmatprep.mubr.bf16.mxu0 0
    %2166 = vmatmul.mubr.bf16.gmra.mxu0 %v1802
    %v2167 = vpop.f32.mrf.mxu0
    %v2168 = vadd.f32 %v1690, %v2167
    %v2169 = vpop.f32.mrf.mxu0
    %v2170 = vpop.f32.mrf.mxu0
    %v2171 = vadd.f32 %v1690, %v2170
    %v2172 = vpop.f32.mrf.mxu0
    %2173 = vmatprep.mubr.bf16.mxu0 0
    %2174 = vmatmul.mubr.bf16.gmra.mxu0 %v1805
    %v2175 = vpop.f32.mrf.mxu0
    %v2176 = vadd.f32 %v1690, %v2175
    %v2177 = vpop.f32.mrf.mxu0
    %v2178 = vpop.f32.mrf.mxu0
    %v2179 = vadd.f32 %v1690, %v2178
    %v2180 = vpop.f32.mrf.mxu0
    %2181 = vmatprep.mubr.bf16.mxu0 0
    %2182 = vmatmul.mubr.bf16.gmra.mxu0 %v1808
    %v2183 = vpop.f32.mrf.mxu0
    %v2184 = vadd.f32 %v1690, %v2183
    %v2185 = vpop.f32.mrf.mxu0
    %v2186 = vpop.f32.mrf.mxu0
    %v2187 = vadd.f32 %v1690, %v2186
    %v2188 = vpop.f32.mrf.mxu0
    %2189 = vmatprep.mubr.bf16.mxu0 0
    %2190 = vmatmul.mubr.bf16.gmra.mxu0 %v1811
    %v2191 = vpop.f32.mrf.mxu0
    %v2192 = vadd.f32 %v1690, %v2191
    %v2193 = vpop.f32.mrf.mxu0
    %v2194 = vpop.f32.mrf.mxu0
    %v2195 = vadd.f32 %v1690, %v2194
    %v2196 = vpop.f32.mrf.mxu0
    %2197 = vmatprep.mubr.bf16.mxu0 0
    %2198 = vmatmul.mubr.bf16.gmra.mxu0 %v1814
    %v2199 = vpop.f32.mrf.mxu0
    %v2200 = vadd.f32 %v1690, %v2199
    %v2201 = vpop.f32.mrf.mxu0
    %v2202 = vpop.f32.mrf.mxu0
    %v2203 = vadd.f32 %v1690, %v2202
    %v2204 = vpop.f32.mrf.mxu0
    %2205 = vmatprep.mubr.bf16.mxu0 0
    %2206 = vmatmul.mubr.bf16.gmra.mxu0 %v1817
    %v2207 = vpop.f32.mrf.mxu0
    %v2208 = vadd.f32 %v1690, %v2207
    %v2209 = vpop.f32.mrf.mxu0
    %v2210 = vpop.f32.mrf.mxu0
    %v2211 = vadd.f32 %v1690, %v2210
    %v2212 = vpop.f32.mrf.mxu0
    %2213 = vmatprep.mubr.bf16.mxu0 0
    %2214 = vmatmul.mubr.bf16.gmra.mxu0 %v1820
    %v2215 = vpop.f32.mrf.mxu0
    %v2216 = vadd.f32 %v1690, %v2215
    %v2217 = vpop.f32.mrf.mxu0
    %v2218 = vpop.f32.mrf.mxu0
    %v2219 = vadd.f32 %v1690, %v2218
    %v2220 = vpop.f32.mrf.mxu0
    %2221 = vmatprep.mubr.bf16.mxu0 0
    %2222 = vmatmul.mubr.bf16.gmra.mxu0 %v1823
    %v2223 = vpop.f32.mrf.mxu0
    %v2224 = vadd.f32 %v1690, %v2223
    %v2225 = vpop.f32.mrf.mxu0
    %v2226 = vpop.f32.mrf.mxu0
    %v2227 = vadd.f32 %v1690, %v2226
    %v2228 = vpop.f32.mrf.mxu0
    %2229 = vmatprep.mubr.bf16.mxu0 0
    %2230 = vmatmul.mubr.bf16.gmra.mxu0 %v1826
    %v2231 = vpop.f32.mrf.mxu0
    %v2232 = vadd.f32 %v1690, %v2231
    %v2233 = vpop.f32.mrf.mxu0
    %v2234 = vpop.f32.mrf.mxu0
    %v2235 = vadd.f32 %v1690, %v2234
    %v2236 = vpop.f32.mrf.mxu0
    %2237 = vmatprep.mubr.bf16.mxu0 0
    %2238 = vmatmul.mubr.bf16.gmra.mxu0 %v1829
    %v2239 = vpop.f32.mrf.mxu0
    %v2240 = vadd.f32 %v1690, %v2239
    %v2241 = vpop.f32.mrf.mxu0
    %v2242 = vpop.f32.mrf.mxu0
    %v2243 = vadd.f32 %v1690, %v2242
    %v2244 = vpop.f32.mrf.mxu0
    %2245 = vmatprep.mubr.bf16.mxu0 0
    %2246 = vmatmul.mubr.bf16.gmra.mxu0 %v1832
    %v2247 = vpop.f32.mrf.mxu0
    %v2248 = vadd.f32 %v1690, %v2247
    %v2249 = vpop.f32.mrf.mxu0
    %v2250 = vpop.f32.mrf.mxu0
    %v2251 = vadd.f32 %v1690, %v2250
    %v2252 = vpop.f32.mrf.mxu0
    %2253 = vmatprep.mubr.bf16.mxu0 0
    %2254 = vmatmul.mubr.bf16.gmra.mxu0 %v1835
    %v2255 = vpop.f32.mrf.mxu0
    %v2256 = vadd.f32 %v1690, %v2255
    %v2257 = vpop.f32.mrf.mxu0
    %v2258 = vpop.f32.mrf.mxu0
    %v2259 = vadd.f32 %v1690, %v2258
    %v2260 = vpop.f32.mrf.mxu0
    %2261 = vmatprep.mubr.bf16.mxu0 0
    %2262 = vmatmul.mubr.bf16.gmra.mxu0 %v1838
    %v2263 = vpop.f32.mrf.mxu0
    %v2264 = vadd.f32 %v1690, %v2263
    %v2265 = vpop.f32.mrf.mxu0
    %v2266 = vpop.f32.mrf.mxu0
    %v2267 = vadd.f32 %v1690, %v2266
    %v2268 = vpop.f32.mrf.mxu0
    %2269 = vmatprep.mubr.bf16.mxu0 0
    %2270 = vmatmul.mubr.bf16.gmra.mxu0 %v1841
    %v2271 = vpop.f32.mrf.mxu0
    %v2272 = vadd.f32 %v1690, %v2271
    %v2273 = vpop.f32.mrf.mxu0
    %v2274 = vpop.f32.mrf.mxu0
    %v2275 = vadd.f32 %v1690, %v2274
    %v2276 = vpop.f32.mrf.mxu0
    %2277 = vmatprep.mubr.bf16.mxu0 0
    %2278 = vmatmul.mubr.bf16.gmra.mxu0 %v1844
    %v2279 = vpop.f32.mrf.mxu0
    %v2280 = vadd.f32 %v1690, %v2279
    %v2281 = vpop.f32.mrf.mxu0
    %v2282 = vpop.f32.mrf.mxu0
    %v2283 = vadd.f32 %v1690, %v2282
    %v2284 = vpop.f32.mrf.mxu0
    %2285 = vmatprep.mubr.bf16.mxu0 0
    %2286 = vmatmul.mubr.bf16.gmra.mxu0 %v1847
    %v2287 = vpop.f32.mrf.mxu0
    %v2288 = vadd.f32 %v1690, %v2287
    %v2289 = vpop.f32.mrf.mxu0
    %v2290 = vpop.f32.mrf.mxu0
    %v2291 = vadd.f32 %v1690, %v2290
    %v2292 = vpop.f32.mrf.mxu0
    %2293 = vmatprep.mubr.bf16.mxu0 0
    %2294 = vmatmul.mubr.bf16.gmra.mxu0 %v1850
    %v2295 = vpop.f32.mrf.mxu0
    %v2296 = vadd.f32 %v1690, %v2295
    %v2297 = vpop.f32.mrf.mxu0
    %v2298 = vpop.f32.mrf.mxu0
    %v2299 = vadd.f32 %v1690, %v2298
    %v2300 = vpop.f32.mrf.mxu0
    %2301 = vmatprep.mubr.bf16.mxu0 0
    %2302 = vmatmul.mubr.bf16.gmra.mxu0 %v1853
    %v2303 = vpop.f32.mrf.mxu0
    %v2304 = vadd.f32 %v1690, %v2303
    %v2305 = vpop.f32.mrf.mxu0
    %v2306 = vpop.f32.mrf.mxu0
    %v2307 = vadd.f32 %v1690, %v2306
    %v2308 = vpop.f32.mrf.mxu0
    %2309 = vmatprep.mubr.bf16.mxu0 0
    %2310 = vmatmul.mubr.bf16.gmra.mxu0 %v1856
    %v2311 = vpop.f32.mrf.mxu0
    %v2312 = vadd.f32 %v1690, %v2311
    %v2313 = vpop.f32.mrf.mxu0
    %v2314 = vpop.f32.mrf.mxu0
    %v2315 = vadd.f32 %v1690, %v2314
    %v2316 = vpop.f32.mrf.mxu0
    %2317 = vmatprep.mubr.bf16.mxu0 0
    %2318 = vmatmul.mubr.bf16.gmra.mxu0 %v1859
    %v2319 = vpop.f32.mrf.mxu0
    %v2320 = vadd.f32 %v1690, %v2319
    %v2321 = vpop.f32.mrf.mxu0
    %v2322 = vpop.f32.mrf.mxu0
    %v2323 = vadd.f32 %v1690, %v2322
    %v2324 = vpop.f32.mrf.mxu0
    %2325 = vmatprep.mubr.bf16.mxu0 0
    %2326 = vmatmul.mubr.bf16.gmra.mxu0 %v1862
    %v2327 = vpop.f32.mrf.mxu0
    %v2328 = vadd.f32 %v1690, %v2327
    %v2329 = vpop.f32.mrf.mxu0
    %v2330 = vpop.f32.mrf.mxu0
    %v2331 = vadd.f32 %v1690, %v2330
    %v2332 = vpop.f32.mrf.mxu0
    %2333 = vmatprep.mubr.bf16.mxu0 0
    %2334 = vmatmul.mubr.bf16.gmra.mxu0 %v1865
    %v2335 = vpop.f32.mrf.mxu0
    %v2336 = vadd.f32 %v1690, %v2335
    %v2337 = vpop.f32.mrf.mxu0
    %v2338 = vpop.f32.mrf.mxu0
    %v2339 = vadd.f32 %v1690, %v2338
    %v2340 = vpop.f32.mrf.mxu0
    %2341 = vmatprep.mubr.bf16.mxu0 0
    %2342 = vmatmul.mubr.bf16.gmra.mxu0 %v1868
    %v2343 = vpop.f32.mrf.mxu0
    %v2344 = vadd.f32 %v1690, %v2343
    %v2345 = vpop.f32.mrf.mxu0
    %v2346 = vpop.f32.mrf.mxu0
    %v2347 = vadd.f32 %v1690, %v2346
    %v2348 = vpop.f32.mrf.mxu0
    %2349 = vmatprep.mubr.bf16.mxu0 0
    %2350 = vmatmul.mubr.bf16.gmra.mxu0 %v1871
    %v2351 = vpop.f32.mrf.mxu0
    %v2352 = vadd.f32 %v1690, %v2351
    %v2353 = vpop.f32.mrf.mxu0
    %v2354 = vpop.f32.mrf.mxu0
    %v2355 = vadd.f32 %v1690, %v2354
    %v2356 = vpop.f32.mrf.mxu0
    %2357 = vmatprep.mubr.bf16.mxu0 0
    %2358 = vmatmul.mubr.bf16.gmra.mxu0 %v1874
    %v2359 = vpop.f32.mrf.mxu0
    %v2360 = vadd.f32 %v1690, %v2359
    %v2361 = vpop.f32.mrf.mxu0
    %v2362 = vpop.f32.mrf.mxu0
    %v2363 = vadd.f32 %v1690, %v2362
    %v2364 = vpop.f32.mrf.mxu0
    %2365 = vmatprep.mubr.bf16.mxu0 0
    %2366 = vmatmul.mubr.bf16.gmra.mxu0 %v1877
    %v2367 = vpop.f32.mrf.mxu0
    %v2368 = vadd.f32 %v1690, %v2367
    %v2369 = vpop.f32.mrf.mxu0
    %v2370 = vpop.f32.mrf.mxu0
    %v2371 = vadd.f32 %v1690, %v2370
    %v2372 = vpop.f32.mrf.mxu0
    %2373 = vmatprep.mubr.bf16.mxu0 0
    %2374 = vmatmul.mubr.bf16.gmra.mxu0 %v1880
    %v2375 = vpop.f32.mrf.mxu0
    %v2376 = vadd.f32 %v1690, %v2375
    %v2377 = vpop.f32.mrf.mxu0
    %v2378 = vpop.f32.mrf.mxu0
    %v2379 = vadd.f32 %v1690, %v2378
    %v2380 = vpop.f32.mrf.mxu0
    %2381 = vmatprep.mubr.bf16.mxu0 0
    %2382 = vmatmul.mubr.bf16.gmra.mxu0 %v1883
    %v2383 = vpop.f32.mrf.mxu0
    %v2384 = vadd.f32 %v1690, %v2383
    %v2385 = vpop.f32.mrf.mxu0
    %v2386 = vpop.f32.mrf.mxu0
    %v2387 = vadd.f32 %v1690, %v2386
    %v2388 = vpop.f32.mrf.mxu0
    %2389 = vmatprep.mubr.bf16.mxu0 0
    %2390 = vmatmul.mubr.bf16.gmra.mxu0 %v1886
    %v2391 = vpop.f32.mrf.mxu0
    %v2392 = vadd.f32 %v1690, %v2391
    %v2393 = vpop.f32.mrf.mxu0
    %v2394 = vpop.f32.mrf.mxu0
    %v2395 = vadd.f32 %v1690, %v2394
    %v2396 = vpop.f32.mrf.mxu0
    %2397 = vmatprep.mubr.bf16.mxu0 0
    %2398 = vmatmul.mubr.bf16.gmra.mxu0 %v1889
    %v2399 = vpop.f32.mrf.mxu0
    %v2400 = vadd.f32 %v1690, %v2399
    %v2401 = vpop.f32.mrf.mxu0
    %v2402 = vpop.f32.mrf.mxu0
    %v2403 = vadd.f32 %v1690, %v2402
    %v2404 = vpop.f32.mrf.mxu0
    %2405 = vmatprep.mubr.bf16.mxu0 0
    %2406 = vmatmul.mubr.bf16.gmra.mxu0 %v1892
    %v2407 = vpop.f32.mrf.mxu0
    %v2408 = vadd.f32 %v1690, %v2407
    %v2409 = vpop.f32.mrf.mxu0
    %v2410 = vpop.f32.mrf.mxu0
    %v2411 = vadd.f32 %v1690, %v2410
    %v2412 = vpop.f32.mrf.mxu0
    %2413 = vmatprep.mubr.bf16.mxu0 0
    %2414 = vmatmul.mubr.bf16.gmra.mxu0 %v1895
    %v2415 = vpop.f32.mrf.mxu0
    %v2416 = vadd.f32 %v1690, %v2415
    %v2417 = vpop.f32.mrf.mxu0
    %v2418 = vpop.f32.mrf.mxu0
    %v2419 = vadd.f32 %v1690, %v2418
    %v2420 = vpop.f32.mrf.mxu0
    %2421 = vmatprep.mubr.bf16.mxu0 0
    %2422 = vmatmul.mubr.bf16.gmra.mxu0 %v1898
    %v2423 = vpop.f32.mrf.mxu0
    %v2424 = vadd.f32 %v1690, %v2423
    %v2425 = vpop.f32.mrf.mxu0
    %v2426 = vpop.f32.mrf.mxu0
    %v2427 = vadd.f32 %v1690, %v2426
    %v2428 = vpop.f32.mrf.mxu0
    %2429 = vmatprep.mubr.bf16.mxu0 0
    %2430 = vmatmul.mubr.bf16.gmra.mxu0 %v1901
    %v2431 = vpop.f32.mrf.mxu0
    %v2432 = vadd.f32 %v1690, %v2431
    %v2433 = vpop.f32.mrf.mxu0
    %v2434 = vpop.f32.mrf.mxu0
    %v2435 = vadd.f32 %v1690, %v2434
    %v2436 = vpop.f32.mrf.mxu0
    %2437 = vmatprep.mubr.bf16.mxu0 0
    %2438 = vmatmul.mubr.bf16.gmra.mxu0 %v1904
    %v2439 = vpop.f32.mrf.mxu0
    %v2440 = vadd.f32 %v1690, %v2439
    %v2441 = vpop.f32.mrf.mxu0
    %v2442 = vpop.f32.mrf.mxu0
    %v2443 = vadd.f32 %v1690, %v2442
    %v2444 = vpop.f32.mrf.mxu0
    %2445 = vmatprep.mubr.bf16.mxu0 0
    %2446 = vmatmul.mubr.bf16.gmra.mxu0 %v1907
    %v2447 = vpop.f32.mrf.mxu0
    %v2448 = vadd.f32 %v1690, %v2447
    %v2449 = vpop.f32.mrf.mxu0
    %v2450 = vpop.f32.mrf.mxu0
    %v2451 = vadd.f32 %v1690, %v2450
    %v2452 = vpop.f32.mrf.mxu0
    %2453 = vdwg.mxu0
    %vm2454 = vcmp.ge.f32.partialorder %v1944, 0.0
    %vm2455 = vcmp.ge.f32.partialorder %v1947, 0.0
    %vm2456 = vcmp.ge.f32.partialorder %v1952, 0.0
    %vm2457 = vcmp.ge.f32.partialorder %v1955, 0.0
    %vm2458 = vcmp.ge.f32.partialorder %v1960, 0.0
    %vm2459 = vcmp.ge.f32.partialorder %v1963, 0.0
    %vm2460 = vcmp.ge.f32.partialorder %v1968, 0.0
    %vm2461 = vcmp.ge.f32.partialorder %v1971, 0.0
    %vm2462 = vcmp.ge.f32.partialorder %v1976, 0.0
    %vm2463 = vcmp.ge.f32.partialorder %v1979, 0.0
    %vm2464 = vcmp.ge.f32.partialorder %v1984, 0.0
    %vm2465 = vcmp.ge.f32.partialorder %v1987, 0.0
    %vm2466 = vcmp.ge.f32.partialorder %v1992, 0.0
    %vm2467 = vcmp.ge.f32.partialorder %v1995, 0.0
    %vm2468 = vcmp.ge.f32.partialorder %v2000, 0.0
    %vm2469 = vcmp.ge.f32.partialorder %v2003, 0.0
    %vm2470 = vcmp.ge.f32.partialorder %v2008, 0.0
    %vm2471 = vcmp.ge.f32.partialorder %v2011, 0.0
    %vm2472 = vcmp.ge.f32.partialorder %v2016, 0.0
    %vm2473 = vcmp.ge.f32.partialorder %v2019, 0.0
    %vm2474 = vcmp.ge.f32.partialorder %v2024, 0.0
    %vm2475 = vcmp.ge.f32.partialorder %v2027, 0.0
    %vm2476 = vcmp.ge.f32.partialorder %v2032, 0.0
    %vm2477 = vcmp.ge.f32.partialorder %v2035, 0.0
    %vm2478 = vcmp.ge.f32.partialorder %v2040, 0.0
    %vm2479 = vcmp.ge.f32.partialorder %v2043, 0.0
    %vm2480 = vcmp.ge.f32.partialorder %v2048, 0.0
    %vm2481 = vcmp.ge.f32.partialorder %v2051, 0.0
    %vm2482 = vcmp.ge.f32.partialorder %v2056, 0.0
    %vm2483 = vcmp.ge.f32.partialorder %v2059, 0.0
    %vm2484 = vcmp.ge.f32.partialorder %v2064, 0.0
    %vm2485 = vcmp.ge.f32.partialorder %v2067, 0.0
    %vm2486 = vcmp.ge.f32.partialorder %v2072, 0.0
    %vm2487 = vcmp.ge.f32.partialorder %v2075, 0.0
    %vm2488 = vcmp.ge.f32.partialorder %v2080, 0.0
    %vm2489 = vcmp.ge.f32.partialorder %v2083, 0.0
    %vm2490 = vcmp.ge.f32.partialorder %v2088, 0.0
    %vm2491 = vcmp.ge.f32.partialorder %v2091, 0.0
    %vm2492 = vcmp.ge.f32.partialorder %v2096, 0.0
    %vm2493 = vcmp.ge.f32.partialorder %v2099, 0.0
    %vm2494 = vcmp.ge.f32.partialorder %v2104, 0.0
    %vm2495 = vcmp.ge.f32.partialorder %v2107, 0.0
    %vm2496 = vcmp.ge.f32.partialorder %v2112, 0.0
    %vm2497 = vcmp.ge.f32.partialorder %v2115, 0.0
    %vm2498 = vcmp.ge.f32.partialorder %v2120, 0.0
    %vm2499 = vcmp.ge.f32.partialorder %v2123, 0.0
    %vm2500 = vcmp.ge.f32.partialorder %v2128, 0.0
    %vm2501 = vcmp.ge.f32.partialorder %v2131, 0.0
    %vm2502 = vcmp.ge.f32.partialorder %v2136, 0.0
    %vm2503 = vcmp.ge.f32.partialorder %v2139, 0.0
    %vm2504 = vcmp.ge.f32.partialorder %v2144, 0.0
    %vm2505 = vcmp.ge.f32.partialorder %v2147, 0.0
    %vm2506 = vcmp.ge.f32.partialorder %v2152, 0.0
    %vm2507 = vcmp.ge.f32.partialorder %v2155, 0.0
    %vm2508 = vcmp.ge.f32.partialorder %v2160, 0.0
    %vm2509 = vcmp.ge.f32.partialorder %v2163, 0.0
    %vm2510 = vcmp.ge.f32.partialorder %v2168, 0.0
    %vm2511 = vcmp.ge.f32.partialorder %v2171, 0.0
    %vm2512 = vcmp.ge.f32.partialorder %v2176, 0.0
    %vm2513 = vcmp.ge.f32.partialorder %v2179, 0.0
    %vm2514 = vcmp.ge.f32.partialorder %v2184, 0.0
    %vm2515 = vcmp.ge.f32.partialorder %v2187, 0.0
    %vm2516 = vcmp.ge.f32.partialorder %v2192, 0.0
    %vm2517 = vcmp.ge.f32.partialorder %v2195, 0.0
    %vm2518 = vcmp.ge.f32.partialorder %v2200, 0.0
    %vm2519 = vcmp.ge.f32.partialorder %v2203, 0.0
    %vm2520 = vcmp.ge.f32.partialorder %v2208, 0.0
    %vm2521 = vcmp.ge.f32.partialorder %v2211, 0.0
    %vm2522 = vcmp.ge.f32.partialorder %v2216, 0.0
    %vm2523 = vcmp.ge.f32.partialorder %v2219, 0.0
    %vm2524 = vcmp.ge.f32.partialorder %v2224, 0.0
    %vm2525 = vcmp.ge.f32.partialorder %v2227, 0.0
    %vm2526 = vcmp.ge.f32.partialorder %v2232, 0.0
    %vm2527 = vcmp.ge.f32.partialorder %v2235, 0.0
    %vm2528 = vcmp.ge.f32.partialorder %v2240, 0.0
    %vm2529 = vcmp.ge.f32.partialorder %v2243, 0.0
    %vm2530 = vcmp.ge.f32.partialorder %v2248, 0.0
    %vm2531 = vcmp.ge.f32.partialorder %v2251, 0.0
    %vm2532 = vcmp.ge.f32.partialorder %v2256, 0.0
    %vm2533 = vcmp.ge.f32.partialorder %v2259, 0.0
    %vm2534 = vcmp.ge.f32.partialorder %v2264, 0.0
    %vm2535 = vcmp.ge.f32.partialorder %v2267, 0.0
    %vm2536 = vcmp.ge.f32.partialorder %v2272, 0.0
    %vm2537 = vcmp.ge.f32.partialorder %v2275, 0.0
    %vm2538 = vcmp.ge.f32.partialorder %v2280, 0.0
    %vm2539 = vcmp.ge.f32.partialorder %v2283, 0.0
    %vm2540 = vcmp.ge.f32.partialorder %v2288, 0.0
    %vm2541 = vcmp.ge.f32.partialorder %v2291, 0.0
    %vm2542 = vcmp.ge.f32.partialorder %v2296, 0.0
    %vm2543 = vcmp.ge.f32.partialorder %v2299, 0.0
    %vm2544 = vcmp.ge.f32.partialorder %v2304, 0.0
    %vm2545 = vcmp.ge.f32.partialorder %v2307, 0.0
    %vm2546 = vcmp.ge.f32.partialorder %v2312, 0.0
    %vm2547 = vcmp.ge.f32.partialorder %v2315, 0.0
    %vm2548 = vcmp.ge.f32.partialorder %v2320, 0.0
    %vm2549 = vcmp.ge.f32.partialorder %v2323, 0.0
    %vm2550 = vcmp.ge.f32.partialorder %v2328, 0.0
    %vm2551 = vcmp.ge.f32.partialorder %v2331, 0.0
    %vm2552 = vcmp.ge.f32.partialorder %v2336, 0.0
    %vm2553 = vcmp.ge.f32.partialorder %v2339, 0.0
    %vm2554 = vcmp.ge.f32.partialorder %v2344, 0.0
    %vm2555 = vcmp.ge.f32.partialorder %v2347, 0.0
    %vm2556 = vcmp.ge.f32.partialorder %v2352, 0.0
    %vm2557 = vcmp.ge.f32.partialorder %v2355, 0.0
    %vm2558 = vcmp.ge.f32.partialorder %v2360, 0.0
    %vm2559 = vcmp.ge.f32.partialorder %v2363, 0.0
    %vm2560 = vcmp.ge.f32.partialorder %v2368, 0.0
    %vm2561 = vcmp.ge.f32.partialorder %v2371, 0.0
    %vm2562 = vcmp.ge.f32.partialorder %v2376, 0.0
    %vm2563 = vcmp.ge.f32.partialorder %v2379, 0.0
    %vm2564 = vcmp.ge.f32.partialorder %v2384, 0.0
    %vm2565 = vcmp.ge.f32.partialorder %v2387, 0.0
    %vm2566 = vcmp.ge.f32.partialorder %v2392, 0.0
    %vm2567 = vcmp.ge.f32.partialorder %v2395, 0.0
    %vm2568 = vcmp.ge.f32.partialorder %v2400, 0.0
    %vm2569 = vcmp.ge.f32.partialorder %v2403, 0.0
    %vm2570 = vcmp.ge.f32.partialorder %v2408, 0.0
    %vm2571 = vcmp.ge.f32.partialorder %v2411, 0.0
    %vm2572 = vcmp.ge.f32.partialorder %v2416, 0.0
    %vm2573 = vcmp.ge.f32.partialorder %v2419, 0.0
    %vm2574 = vcmp.ge.f32.partialorder %v2424, 0.0
    %vm2575 = vcmp.ge.f32.partialorder %v2427, 0.0
    %vm2576 = vcmp.ge.f32.partialorder %v2432, 0.0
    %vm2577 = vcmp.ge.f32.partialorder %v2435, 0.0
    %vm2578 = vcmp.ge.f32.partialorder %v2440, 0.0
    %vm2579 = vcmp.ge.f32.partialorder %v2443, 0.0
    %vm2580 = vcmp.ge.f32.partialorder %v2448, 0.0
    %vm2581 = vcmp.ge.f32.partialorder %v2451, 0.0
    %v2582 = vmul.f32 %v1944, 0.01
    %v2583 = vmul.f32 %v1947, 0.01
    %v2584 = vmul.f32 %v1952, 0.01
    %v2585 = vmul.f32 %v1955, 0.01
    %v2586 = vmul.f32 %v1960, 0.01
    %v2587 = vmul.f32 %v1963, 0.01
    %v2588 = vmul.f32 %v1968, 0.01
    %v2589 = vmul.f32 %v1971, 0.01
    %v2590 = vmul.f32 %v1976, 0.01
    %v2591 = vmul.f32 %v1979, 0.01
    %v2592 = vmul.f32 %v1984, 0.01
    %v2593 = vmul.f32 %v1987, 0.01
    %v2594 = vmul.f32 %v1992, 0.01
    %v2595 = vmul.f32 %v1995, 0.01
    %v2596 = vmul.f32 %v2000, 0.01
    %v2597 = vmul.f32 %v2003, 0.01
    %v2598 = vmul.f32 %v2008, 0.01
    %v2599 = vmul.f32 %v2011, 0.01
    %v2600 = vmul.f32 %v2016, 0.01
    %v2601 = vmul.f32 %v2019, 0.01
    %v2602 = vmul.f32 %v2024, 0.01
    %v2603 = vmul.f32 %v2027, 0.01
    %v2604 = vmul.f32 %v2032, 0.01
    %v2605 = vmul.f32 %v2035, 0.01
    %v2606 = vmul.f32 %v2040, 0.01
    %v2607 = vmul.f32 %v2043, 0.01
    %v2608 = vmul.f32 %v2048, 0.01
    %v2609 = vmul.f32 %v2051, 0.01
    %v2610 = vmul.f32 %v2056, 0.01
    %v2611 = vmul.f32 %v2059, 0.01
    %v2612 = vmul.f32 %v2064, 0.01
    %v2613 = vmul.f32 %v2067, 0.01
    %v2614 = vmul.f32 %v2072, 0.01
    %v2615 = vmul.f32 %v2075, 0.01
    %v2616 = vmul.f32 %v2080, 0.01
    %v2617 = vmul.f32 %v2083, 0.01
    %v2618 = vmul.f32 %v2088, 0.01
    %v2619 = vmul.f32 %v2091, 0.01
    %v2620 = vmul.f32 %v2096, 0.01
    %v2621 = vmul.f32 %v2099, 0.01
    %v2622 = vmul.f32 %v2104, 0.01
    %v2623 = vmul.f32 %v2107, 0.01
    %v2624 = vmul.f32 %v2112, 0.01
    %v2625 = vmul.f32 %v2115, 0.01
    %v2626 = vmul.f32 %v2120, 0.01
    %v2627 = vmul.f32 %v2123, 0.01
    %v2628 = vmul.f32 %v2128, 0.01
    %v2629 = vmul.f32 %v2131, 0.01
    %v2630 = vmul.f32 %v2136, 0.01
    %v2631 = vmul.f32 %v2139, 0.01
    %v2632 = vmul.f32 %v2144, 0.01
    %v2633 = vmul.f32 %v2147, 0.01
    %v2634 = vmul.f32 %v2152, 0.01
    %v2635 = vmul.f32 %v2155, 0.01
    %v2636 = vmul.f32 %v2160, 0.01
    %v2637 = vmul.f32 %v2163, 0.01
    %v2638 = vmul.f32 %v2168, 0.01
    %v2639 = vmul.f32 %v2171, 0.01
    %v2640 = vmul.f32 %v2176, 0.01
    %v2641 = vmul.f32 %v2179, 0.01
    %v2642 = vmul.f32 %v2184, 0.01
    %v2643 = vmul.f32 %v2187, 0.01
    %v2644 = vmul.f32 %v2192, 0.01
    %v2645 = vmul.f32 %v2195, 0.01
    %v2646 = vmul.f32 %v2200, 0.01
    %v2647 = vmul.f32 %v2203, 0.01
    %v2648 = vmul.f32 %v2208, 0.01
    %v2649 = vmul.f32 %v2211, 0.01
    %v2650 = vmul.f32 %v2216, 0.01
    %v2651 = vmul.f32 %v2219, 0.01
    %v2652 = vmul.f32 %v2224, 0.01
    %v2653 = vmul.f32 %v2227, 0.01
    %v2654 = vmul.f32 %v2232, 0.01
    %v2655 = vmul.f32 %v2235, 0.01
    %v2656 = vmul.f32 %v2240, 0.01
    %v2657 = vmul.f32 %v2243, 0.01
    %v2658 = vmul.f32 %v2248, 0.01
    %v2659 = vmul.f32 %v2251, 0.01
    %v2660 = vmul.f32 %v2256, 0.01
    %v2661 = vmul.f32 %v2259, 0.01
    %v2662 = vmul.f32 %v2264, 0.01
    %v2663 = vmul.f32 %v2267, 0.01
    %v2664 = vmul.f32 %v2272, 0.01
    %v2665 = vmul.f32 %v2275, 0.01
    %v2666 = vmul.f32 %v2280, 0.01
    %v2667 = vmul.f32 %v2283, 0.01
    %v2668 = vmul.f32 %v2288, 0.01
    %v2669 = vmul.f32 %v2291, 0.01
    %v2670 = vmul.f32 %v2296, 0.01
    %v2671 = vmul.f32 %v2299, 0.01
    %v2672 = vmul.f32 %v2304, 0.01
    %v2673 = vmul.f32 %v2307, 0.01
    %v2674 = vmul.f32 %v2312, 0.01
    %v2675 = vmul.f32 %v2315, 0.01
    %v2676 = vmul.f32 %v2320, 0.01
    %v2677 = vmul.f32 %v2323, 0.01
    %v2678 = vmul.f32 %v2328, 0.01
    %v2679 = vmul.f32 %v2331, 0.01
    %v2680 = vmul.f32 %v2336, 0.01
    %v2681 = vmul.f32 %v2339, 0.01
    %v2682 = vmul.f32 %v2344, 0.01
    %v2683 = vmul.f32 %v2347, 0.01
    %v2684 = vmul.f32 %v2352, 0.01
    %v2685 = vmul.f32 %v2355, 0.01
    %v2686 = vmul.f32 %v2360, 0.01
    %v2687 = vmul.f32 %v2363, 0.01
    %v2688 = vmul.f32 %v2368, 0.01
    %v2689 = vmul.f32 %v2371, 0.01
    %v2690 = vmul.f32 %v2376, 0.01
    %v2691 = vmul.f32 %v2379, 0.01
    %v2692 = vmul.f32 %v2384, 0.01
    %v2693 = vmul.f32 %v2387, 0.01
    %v2694 = vmul.f32 %v2392, 0.01
    %v2695 = vmul.f32 %v2395, 0.01
    %v2696 = vmul.f32 %v2400, 0.01
    %v2697 = vmul.f32 %v2403, 0.01
    %v2698 = vmul.f32 %v2408, 0.01
    %v2699 = vmul.f32 %v2411, 0.01
    %v2700 = vmul.f32 %v2416, 0.01
    %v2701 = vmul.f32 %v2419, 0.01
    %v2702 = vmul.f32 %v2424, 0.01
    %v2703 = vmul.f32 %v2427, 0.01
    %v2704 = vmul.f32 %v2432, 0.01
    %v2705 = vmul.f32 %v2435, 0.01
    %v2706 = vmul.f32 %v2440, 0.01
    %v2707 = vmul.f32 %v2443, 0.01
    %v2708 = vmul.f32 %v2448, 0.01
    %v2709 = vmul.f32 %v2451, 0.01
    %v2710 = vsel %vm2454, %v1944, %v2582
    %v2711 = vsel %vm2455, %v1947, %v2583
    %v2712 = vsel %vm2456, %v1952, %v2584
    %v2713 = vsel %vm2457, %v1955, %v2585
    %v2714 = vsel %vm2458, %v1960, %v2586
    %v2715 = vsel %vm2459, %v1963, %v2587
    %v2716 = vsel %vm2460, %v1968, %v2588
    %v2717 = vsel %vm2461, %v1971, %v2589
    %v2718 = vsel %vm2462, %v1976, %v2590
    %v2719 = vsel %vm2463, %v1979, %v2591
    %v2720 = vsel %vm2464, %v1984, %v2592
    %v2721 = vsel %vm2465, %v1987, %v2593
    %v2722 = vsel %vm2466, %v1992, %v2594
    %v2723 = vsel %vm2467, %v1995, %v2595
    %v2724 = vsel %vm2468, %v2000, %v2596
    %v2725 = vsel %vm2469, %v2003, %v2597
    %v2726 = vsel %vm2470, %v2008, %v2598
    %v2727 = vsel %vm2471, %v2011, %v2599
    %v2728 = vsel %vm2472, %v2016, %v2600
    %v2729 = vsel %vm2473, %v2019, %v2601
    %v2730 = vsel %vm2474, %v2024, %v2602
    %v2731 = vsel %vm2475, %v2027, %v2603
    %v2732 = vsel %vm2476, %v2032, %v2604
    %v2733 = vsel %vm2477, %v2035, %v2605
    %v2734 = vsel %vm2478, %v2040, %v2606
    %v2735 = vsel %vm2479, %v2043, %v2607
    %v2736 = vsel %vm2480, %v2048, %v2608
    %v2737 = vsel %vm2481, %v2051, %v2609
    %v2738 = vsel %vm2482, %v2056, %v2610
    %v2739 = vsel %vm2483, %v2059, %v2611
    %v2740 = vsel %vm2484, %v2064, %v2612
    %v2741 = vsel %vm2485, %v2067, %v2613
    %v2742 = vsel %vm2486, %v2072, %v2614
    %v2743 = vsel %vm2487, %v2075, %v2615
    %v2744 = vsel %vm2488, %v2080, %v2616
    %v2745 = vsel %vm2489, %v2083, %v2617
    %v2746 = vsel %vm2490, %v2088, %v2618
    %v2747 = vsel %vm2491, %v2091, %v2619
    %v2748 = vsel %vm2492, %v2096, %v2620
    %v2749 = vsel %vm2493, %v2099, %v2621
    %v2750 = vsel %vm2494, %v2104, %v2622
    %v2751 = vsel %vm2495, %v2107, %v2623
    %v2752 = vsel %vm2496, %v2112, %v2624
    %v2753 = vsel %vm2497, %v2115, %v2625
    %v2754 = vsel %vm2498, %v2120, %v2626
    %v2755 = vsel %vm2499, %v2123, %v2627
    %v2756 = vsel %vm2500, %v2128, %v2628
    %v2757 = vsel %vm2501, %v2131, %v2629
    %v2758 = vsel %vm2502, %v2136, %v2630
    %v2759 = vsel %vm2503, %v2139, %v2631
    %v2760 = vsel %vm2504, %v2144, %v2632
    %v2761 = vsel %vm2505, %v2147, %v2633
    %v2762 = vsel %vm2506, %v2152, %v2634
    %v2763 = vsel %vm2507, %v2155, %v2635
    %v2764 = vsel %vm2508, %v2160, %v2636
    %v2765 = vsel %vm2509, %v2163, %v2637
    %v2766 = vsel %vm2510, %v2168, %v2638
    %v2767 = vsel %vm2511, %v2171, %v2639
    %v2768 = vsel %vm2512, %v2176, %v2640
    %v2769 = vsel %vm2513, %v2179, %v2641
    %v2770 = vsel %vm2514, %v2184, %v2642
    %v2771 = vsel %vm2515, %v2187, %v2643
    %v2772 = vsel %vm2516, %v2192, %v2644
    %v2773 = vsel %vm2517, %v2195, %v2645
    %v2774 = vsel %vm2518, %v2200, %v2646
    %v2775 = vsel %vm2519, %v2203, %v2647
    %v2776 = vsel %vm2520, %v2208, %v2648
    %v2777 = vsel %vm2521, %v2211, %v2649
    %v2778 = vsel %vm2522, %v2216, %v2650
    %v2779 = vsel %vm2523, %v2219, %v2651
    %v2780 = vsel %vm2524, %v2224, %v2652
    %v2781 = vsel %vm2525, %v2227, %v2653
    %v2782 = vsel %vm2526, %v2232, %v2654
    %v2783 = vsel %vm2527, %v2235, %v2655
    %v2784 = vsel %vm2528, %v2240, %v2656
    %v2785 = vsel %vm2529, %v2243, %v2657
    %v2786 = vsel %vm2530, %v2248, %v2658
    %v2787 = vsel %vm2531, %v2251, %v2659
    %v2788 = vsel %vm2532, %v2256, %v2660
    %v2789 = vsel %vm2533, %v2259, %v2661
    %v2790 = vsel %vm2534, %v2264, %v2662
    %v2791 = vsel %vm2535, %v2267, %v2663
    %v2792 = vsel %vm2536, %v2272, %v2664
    %v2793 = vsel %vm2537, %v2275, %v2665
    %v2794 = vsel %vm2538, %v2280, %v2666
    %v2795 = vsel %vm2539, %v2283, %v2667
    %v2796 = vsel %vm2540, %v2288, %v2668
    %v2797 = vsel %vm2541, %v2291, %v2669
    %v2798 = vsel %vm2542, %v2296, %v2670
    %v2799 = vsel %vm2543, %v2299, %v2671
    %v2800 = vsel %vm2544, %v2304, %v2672
    %v2801 = vsel %vm2545, %v2307, %v2673
    %v2802 = vsel %vm2546, %v2312, %v2674
    %v2803 = vsel %vm2547, %v2315, %v2675
    %v2804 = vsel %vm2548, %v2320, %v2676
    %v2805 = vsel %vm2549, %v2323, %v2677
    %v2806 = vsel %vm2550, %v2328, %v2678
    %v2807 = vsel %vm2551, %v2331, %v2679
    %v2808 = vsel %vm2552, %v2336, %v2680
    %v2809 = vsel %vm2553, %v2339, %v2681
    %v2810 = vsel %vm2554, %v2344, %v2682
    %v2811 = vsel %vm2555, %v2347, %v2683
    %v2812 = vsel %vm2556, %v2352, %v2684
    %v2813 = vsel %vm2557, %v2355, %v2685
    %v2814 = vsel %vm2558, %v2360, %v2686
    %v2815 = vsel %vm2559, %v2363, %v2687
    %v2816 = vsel %vm2560, %v2368, %v2688
    %v2817 = vsel %vm2561, %v2371, %v2689
    %v2818 = vsel %vm2562, %v2376, %v2690
    %v2819 = vsel %vm2563, %v2379, %v2691
    %v2820 = vsel %vm2564, %v2384, %v2692
    %v2821 = vsel %vm2565, %v2387, %v2693
    %v2822 = vsel %vm2566, %v2392, %v2694
    %v2823 = vsel %vm2567, %v2395, %v2695
    %v2824 = vsel %vm2568, %v2400, %v2696
    %v2825 = vsel %vm2569, %v2403, %v2697
    %v2826 = vsel %vm2570, %v2408, %v2698
    %v2827 = vsel %vm2571, %v2411, %v2699
    %v2828 = vsel %vm2572, %v2416, %v2700
    %v2829 = vsel %vm2573, %v2419, %v2701
    %v2830 = vsel %vm2574, %v2424, %v2702
    %v2831 = vsel %vm2575, %v2427, %v2703
    %v2832 = vsel %vm2576, %v2432, %v2704
    %v2833 = vsel %vm2577, %v2435, %v2705
    %v2834 = vsel %vm2578, %v2440, %v2706
    %v2835 = vsel %vm2579, %v2443, %v2707
    %v2836 = vsel %vm2580, %v2448, %v2708
    %v2837 = vsel %vm2581, %v2451, %v2709
    %v2838 = vpack.c.bf16 %v2711, %v2710
    %v2839 = vpack.c.bf16 %v2713, %v2712
    %v2840 = vpack.c.bf16 %v2715, %v2714
    %v2841 = vpack.c.bf16 %v2717, %v2716
    %v2842 = vpack.c.bf16 %v2719, %v2718
    %v2843 = vpack.c.bf16 %v2721, %v2720
    %v2844 = vpack.c.bf16 %v2723, %v2722
    %v2845 = vpack.c.bf16 %v2725, %v2724
    %v2846 = vpack.c.bf16 %v2727, %v2726
    %v2847 = vpack.c.bf16 %v2729, %v2728
    %v2848 = vpack.c.bf16 %v2731, %v2730
    %v2849 = vpack.c.bf16 %v2733, %v2732
    %v2850 = vpack.c.bf16 %v2735, %v2734
    %v2851 = vpack.c.bf16 %v2737, %v2736
    %v2852 = vpack.c.bf16 %v2739, %v2738
    %v2853 = vpack.c.bf16 %v2741, %v2740
    %v2854 = vpack.c.bf16 %v2743, %v2742
    %v2855 = vpack.c.bf16 %v2745, %v2744
    %v2856 = vpack.c.bf16 %v2747, %v2746
    %v2857 = vpack.c.bf16 %v2749, %v2748
    %v2858 = vpack.c.bf16 %v2751, %v2750
    %v2859 = vpack.c.bf16 %v2753, %v2752
    %v2860 = vpack.c.bf16 %v2755, %v2754
    %v2861 = vpack.c.bf16 %v2757, %v2756
    %v2862 = vpack.c.bf16 %v2759, %v2758
    %v2863 = vpack.c.bf16 %v2761, %v2760
    %v2864 = vpack.c.bf16 %v2763, %v2762
    %v2865 = vpack.c.bf16 %v2765, %v2764
    %v2866 = vpack.c.bf16 %v2767, %v2766
    %v2867 = vpack.c.bf16 %v2769, %v2768
    %v2868 = vpack.c.bf16 %v2771, %v2770
    %v2869 = vpack.c.bf16 %v2773, %v2772
    %v2870 = vpack.c.bf16 %v2775, %v2774
    %v2871 = vpack.c.bf16 %v2777, %v2776
    %v2872 = vpack.c.bf16 %v2779, %v2778
    %v2873 = vpack.c.bf16 %v2781, %v2780
    %v2874 = vpack.c.bf16 %v2783, %v2782
    %v2875 = vpack.c.bf16 %v2785, %v2784
    %v2876 = vpack.c.bf16 %v2787, %v2786
    %v2877 = vpack.c.bf16 %v2789, %v2788
    %v2878 = vpack.c.bf16 %v2791, %v2790
    %v2879 = vpack.c.bf16 %v2793, %v2792
    %v2880 = vpack.c.bf16 %v2795, %v2794
    %v2881 = vpack.c.bf16 %v2797, %v2796
    %v2882 = vpack.c.bf16 %v2799, %v2798
    %v2883 = vpack.c.bf16 %v2801, %v2800
    %v2884 = vpack.c.bf16 %v2803, %v2802
    %v2885 = vpack.c.bf16 %v2805, %v2804
    %v2886 = vpack.c.bf16 %v2807, %v2806
    %v2887 = vpack.c.bf16 %v2809, %v2808
    %v2888 = vpack.c.bf16 %v2811, %v2810
    %v2889 = vpack.c.bf16 %v2813, %v2812
    %v2890 = vpack.c.bf16 %v2815, %v2814
    %v2891 = vpack.c.bf16 %v2817, %v2816
    %v2892 = vpack.c.bf16 %v2819, %v2818
    %v2893 = vpack.c.bf16 %v2821, %v2820
    %v2894 = vpack.c.bf16 %v2823, %v2822
    %v2895 = vpack.c.bf16 %v2825, %v2824
    %v2896 = vpack.c.bf16 %v2827, %v2826
    %v2897 = vpack.c.bf16 %v2829, %v2828
    %v2898 = vpack.c.bf16 %v2831, %v2830
    %v2899 = vpack.c.bf16 %v2833, %v2832
    %v2900 = vpack.c.bf16 %v2835, %v2834
    %v2901 = vpack.c.bf16 %v2837, %v2836
    %v2902 = vld [vmem:[%s5] sm:$0xf]
    %v2903 = vld [vmem:[%s5 + $0x4] sm:$0xf]
    %v2904 = vld [vmem:[%s5 + $0x8] sm:$0xf]
    %v2905 = vld [vmem:[%s5 + $0xc] sm:$0xf]
    %v2906 = vld [vmem:[%s5 + $0x10] sm:$0xf]
    %v2907 = vld [vmem:[%s5 + $0x14] sm:$0xf]
    %v2908 = vld [vmem:[%s5 + $0x18] sm:$0xf]
    %v2909 = vld [vmem:[%s5 + $0x1c] sm:$0xf]
    %v2910 = vld [vmem:[%s6] sm:$0x1]
    %v2912 = vlaneseq
    %v2913 = vshrl.u32 %v2912, 7
    %v2914 = vsub.s32 0, %v2913
    %v2915 = vrot.slane %v2910, %v2914
    %v2925 = vunpack.c.l.b16 %v2902
    %v2926 = vunpack.c.l.b16 %v2903
    %v2927 = vunpack.c.l.b16 %v2904
    %v2928 = vunpack.c.l.b16 %v2905
    %v2929 = vunpack.c.l.b16 %v2906
    %v2930 = vunpack.c.l.b16 %v2907
    %v2931 = vunpack.c.l.b16 %v2908
    %v2932 = vunpack.c.l.b16 %v2909
    %v2933 = vpack.c.b16 %v2926, %v2925
    %v2934 = vpack.c.b16 %v2928, %v2927
    %v2935 = vpack.c.b16 %v2930, %v2929
    %v2936 = vpack.c.b16 %v2932, %v2931
    %v2942 = vsel %vm1716, %v2838, 0
    %v2945 = vsel %vm1716, %v2839, 0
    %v2948 = vsel %vm1716, %v2840, 0
    %v2951 = vsel %vm1716, %v2841, 0
    %v2954 = vsel %vm1716, %v2842, 0
    %v2957 = vsel %vm1716, %v2843, 0
    %v2960 = vsel %vm1716, %v2844, 0
    %v2963 = vsel %vm1716, %v2845, 0
    %v2966 = vsel %vm1716, %v2846, 0
    %v2969 = vsel %vm1716, %v2847, 0
    %v2972 = vsel %vm1716, %v2848, 0
    %v2975 = vsel %vm1716, %v2849, 0
    %v2978 = vsel %vm1716, %v2850, 0
    %v2981 = vsel %vm1716, %v2851, 0
    %v2984 = vsel %vm1716, %v2852, 0
    %v2987 = vsel %vm1716, %v2853, 0
    %v2990 = vsel %vm1716, %v2854, 0
    %v2993 = vsel %vm1716, %v2855, 0
    %v2996 = vsel %vm1716, %v2856, 0
    %v2999 = vsel %vm1716, %v2857, 0
    %v3002 = vsel %vm1716, %v2858, 0
    %v3005 = vsel %vm1716, %v2859, 0
    %v3008 = vsel %vm1716, %v2860, 0
    %v3011 = vsel %vm1716, %v2861, 0
    %v3014 = vsel %vm1716, %v2862, 0
    %v3017 = vsel %vm1716, %v2863, 0
    %v3020 = vsel %vm1716, %v2864, 0
    %v3023 = vsel %vm1716, %v2865, 0
    %v3026 = vsel %vm1716, %v2866, 0
    %v3029 = vsel %vm1716, %v2867, 0
    %v3032 = vsel %vm1716, %v2868, 0
    %v3035 = vsel %vm1716, %v2869, 0
    %v3038 = vsel %vm1716, %v2870, 0
    %v3041 = vsel %vm1716, %v2871, 0
    %v3044 = vsel %vm1716, %v2872, 0
    %v3047 = vsel %vm1716, %v2873, 0
    %v3050 = vsel %vm1716, %v2874, 0
    %v3053 = vsel %vm1716, %v2875, 0
    %v3056 = vsel %vm1716, %v2876, 0
    %v3059 = vsel %vm1716, %v2877, 0
    %v3062 = vsel %vm1716, %v2878, 0
    %v3065 = vsel %vm1716, %v2879, 0
    %v3068 = vsel %vm1716, %v2880, 0
    %v3071 = vsel %vm1716, %v2881, 0
    %v3074 = vsel %vm1716, %v2882, 0
    %v3077 = vsel %vm1716, %v2883, 0
    %v3080 = vsel %vm1716, %v2884, 0
    %v3083 = vsel %vm1716, %v2885, 0
    %v3086 = vsel %vm1716, %v2886, 0
    %v3089 = vsel %vm1716, %v2887, 0
    %v3092 = vsel %vm1716, %v2888, 0
    %v3095 = vsel %vm1716, %v2889, 0
    %v3098 = vsel %vm1716, %v2890, 0
    %v3101 = vsel %vm1716, %v2891, 0
    %v3104 = vsel %vm1716, %v2892, 0
    %v3107 = vsel %vm1716, %v2893, 0
    %v3110 = vsel %vm1716, %v2894, 0
    %v3113 = vsel %vm1716, %v2895, 0
    %v3116 = vsel %vm1716, %v2896, 0
    %v3119 = vsel %vm1716, %v2897, 0
    %v3122 = vsel %vm1716, %v2898, 0
    %v3125 = vsel %vm1716, %v2899, 0
    %v3128 = vsel %vm1716, %v2900, 0
    %v3131 = vsel %vm1716, %v2901, 0
    %3133 = vmatprep.subr.bf16.mxu0 0
    %3134 = vmatpush1.bf16.msra.mxu0 0
    %3135 = vmatprep.subr.bf16.mxu0 0
    %3136 = vmatpush1.bf16.msra.mxu0 0
    %3137 = vmatprep.subr.bf16.mxu0 0
    %3138 = vmatpush1.bf16.msra.mxu0 0
    %3139 = vmatprep.subr.bf16.mxu0 0
    %3140 = vmatpush1.bf16.msra.mxu0 0
    %3141 = vmatprep.subr.bf16.mxu0 0
    %3142 = vmatpush1.bf16.msra.mxu0 %v2936
    %3143 = vmatprep.subr.bf16.mxu0 0
    %3144 = vmatpush1.bf16.msra.mxu0 %v2935
    %3145 = vmatprep.subr.bf16.mxu0 0
    %3146 = vmatpush1.bf16.msra.mxu0 %v2934
    %3147 = vmatprep.subr.bf16.mxu0 0
    %3148 = vmatpush1.bf16.msra.mxu0 %v2933
    %3149 = vmatprep.subr.bf16.mxu0 0
    %3150 = vmatpush2.bf16.msra.mxu0 0
    %3151 = vmatprep.subr.bf16.mxu0 0
    %3152 = vmatpush2.bf16.msra.mxu0 0
    %3153 = vmatprep.subr.bf16.mxu0 0
    %3154 = vmatpush2.bf16.msra.mxu0 0
    %3155 = vmatprep.subr.bf16.mxu0 0
    %3156 = vmatpush2.bf16.msra.mxu0 0
    %3157 = vmatprep.subr.bf16.mxu0 0
    %3158 = vmatpush2.bf16.msra.mxu0 0
    %3159 = vmatprep.subr.bf16.mxu0 0
    %3160 = vmatpush2.bf16.msra.mxu0 0
    %3161 = vmatprep.subr.bf16.mxu0 0
    %3162 = vmatpush2.bf16.msra.mxu0 0
    %3163 = vmatprep.subr.bf16.mxu0 0
    %3164 = vmatpush2.bf16.msra.mxu0 0
    %3165 = vmatprep.mubr.bf16.mxu0 0
    %3166 = vmatmul.mubr.bf16.gmra.mxu0 %v2942
    %v3167 = vpop.f32.mrf.mxu0
    %v3168 = vadd.f32 %v2915, %v3167
    %v3169 = vpop.f32.mrf.mxu0
    %v3170 = vpop.f32.mrf.mxu0
    %v3171 = vadd.f32 %v2915, %v3170
    %v3172 = vpop.f32.mrf.mxu0
    %3173 = vmatprep.mubr.bf16.mxu0 0
    %3174 = vmatmul.mubr.bf16.gmra.mxu0 %v2945
    %v3175 = vpop.f32.mrf.mxu0
    %v3176 = vadd.f32 %v2915, %v3175
    %v3177 = vpop.f32.mrf.mxu0
    %v3178 = vpop.f32.mrf.mxu0
    %v3179 = vadd.f32 %v2915, %v3178
    %v3180 = vpop.f32.mrf.mxu0
    %3181 = vmatprep.mubr.bf16.mxu0 0
    %3182 = vmatmul.mubr.bf16.gmra.mxu0 %v2948
    %v3183 = vpop.f32.mrf.mxu0
    %v3184 = vadd.f32 %v2915, %v3183
    %v3185 = vpop.f32.mrf.mxu0
    %v3186 = vpop.f32.mrf.mxu0
    %v3187 = vadd.f32 %v2915, %v3186
    %v3188 = vpop.f32.mrf.mxu0
    %3189 = vmatprep.mubr.bf16.mxu0 0
    %3190 = vmatmul.mubr.bf16.gmra.mxu0 %v2951
    %v3191 = vpop.f32.mrf.mxu0
    %v3192 = vadd.f32 %v2915, %v3191
    %v3193 = vpop.f32.mrf.mxu0
    %v3194 = vpop.f32.mrf.mxu0
    %v3195 = vadd.f32 %v2915, %v3194
    %v3196 = vpop.f32.mrf.mxu0
    %3197 = vmatprep.mubr.bf16.mxu0 0
    %3198 = vmatmul.mubr.bf16.gmra.mxu0 %v2954
    %v3199 = vpop.f32.mrf.mxu0
    %v3200 = vadd.f32 %v2915, %v3199
    %v3201 = vpop.f32.mrf.mxu0
    %v3202 = vpop.f32.mrf.mxu0
    %v3203 = vadd.f32 %v2915, %v3202
    %v3204 = vpop.f32.mrf.mxu0
    %3205 = vmatprep.mubr.bf16.mxu0 0
    %3206 = vmatmul.mubr.bf16.gmra.mxu0 %v2957
    %v3207 = vpop.f32.mrf.mxu0
    %v3208 = vadd.f32 %v2915, %v3207
    %v3209 = vpop.f32.mrf.mxu0
    %v3210 = vpop.f32.mrf.mxu0
    %v3211 = vadd.f32 %v2915, %v3210
    %v3212 = vpop.f32.mrf.mxu0
    %3213 = vmatprep.mubr.bf16.mxu0 0
    %3214 = vmatmul.mubr.bf16.gmra.mxu0 %v2960
    %v3215 = vpop.f32.mrf.mxu0
    %v3216 = vadd.f32 %v2915, %v3215
    %v3217 = vpop.f32.mrf.mxu0
    %v3218 = vpop.f32.mrf.mxu0
    %v3219 = vadd.f32 %v2915, %v3218
    %v3220 = vpop.f32.mrf.mxu0
    %3221 = vmatprep.mubr.bf16.mxu0 0
    %3222 = vmatmul.mubr.bf16.gmra.mxu0 %v2963
    %v3223 = vpop.f32.mrf.mxu0
    %v3224 = vadd.f32 %v2915, %v3223
    %v3225 = vpop.f32.mrf.mxu0
    %v3226 = vpop.f32.mrf.mxu0
    %v3227 = vadd.f32 %v2915, %v3226
    %v3228 = vpop.f32.mrf.mxu0
    %3229 = vmatprep.mubr.bf16.mxu0 0
    %3230 = vmatmul.mubr.bf16.gmra.mxu0 %v2966
    %v3231 = vpop.f32.mrf.mxu0
    %v3232 = vadd.f32 %v2915, %v3231
    %v3233 = vpop.f32.mrf.mxu0
    %v3234 = vpop.f32.mrf.mxu0
    %v3235 = vadd.f32 %v2915, %v3234
    %v3236 = vpop.f32.mrf.mxu0
    %3237 = vmatprep.mubr.bf16.mxu0 0
    %3238 = vmatmul.mubr.bf16.gmra.mxu0 %v2969
    %v3239 = vpop.f32.mrf.mxu0
    %v3240 = vadd.f32 %v2915, %v3239
    %v3241 = vpop.f32.mrf.mxu0
    %v3242 = vpop.f32.mrf.mxu0
    %v3243 = vadd.f32 %v2915, %v3242
    %v3244 = vpop.f32.mrf.mxu0
    %3245 = vmatprep.mubr.bf16.mxu0 0
    %3246 = vmatmul.mubr.bf16.gmra.mxu0 %v2972
    %v3247 = vpop.f32.mrf.mxu0
    %v3248 = vadd.f32 %v2915, %v3247
    %v3249 = vpop.f32.mrf.mxu0
    %v3250 = vpop.f32.mrf.mxu0
    %v3251 = vadd.f32 %v2915, %v3250
    %v3252 = vpop.f32.mrf.mxu0
    %3253 = vmatprep.mubr.bf16.mxu0 0
    %3254 = vmatmul.mubr.bf16.gmra.mxu0 %v2975
    %v3255 = vpop.f32.mrf.mxu0
    %v3256 = vadd.f32 %v2915, %v3255
    %v3257 = vpop.f32.mrf.mxu0
    %v3258 = vpop.f32.mrf.mxu0
    %v3259 = vadd.f32 %v2915, %v3258
    %v3260 = vpop.f32.mrf.mxu0
    %3261 = vmatprep.mubr.bf16.mxu0 0
    %3262 = vmatmul.mubr.bf16.gmra.mxu0 %v2978
    %v3263 = vpop.f32.mrf.mxu0
    %v3264 = vadd.f32 %v2915, %v3263
    %v3265 = vpop.f32.mrf.mxu0
    %v3266 = vpop.f32.mrf.mxu0
    %v3267 = vadd.f32 %v2915, %v3266
    %v3268 = vpop.f32.mrf.mxu0
    %3269 = vmatprep.mubr.bf16.mxu0 0
    %3270 = vmatmul.mubr.bf16.gmra.mxu0 %v2981
    %v3271 = vpop.f32.mrf.mxu0
    %v3272 = vadd.f32 %v2915, %v3271
    %v3273 = vpop.f32.mrf.mxu0
    %v3274 = vpop.f32.mrf.mxu0
    %v3275 = vadd.f32 %v2915, %v3274
    %v3276 = vpop.f32.mrf.mxu0
    %3277 = vmatprep.mubr.bf16.mxu0 0
    %3278 = vmatmul.mubr.bf16.gmra.mxu0 %v2984
    %v3279 = vpop.f32.mrf.mxu0
    %v3280 = vadd.f32 %v2915, %v3279
    %v3281 = vpop.f32.mrf.mxu0
    %v3282 = vpop.f32.mrf.mxu0
    %v3283 = vadd.f32 %v2915, %v3282
    %v3284 = vpop.f32.mrf.mxu0
    %3285 = vmatprep.mubr.bf16.mxu0 0
    %3286 = vmatmul.mubr.bf16.gmra.mxu0 %v2987
    %v3287 = vpop.f32.mrf.mxu0
    %v3288 = vadd.f32 %v2915, %v3287
    %v3289 = vpop.f32.mrf.mxu0
    %v3290 = vpop.f32.mrf.mxu0
    %v3291 = vadd.f32 %v2915, %v3290
    %v3292 = vpop.f32.mrf.mxu0
    %3293 = vmatprep.mubr.bf16.mxu0 0
    %3294 = vmatmul.mubr.bf16.gmra.mxu0 %v2990
    %v3295 = vpop.f32.mrf.mxu0
    %v3296 = vadd.f32 %v2915, %v3295
    %v3297 = vpop.f32.mrf.mxu0
    %v3298 = vpop.f32.mrf.mxu0
    %v3299 = vadd.f32 %v2915, %v3298
    %v3300 = vpop.f32.mrf.mxu0
    %3301 = vmatprep.mubr.bf16.mxu0 0
    %3302 = vmatmul.mubr.bf16.gmra.mxu0 %v2993
    %v3303 = vpop.f32.mrf.mxu0
    %v3304 = vadd.f32 %v2915, %v3303
    %v3305 = vpop.f32.mrf.mxu0
    %v3306 = vpop.f32.mrf.mxu0
    %v3307 = vadd.f32 %v2915, %v3306
    %v3308 = vpop.f32.mrf.mxu0
    %3309 = vmatprep.mubr.bf16.mxu0 0
    %3310 = vmatmul.mubr.bf16.gmra.mxu0 %v2996
    %v3311 = vpop.f32.mrf.mxu0
    %v3312 = vadd.f32 %v2915, %v3311
    %v3313 = vpop.f32.mrf.mxu0
    %v3314 = vpop.f32.mrf.mxu0
    %v3315 = vadd.f32 %v2915, %v3314
    %v3316 = vpop.f32.mrf.mxu0
    %3317 = vmatprep.mubr.bf16.mxu0 0
    %3318 = vmatmul.mubr.bf16.gmra.mxu0 %v2999
    %v3319 = vpop.f32.mrf.mxu0
    %v3320 = vadd.f32 %v2915, %v3319
    %v3321 = vpop.f32.mrf.mxu0
    %v3322 = vpop.f32.mrf.mxu0
    %v3323 = vadd.f32 %v2915, %v3322
    %v3324 = vpop.f32.mrf.mxu0
    %3325 = vmatprep.mubr.bf16.mxu0 0
    %3326 = vmatmul.mubr.bf16.gmra.mxu0 %v3002
    %v3327 = vpop.f32.mrf.mxu0
    %v3328 = vadd.f32 %v2915, %v3327
    %v3329 = vpop.f32.mrf.mxu0
    %v3330 = vpop.f32.mrf.mxu0
    %v3331 = vadd.f32 %v2915, %v3330
    %v3332 = vpop.f32.mrf.mxu0
    %3333 = vmatprep.mubr.bf16.mxu0 0
    %3334 = vmatmul.mubr.bf16.gmra.mxu0 %v3005
    %v3335 = vpop.f32.mrf.mxu0
    %v3336 = vadd.f32 %v2915, %v3335
    %v3337 = vpop.f32.mrf.mxu0
    %v3338 = vpop.f32.mrf.mxu0
    %v3339 = vadd.f32 %v2915, %v3338
    %v3340 = vpop.f32.mrf.mxu0
    %3341 = vmatprep.mubr.bf16.mxu0 0
    %3342 = vmatmul.mubr.bf16.gmra.mxu0 %v3008
    %v3343 = vpop.f32.mrf.mxu0
    %v3344 = vadd.f32 %v2915, %v3343
    %v3345 = vpop.f32.mrf.mxu0
    %v3346 = vpop.f32.mrf.mxu0
    %v3347 = vadd.f32 %v2915, %v3346
    %v3348 = vpop.f32.mrf.mxu0
    %3349 = vmatprep.mubr.bf16.mxu0 0
    %3350 = vmatmul.mubr.bf16.gmra.mxu0 %v3011
    %v3351 = vpop.f32.mrf.mxu0
    %v3352 = vadd.f32 %v2915, %v3351
    %v3353 = vpop.f32.mrf.mxu0
    %v3354 = vpop.f32.mrf.mxu0
    %v3355 = vadd.f32 %v2915, %v3354
    %v3356 = vpop.f32.mrf.mxu0
    %3357 = vmatprep.mubr.bf16.mxu0 0
    %3358 = vmatmul.mubr.bf16.gmra.mxu0 %v3014
    %v3359 = vpop.f32.mrf.mxu0
    %v3360 = vadd.f32 %v2915, %v3359
    %v3361 = vpop.f32.mrf.mxu0
    %v3362 = vpop.f32.mrf.mxu0
    %v3363 = vadd.f32 %v2915, %v3362
    %v3364 = vpop.f32.mrf.mxu0
    %3365 = vmatprep.mubr.bf16.mxu0 0
    %3366 = vmatmul.mubr.bf16.gmra.mxu0 %v3017
    %v3367 = vpop.f32.mrf.mxu0
    %v3368 = vadd.f32 %v2915, %v3367
    %v3369 = vpop.f32.mrf.mxu0
    %v3370 = vpop.f32.mrf.mxu0
    %v3371 = vadd.f32 %v2915, %v3370
    %v3372 = vpop.f32.mrf.mxu0
    %3373 = vmatprep.mubr.bf16.mxu0 0
    %3374 = vmatmul.mubr.bf16.gmra.mxu0 %v3020
    %v3375 = vpop.f32.mrf.mxu0
    %v3376 = vadd.f32 %v2915, %v3375
    %v3377 = vpop.f32.mrf.mxu0
    %v3378 = vpop.f32.mrf.mxu0
    %v3379 = vadd.f32 %v2915, %v3378
    %v3380 = vpop.f32.mrf.mxu0
    %3381 = vmatprep.mubr.bf16.mxu0 0
    %3382 = vmatmul.mubr.bf16.gmra.mxu0 %v3023
    %v3383 = vpop.f32.mrf.mxu0
    %v3384 = vadd.f32 %v2915, %v3383
    %v3385 = vpop.f32.mrf.mxu0
    %v3386 = vpop.f32.mrf.mxu0
    %v3387 = vadd.f32 %v2915, %v3386
    %v3388 = vpop.f32.mrf.mxu0
    %3389 = vmatprep.mubr.bf16.mxu0 0
    %3390 = vmatmul.mubr.bf16.gmra.mxu0 %v3026
    %v3391 = vpop.f32.mrf.mxu0
    %v3392 = vadd.f32 %v2915, %v3391
    %v3393 = vpop.f32.mrf.mxu0
    %v3394 = vpop.f32.mrf.mxu0
    %v3395 = vadd.f32 %v2915, %v3394
    %v3396 = vpop.f32.mrf.mxu0
    %3397 = vmatprep.mubr.bf16.mxu0 0
    %3398 = vmatmul.mubr.bf16.gmra.mxu0 %v3029
    %v3399 = vpop.f32.mrf.mxu0
    %v3400 = vadd.f32 %v2915, %v3399
    %v3401 = vpop.f32.mrf.mxu0
    %v3402 = vpop.f32.mrf.mxu0
    %v3403 = vadd.f32 %v2915, %v3402
    %v3404 = vpop.f32.mrf.mxu0
    %3405 = vmatprep.mubr.bf16.mxu0 0
    %3406 = vmatmul.mubr.bf16.gmra.mxu0 %v3032
    %v3407 = vpop.f32.mrf.mxu0
    %v3408 = vadd.f32 %v2915, %v3407
    %v3409 = vpop.f32.mrf.mxu0
    %v3410 = vpop.f32.mrf.mxu0
    %v3411 = vadd.f32 %v2915, %v3410
    %v3412 = vpop.f32.mrf.mxu0
    %3413 = vmatprep.mubr.bf16.mxu0 0
    %3414 = vmatmul.mubr.bf16.gmra.mxu0 %v3035
    %v3415 = vpop.f32.mrf.mxu0
    %v3416 = vadd.f32 %v2915, %v3415
    %v3417 = vpop.f32.mrf.mxu0
    %v3418 = vpop.f32.mrf.mxu0
    %v3419 = vadd.f32 %v2915, %v3418
    %v3420 = vpop.f32.mrf.mxu0
    %3421 = vmatprep.mubr.bf16.mxu0 0
    %3422 = vmatmul.mubr.bf16.gmra.mxu0 %v3038
    %v3423 = vpop.f32.mrf.mxu0
    %v3424 = vadd.f32 %v2915, %v3423
    %v3425 = vpop.f32.mrf.mxu0
    %v3426 = vpop.f32.mrf.mxu0
    %v3427 = vadd.f32 %v2915, %v3426
    %v3428 = vpop.f32.mrf.mxu0
    %3429 = vmatprep.mubr.bf16.mxu0 0
    %3430 = vmatmul.mubr.bf16.gmra.mxu0 %v3041
    %v3431 = vpop.f32.mrf.mxu0
    %v3432 = vadd.f32 %v2915, %v3431
    %v3433 = vpop.f32.mrf.mxu0
    %v3434 = vpop.f32.mrf.mxu0
    %v3435 = vadd.f32 %v2915, %v3434
    %v3436 = vpop.f32.mrf.mxu0
    %3437 = vmatprep.mubr.bf16.mxu0 0
    %3438 = vmatmul.mubr.bf16.gmra.mxu0 %v3044
    %v3439 = vpop.f32.mrf.mxu0
    %v3440 = vadd.f32 %v2915, %v3439
    %v3441 = vpop.f32.mrf.mxu0
    %v3442 = vpop.f32.mrf.mxu0
    %v3443 = vadd.f32 %v2915, %v3442
    %v3444 = vpop.f32.mrf.mxu0
    %3445 = vmatprep.mubr.bf16.mxu0 0
    %3446 = vmatmul.mubr.bf16.gmra.mxu0 %v3047
    %v3447 = vpop.f32.mrf.mxu0
    %v3448 = vadd.f32 %v2915, %v3447
    %v3449 = vpop.f32.mrf.mxu0
    %v3450 = vpop.f32.mrf.mxu0
    %v3451 = vadd.f32 %v2915, %v3450
    %v3452 = vpop.f32.mrf.mxu0
    %3453 = vmatprep.mubr.bf16.mxu0 0
    %3454 = vmatmul.mubr.bf16.gmra.mxu0 %v3050
    %v3455 = vpop.f32.mrf.mxu0
    %v3456 = vadd.f32 %v2915, %v3455
    %v3457 = vpop.f32.mrf.mxu0
    %v3458 = vpop.f32.mrf.mxu0
    %v3459 = vadd.f32 %v2915, %v3458
    %v3460 = vpop.f32.mrf.mxu0
    %3461 = vmatprep.mubr.bf16.mxu0 0
    %3462 = vmatmul.mubr.bf16.gmra.mxu0 %v3053
    %v3463 = vpop.f32.mrf.mxu0
    %v3464 = vadd.f32 %v2915, %v3463
    %v3465 = vpop.f32.mrf.mxu0
    %v3466 = vpop.f32.mrf.mxu0
    %v3467 = vadd.f32 %v2915, %v3466
    %v3468 = vpop.f32.mrf.mxu0
    %3469 = vmatprep.mubr.bf16.mxu0 0
    %3470 = vmatmul.mubr.bf16.gmra.mxu0 %v3056
    %v3471 = vpop.f32.mrf.mxu0
    %v3472 = vadd.f32 %v2915, %v3471
    %v3473 = vpop.f32.mrf.mxu0
    %v3474 = vpop.f32.mrf.mxu0
    %v3475 = vadd.f32 %v2915, %v3474
    %v3476 = vpop.f32.mrf.mxu0
    %3477 = vmatprep.mubr.bf16.mxu0 0
    %3478 = vmatmul.mubr.bf16.gmra.mxu0 %v3059
    %v3479 = vpop.f32.mrf.mxu0
    %v3480 = vadd.f32 %v2915, %v3479
    %v3481 = vpop.f32.mrf.mxu0
    %v3482 = vpop.f32.mrf.mxu0
    %v3483 = vadd.f32 %v2915, %v3482
    %v3484 = vpop.f32.mrf.mxu0
    %3485 = vmatprep.mubr.bf16.mxu0 0
    %3486 = vmatmul.mubr.bf16.gmra.mxu0 %v3062
    %v3487 = vpop.f32.mrf.mxu0
    %v3488 = vadd.f32 %v2915, %v3487
    %v3489 = vpop.f32.mrf.mxu0
    %v3490 = vpop.f32.mrf.mxu0
    %v3491 = vadd.f32 %v2915, %v3490
    %v3492 = vpop.f32.mrf.mxu0
    %3493 = vmatprep.mubr.bf16.mxu0 0
    %3494 = vmatmul.mubr.bf16.gmra.mxu0 %v3065
    %v3495 = vpop.f32.mrf.mxu0
    %v3496 = vadd.f32 %v2915, %v3495
    %v3497 = vpop.f32.mrf.mxu0
    %v3498 = vpop.f32.mrf.mxu0
    %v3499 = vadd.f32 %v2915, %v3498
    %v3500 = vpop.f32.mrf.mxu0
    %3501 = vmatprep.mubr.bf16.mxu0 0
    %3502 = vmatmul.mubr.bf16.gmra.mxu0 %v3068
    %v3503 = vpop.f32.mrf.mxu0
    %v3504 = vadd.f32 %v2915, %v3503
    %v3505 = vpop.f32.mrf.mxu0
    %v3506 = vpop.f32.mrf.mxu0
    %v3507 = vadd.f32 %v2915, %v3506
    %v3508 = vpop.f32.mrf.mxu0
    %3509 = vmatprep.mubr.bf16.mxu0 0
    %3510 = vmatmul.mubr.bf16.gmra.mxu0 %v3071
    %v3511 = vpop.f32.mrf.mxu0
    %v3512 = vadd.f32 %v2915, %v3511
    %v3513 = vpop.f32.mrf.mxu0
    %v3514 = vpop.f32.mrf.mxu0
    %v3515 = vadd.f32 %v2915, %v3514
    %v3516 = vpop.f32.mrf.mxu0
    %3517 = vmatprep.mubr.bf16.mxu0 0
    %3518 = vmatmul.mubr.bf16.gmra.mxu0 %v3074
    %v3519 = vpop.f32.mrf.mxu0
    %v3520 = vadd.f32 %v2915, %v3519
    %v3521 = vpop.f32.mrf.mxu0
    %v3522 = vpop.f32.mrf.mxu0
    %v3523 = vadd.f32 %v2915, %v3522
    %v3524 = vpop.f32.mrf.mxu0
    %3525 = vmatprep.mubr.bf16.mxu0 0
    %3526 = vmatmul.mubr.bf16.gmra.mxu0 %v3077
    %v3527 = vpop.f32.mrf.mxu0
    %v3528 = vadd.f32 %v2915, %v3527
    %v3529 = vpop.f32.mrf.mxu0
    %v3530 = vpop.f32.mrf.mxu0
    %v3531 = vadd.f32 %v2915, %v3530
    %v3532 = vpop.f32.mrf.mxu0
    %3533 = vmatprep.mubr.bf16.mxu0 0
    %3534 = vmatmul.mubr.bf16.gmra.mxu0 %v3080
    %v3535 = vpop.f32.mrf.mxu0
    %v3536 = vadd.f32 %v2915, %v3535
    %v3537 = vpop.f32.mrf.mxu0
    %v3538 = vpop.f32.mrf.mxu0
    %v3539 = vadd.f32 %v2915, %v3538
    %v3540 = vpop.f32.mrf.mxu0
    %3541 = vmatprep.mubr.bf16.mxu0 0
    %3542 = vmatmul.mubr.bf16.gmra.mxu0 %v3083
    %v3543 = vpop.f32.mrf.mxu0
    %v3544 = vadd.f32 %v2915, %v3543
    %v3545 = vpop.f32.mrf.mxu0
    %v3546 = vpop.f32.mrf.mxu0
    %v3547 = vadd.f32 %v2915, %v3546
    %v3548 = vpop.f32.mrf.mxu0
    %3549 = vmatprep.mubr.bf16.mxu0 0
    %3550 = vmatmul.mubr.bf16.gmra.mxu0 %v3086
    %v3551 = vpop.f32.mrf.mxu0
    %v3552 = vadd.f32 %v2915, %v3551
    %v3553 = vpop.f32.mrf.mxu0
    %v3554 = vpop.f32.mrf.mxu0
    %v3555 = vadd.f32 %v2915, %v3554
    %v3556 = vpop.f32.mrf.mxu0
    %3557 = vmatprep.mubr.bf16.mxu0 0
    %3558 = vmatmul.mubr.bf16.gmra.mxu0 %v3089
    %v3559 = vpop.f32.mrf.mxu0
    %v3560 = vadd.f32 %v2915, %v3559
    %v3561 = vpop.f32.mrf.mxu0
    %v3562 = vpop.f32.mrf.mxu0
    %v3563 = vadd.f32 %v2915, %v3562
    %v3564 = vpop.f32.mrf.mxu0
    %3565 = vmatprep.mubr.bf16.mxu0 0
    %3566 = vmatmul.mubr.bf16.gmra.mxu0 %v3092
    %v3567 = vpop.f32.mrf.mxu0
    %v3568 = vadd.f32 %v2915, %v3567
    %v3569 = vpop.f32.mrf.mxu0
    %v3570 = vpop.f32.mrf.mxu0
    %v3571 = vadd.f32 %v2915, %v3570
    %v3572 = vpop.f32.mrf.mxu0
    %3573 = vmatprep.mubr.bf16.mxu0 0
    %3574 = vmatmul.mubr.bf16.gmra.mxu0 %v3095
    %v3575 = vpop.f32.mrf.mxu0
    %v3576 = vadd.f32 %v2915, %v3575
    %v3577 = vpop.f32.mrf.mxu0
    %v3578 = vpop.f32.mrf.mxu0
    %v3579 = vadd.f32 %v2915, %v3578
    %v3580 = vpop.f32.mrf.mxu0
    %3581 = vmatprep.mubr.bf16.mxu0 0
    %3582 = vmatmul.mubr.bf16.gmra.mxu0 %v3098
    %v3583 = vpop.f32.mrf.mxu0
    %v3584 = vadd.f32 %v2915, %v3583
    %v3585 = vpop.f32.mrf.mxu0
    %v3586 = vpop.f32.mrf.mxu0
    %v3587 = vadd.f32 %v2915, %v3586
    %v3588 = vpop.f32.mrf.mxu0
    %3589 = vmatprep.mubr.bf16.mxu0 0
    %3590 = vmatmul.mubr.bf16.gmra.mxu0 %v3101
    %v3591 = vpop.f32.mrf.mxu0
    %v3592 = vadd.f32 %v2915, %v3591
    %v3593 = vpop.f32.mrf.mxu0
    %v3594 = vpop.f32.mrf.mxu0
    %v3595 = vadd.f32 %v2915, %v3594
    %v3596 = vpop.f32.mrf.mxu0
    %3597 = vmatprep.mubr.bf16.mxu0 0
    %3598 = vmatmul.mubr.bf16.gmra.mxu0 %v3104
    %v3599 = vpop.f32.mrf.mxu0
    %v3600 = vadd.f32 %v2915, %v3599
    %v3601 = vpop.f32.mrf.mxu0
    %v3602 = vpop.f32.mrf.mxu0
    %v3603 = vadd.f32 %v2915, %v3602
    %v3604 = vpop.f32.mrf.mxu0
    %3605 = vmatprep.mubr.bf16.mxu0 0
    %3606 = vmatmul.mubr.bf16.gmra.mxu0 %v3107
    %v3607 = vpop.f32.mrf.mxu0
    %v3608 = vadd.f32 %v2915, %v3607
    %v3609 = vpop.f32.mrf.mxu0
    %v3610 = vpop.f32.mrf.mxu0
    %v3611 = vadd.f32 %v2915, %v3610
    %v3612 = vpop.f32.mrf.mxu0
    %3613 = vmatprep.mubr.bf16.mxu0 0
    %3614 = vmatmul.mubr.bf16.gmra.mxu0 %v3110
    %v3615 = vpop.f32.mrf.mxu0
    %v3616 = vadd.f32 %v2915, %v3615
    %v3617 = vpop.f32.mrf.mxu0
    %v3618 = vpop.f32.mrf.mxu0
    %v3619 = vadd.f32 %v2915, %v3618
    %v3620 = vpop.f32.mrf.mxu0
    %3621 = vmatprep.mubr.bf16.mxu0 0
    %3622 = vmatmul.mubr.bf16.gmra.mxu0 %v3113
    %v3623 = vpop.f32.mrf.mxu0
    %v3624 = vadd.f32 %v2915, %v3623
    %v3625 = vpop.f32.mrf.mxu0
    %v3626 = vpop.f32.mrf.mxu0
    %v3627 = vadd.f32 %v2915, %v3626
    %v3628 = vpop.f32.mrf.mxu0
    %3629 = vmatprep.mubr.bf16.mxu0 0
    %3630 = vmatmul.mubr.bf16.gmra.mxu0 %v3116
    %v3631 = vpop.f32.mrf.mxu0
    %v3632 = vadd.f32 %v2915, %v3631
    %v3633 = vpop.f32.mrf.mxu0
    %v3634 = vpop.f32.mrf.mxu0
    %v3635 = vadd.f32 %v2915, %v3634
    %v3636 = vpop.f32.mrf.mxu0
    %3637 = vmatprep.mubr.bf16.mxu0 0
    %3638 = vmatmul.mubr.bf16.gmra.mxu0 %v3119
    %v3639 = vpop.f32.mrf.mxu0
    %v3640 = vadd.f32 %v2915, %v3639
    %v3641 = vpop.f32.mrf.mxu0
    %v3642 = vpop.f32.mrf.mxu0
    %v3643 = vadd.f32 %v2915, %v3642
    %v3644 = vpop.f32.mrf.mxu0
    %3645 = vmatprep.mubr.bf16.mxu0 0
    %3646 = vmatmul.mubr.bf16.gmra.mxu0 %v3122
    %v3647 = vpop.f32.mrf.mxu0
    %v3648 = vadd.f32 %v2915, %v3647
    %v3649 = vpop.f32.mrf.mxu0
    %v3650 = vpop.f32.mrf.mxu0
    %v3651 = vadd.f32 %v2915, %v3650
    %v3652 = vpop.f32.mrf.mxu0
    %3653 = vmatprep.mubr.bf16.mxu0 0
    %3654 = vmatmul.mubr.bf16.gmra.mxu0 %v3125
    %v3655 = vpop.f32.mrf.mxu0
    %v3656 = vadd.f32 %v2915, %v3655
    %v3657 = vpop.f32.mrf.mxu0
    %v3658 = vpop.f32.mrf.mxu0
    %v3659 = vadd.f32 %v2915, %v3658
    %v3660 = vpop.f32.mrf.mxu0
    %3661 = vmatprep.mubr.bf16.mxu0 0
    %3662 = vmatmul.mubr.bf16.gmra.mxu0 %v3128
    %v3663 = vpop.f32.mrf.mxu0
    %v3664 = vadd.f32 %v2915, %v3663
    %v3665 = vpop.f32.mrf.mxu0
    %v3666 = vpop.f32.mrf.mxu0
    %v3667 = vadd.f32 %v2915, %v3666
    %v3668 = vpop.f32.mrf.mxu0
    %3669 = vmatprep.mubr.bf16.mxu0 0
    %3670 = vmatmul.mubr.bf16.gmra.mxu0 %v3131
    %v3671 = vpop.f32.mrf.mxu0
    %v3672 = vadd.f32 %v2915, %v3671
    %v3673 = vpop.f32.mrf.mxu0
    %v3674 = vpop.f32.mrf.mxu0
    %v3675 = vadd.f32 %v2915, %v3674
    %v3676 = vpop.f32.mrf.mxu0
    %3677 = vdwg.mxu0
    %v3678 = vmax.f32 %v3168, %v3171
    %v3679 = vmax.f32 %v3678, %v3176
    %v3680 = vmax.f32 %v3679, %v3179
    %v3681 = vmax.f32 %v3680, %v3184
    %v3682 = vmax.f32 %v3681, %v3187
    %v3683 = vmax.f32 %v3682, %v3192
    %v3684 = vmax.f32 %v3683, %v3195
    %v3685 = vrot.slane %v3684, 4
    %v3686 = vmax.f32 %v3684, %v3685
    %v3687 = vrot.slane %v3686, 2
    %v3688 = vmax.f32 %v3686, %v3687
    %v3689 = vrot.slane %v3688, 1
    %v3690 = vmax.f32 %v3688, %v3689
    %v3691 = vmax.f32 %v3200, %v3203
    %v3692 = vmax.f32 %v3691, %v3208
    %v3693 = vmax.f32 %v3692, %v3211
    %v3694 = vmax.f32 %v3693, %v3216
    %v3695 = vmax.f32 %v3694, %v3219
    %v3696 = vmax.f32 %v3695, %v3224
    %v3697 = vmax.f32 %v3696, %v3227
    %v3698 = vrot.slane %v3697, 4
    %v3699 = vmax.f32 %v3697, %v3698
    %v3700 = vrot.slane %v3699, 2
    %v3701 = vmax.f32 %v3699, %v3700
    %v3702 = vrot.slane %v3701, 1
    %v3703 = vmax.f32 %v3701, %v3702
    %v3704 = vmax.f32 %v3232, %v3235
    %v3705 = vmax.f32 %v3704, %v3240
    %v3706 = vmax.f32 %v3705, %v3243
    %v3707 = vmax.f32 %v3706, %v3248
    %v3708 = vmax.f32 %v3707, %v3251
    %v3709 = vmax.f32 %v3708, %v3256
    %v3710 = vmax.f32 %v3709, %v3259
    %v3711 = vrot.slane %v3710, 4
    %v3712 = vmax.f32 %v3710, %v3711
    %v3713 = vrot.slane %v3712, 2
    %v3714 = vmax.f32 %v3712, %v3713
    %v3715 = vrot.slane %v3714, 1
    %v3716 = vmax.f32 %v3714, %v3715
    %v3717 = vmax.f32 %v3264, %v3267
    %v3718 = vmax.f32 %v3717, %v3272
    %v3719 = vmax.f32 %v3718, %v3275
    %v3720 = vmax.f32 %v3719, %v3280
    %v3721 = vmax.f32 %v3720, %v3283
    %v3722 = vmax.f32 %v3721, %v3288
    %v3723 = vmax.f32 %v3722, %v3291
    %v3724 = vrot.slane %v3723, 4
    %v3725 = vmax.f32 %v3723, %v3724
    %v3726 = vrot.slane %v3725, 2
    %v3727 = vmax.f32 %v3725, %v3726
    %v3728 = vrot.slane %v3727, 1
    %v3729 = vmax.f32 %v3727, %v3728
    %v3730 = vmax.f32 %v3296, %v3299
    %v3731 = vmax.f32 %v3730, %v3304
    %v3732 = vmax.f32 %v3731, %v3307
    %v3733 = vmax.f32 %v3732, %v3312
    %v3734 = vmax.f32 %v3733, %v3315
    %v3735 = vmax.f32 %v3734, %v3320
    %v3736 = vmax.f32 %v3735, %v3323
    %v3737 = vrot.slane %v3736, 4
    %v3738 = vmax.f32 %v3736, %v3737
    %v3739 = vrot.slane %v3738, 2
    %v3740 = vmax.f32 %v3738, %v3739
    %v3741 = vrot.slane %v3740, 1
    %v3742 = vmax.f32 %v3740, %v3741
    %v3743 = vmax.f32 %v3328, %v3331
    %v3744 = vmax.f32 %v3743, %v3336
    %v3745 = vmax.f32 %v3744, %v3339
    %v3746 = vmax.f32 %v3745, %v3344
    %v3747 = vmax.f32 %v3746, %v3347
    %v3748 = vmax.f32 %v3747, %v3352
    %v3749 = vmax.f32 %v3748, %v3355
    %v3750 = vrot.slane %v3749, 4
    %v3751 = vmax.f32 %v3749, %v3750
    %v3752 = vrot.slane %v3751, 2
    %v3753 = vmax.f32 %v3751, %v3752
    %v3754 = vrot.slane %v3753, 1
    %v3755 = vmax.f32 %v3753, %v3754
    %v3756 = vmax.f32 %v3360, %v3363
    %v3757 = vmax.f32 %v3756, %v3368
    %v3758 = vmax.f32 %v3757, %v3371
    %v3759 = vmax.f32 %v3758, %v3376
    %v3760 = vmax.f32 %v3759, %v3379
    %v3761 = vmax.f32 %v3760, %v3384
    %v3762 = vmax.f32 %v3761, %v3387
    %v3763 = vrot.slane %v3762, 4
    %v3764 = vmax.f32 %v3762, %v3763
    %v3765 = vrot.slane %v3764, 2
    %v3766 = vmax.f32 %v3764, %v3765
    %v3767 = vrot.slane %v3766, 1
    %v3768 = vmax.f32 %v3766, %v3767
    %v3769 = vmax.f32 %v3392, %v3395
    %v3770 = vmax.f32 %v3769, %v3400
    %v3771 = vmax.f32 %v3770, %v3403
    %v3772 = vmax.f32 %v3771, %v3408
    %v3773 = vmax.f32 %v3772, %v3411
    %v3774 = vmax.f32 %v3773, %v3416
    %v3775 = vmax.f32 %v3774, %v3419
    %v3776 = vrot.slane %v3775, 4
    %v3777 = vmax.f32 %v3775, %v3776
    %v3778 = vrot.slane %v3777, 2
    %v3779 = vmax.f32 %v3777, %v3778
    %v3780 = vrot.slane %v3779, 1
    %v3781 = vmax.f32 %v3779, %v3780
    %v3782 = vmax.f32 %v3424, %v3427
    %v3783 = vmax.f32 %v3782, %v3432
    %v3784 = vmax.f32 %v3783, %v3435
    %v3785 = vmax.f32 %v3784, %v3440
    %v3786 = vmax.f32 %v3785, %v3443
    %v3787 = vmax.f32 %v3786, %v3448
    %v3788 = vmax.f32 %v3787, %v3451
    %v3789 = vrot.slane %v3788, 4
    %v3790 = vmax.f32 %v3788, %v3789
    %v3791 = vrot.slane %v3790, 2
    %v3792 = vmax.f32 %v3790, %v3791
    %v3793 = vrot.slane %v3792, 1
    %v3794 = vmax.f32 %v3792, %v3793
    %v3795 = vmax.f32 %v3456, %v3459
    %v3796 = vmax.f32 %v3795, %v3464
    %v3797 = vmax.f32 %v3796, %v3467
    %v3798 = vmax.f32 %v3797, %v3472
    %v3799 = vmax.f32 %v3798, %v3475
    %v3800 = vmax.f32 %v3799, %v3480
    %v3801 = vmax.f32 %v3800, %v3483
    %v3802 = vrot.slane %v3801, 4
    %v3803 = vmax.f32 %v3801, %v3802
    %v3804 = vrot.slane %v3803, 2
    %v3805 = vmax.f32 %v3803, %v3804
    %v3806 = vrot.slane %v3805, 1
    %v3807 = vmax.f32 %v3805, %v3806
    %v3808 = vmax.f32 %v3488, %v3491
    %v3809 = vmax.f32 %v3808, %v3496
    %v3810 = vmax.f32 %v3809, %v3499
    %v3811 = vmax.f32 %v3810, %v3504
    %v3812 = vmax.f32 %v3811, %v3507
    %v3813 = vmax.f32 %v3812, %v3512
    %v3814 = vmax.f32 %v3813, %v3515
    %v3815 = vrot.slane %v3814, 4
    %v3816 = vmax.f32 %v3814, %v3815
    %v3817 = vrot.slane %v3816, 2
    %v3818 = vmax.f32 %v3816, %v3817
    %v3819 = vrot.slane %v3818, 1
    %v3820 = vmax.f32 %v3818, %v3819
    %v3821 = vmax.f32 %v3520, %v3523
    %v3822 = vmax.f32 %v3821, %v3528
    %v3823 = vmax.f32 %v3822, %v3531
    %v3824 = vmax.f32 %v3823, %v3536
    %v3825 = vmax.f32 %v3824, %v3539
    %v3826 = vmax.f32 %v3825, %v3544
    %v3827 = vmax.f32 %v3826, %v3547
    %v3828 = vrot.slane %v3827, 4
    %v3829 = vmax.f32 %v3827, %v3828
    %v3830 = vrot.slane %v3829, 2
    %v3831 = vmax.f32 %v3829, %v3830
    %v3832 = vrot.slane %v3831, 1
    %v3833 = vmax.f32 %v3831, %v3832
    %v3834 = vmax.f32 %v3552, %v3555
    %v3835 = vmax.f32 %v3834, %v3560
    %v3836 = vmax.f32 %v3835, %v3563
    %v3837 = vmax.f32 %v3836, %v3568
    %v3838 = vmax.f32 %v3837, %v3571
    %v3839 = vmax.f32 %v3838, %v3576
    %v3840 = vmax.f32 %v3839, %v3579
    %v3841 = vrot.slane %v3840, 4
    %v3842 = vmax.f32 %v3840, %v3841
    %v3843 = vrot.slane %v3842, 2
    %v3844 = vmax.f32 %v3842, %v3843
    %v3845 = vrot.slane %v3844, 1
    %v3846 = vmax.f32 %v3844, %v3845
    %v3847 = vmax.f32 %v3584, %v3587
    %v3848 = vmax.f32 %v3847, %v3592
    %v3849 = vmax.f32 %v3848, %v3595
    %v3850 = vmax.f32 %v3849, %v3600
    %v3851 = vmax.f32 %v3850, %v3603
    %v3852 = vmax.f32 %v3851, %v3608
    %v3853 = vmax.f32 %v3852, %v3611
    %v3854 = vrot.slane %v3853, 4
    %v3855 = vmax.f32 %v3853, %v3854
    %v3856 = vrot.slane %v3855, 2
    %v3857 = vmax.f32 %v3855, %v3856
    %v3858 = vrot.slane %v3857, 1
    %v3859 = vmax.f32 %v3857, %v3858
    %v3860 = vmax.f32 %v3616, %v3619
    %v3861 = vmax.f32 %v3860, %v3624
    %v3862 = vmax.f32 %v3861, %v3627
    %v3863 = vmax.f32 %v3862, %v3632
    %v3864 = vmax.f32 %v3863, %v3635
    %v3865 = vmax.f32 %v3864, %v3640
    %v3866 = vmax.f32 %v3865, %v3643
    %v3867 = vrot.slane %v3866, 4
    %v3868 = vmax.f32 %v3866, %v3867
    %v3869 = vrot.slane %v3868, 2
    %v3870 = vmax.f32 %v3868, %v3869
    %v3871 = vrot.slane %v3870, 1
    %v3872 = vmax.f32 %v3870, %v3871
    %v3873 = vmax.f32 %v3648, %v3651
    %v3874 = vmax.f32 %v3873, %v3656
    %v3875 = vmax.f32 %v3874, %v3659
    %v3876 = vmax.f32 %v3875, %v3664
    %v3877 = vmax.f32 %v3876, %v3667
    %v3878 = vmax.f32 %v3877, %v3672
    %v3879 = vmax.f32 %v3878, %v3675
    %v3880 = vrot.slane %v3879, 4
    %v3881 = vmax.f32 %v3879, %v3880
    %v3882 = vrot.slane %v3881, 2
    %v3883 = vmax.f32 %v3881, %v3882
    %v3884 = vrot.slane %v3883, 1
    %v3885 = vmax.f32 %v3883, %v3884
    %vm3902 = vcmask 1041409
    %v3903 = vsel %vm3902, %v3703, %v3690
    %vm3904 = vcmask 1042434
    %v3905 = vsel %vm3904, %v3716, %v3903
    %vm3906 = vcmask 1043459
    %v3907 = vsel %vm3906, %v3729, %v3905
    %vm3908 = vcmask 1044484
    %v3909 = vsel %vm3908, %v3742, %v3907
    %vm3910 = vcmask 1045509
    %v3911 = vsel %vm3910, %v3755, %v3909
    %vm3912 = vcmask 1046534
    %v3913 = vsel %vm3912, %v3768, %v3911
    %vm3914 = vcmask 1047559
    %v3915 = vsel %vm3914, %v3781, %v3913
    %v3916 = vsel %vm3902, %v3807, %v3794
    %v3917 = vsel %vm3904, %v3820, %v3916
    %v3918 = vsel %vm3906, %v3833, %v3917
    %v3919 = vsel %vm3908, %v3846, %v3918
    %v3920 = vsel %vm3910, %v3859, %v3919
    %v3921 = vsel %vm3912, %v3872, %v3920
    %v3922 = vsel %vm3914, %v3885, %v3921
    %3925 = vst [vmem:[#allocation2] sm:$0xff] %v3915
    %3926 = vst [vmem:[#allocation2 + $0x8] sm:$0xff] %v3922
    // Predicated region
    $region30: #{tpu_custom_call.1} parent=1 // pred_check
      _
    $region31: #{tpu_custom_call.1} parent=1 // pred_check_branch
      %3928 = sbr.rel (0) target = $region33
    $region32: #{tpu_custom_call.1} parent=1 // pred_region
      %s3930 = ssub.s32 256, 256
      %3931 = vsyncadd [#allocation3], %s3930
      %s3932 = sshll.u32 [#allocation2], 4
      %s3933 = int_to_ptr.vmem [resolvable:$true] %s3932
      %3938 = dma.vmem_to_hbm [thread:$0]  %s3933, 256, %s7, [#allocation3], 128, 128, 8
    $region33: #{tpu_custom_call.1} parent=1 // pred_fallthru
      _
    // Predicated region
    $region34: #{tpu_custom_call.1} parent=1 // pred_check
      _
    $region35: #{tpu_custom_call.1} parent=1 // pred_check_branch
      %3940 = sbr.rel (0) target = $region37
    $region36: #{tpu_custom_call.1} parent=1 // pred_region
      %3941 = dma.done [#allocation3], 256
    $region37: #{tpu_custom_call.1} parent=1 // pred_fallthru
      _
    %3942 = vsyncpa [#allocation3], 1

</llo_original>
